<compile_context>
chip_gen: v6e
topology: v6e:2x2x1
jax: 0.10.0
libtpu: 0.0.40
codegen_flags: <defaults>
</compile_context>

<pallas_src>
import functools

import jax
import jax.numpy as jnp
from jax import lax
from jax.experimental import pallas as pl
from jax.experimental.pallas import tpu as pltpu

NUM_INPUT_FRAMES = 2
# (kernel, stride, pad) for convs[0..6], matching the PyTorch module.
CONV_CFG = [(7, 2, 3), (5, 2, 2), (3, 2, 1), (3, 2, 1), (3, 2, 1), (3, 2, 1), (3, 2, 1)]
CONV_CH = [3 * NUM_INPUT_FRAMES, 16, 32, 64, 128, 256, 256, 256]

MXU_DTYPE = jnp.bfloat16                     # MXU operand dtype (accumulation is f32)
LANE = 128                                   # pad conv output channels to this
VMEM_LIMIT_BYTES = 48 * 1024 * 1024          # v7x-safe scoped VMEM limit
ROW_TILE_BUDGET = 4 * 1024 * 1024            # per-buffer budget: x slab + out block
MAX_ROW_TILE = 64


def _round_up(v, m):
    return (v + m - 1) // m * m


def _pick_row_tile(oh, wp2, c2, ow, cout_p):
    """Largest divisor of OH whose x-slab + output block fit the VMEM budget."""
    act = jnp.dtype(MXU_DTYPE).itemsize
    per_row = wp2 * c2 * act + ow * cout_p * 4
    toh = 1
    for d in range(1, min(oh, MAX_ROW_TILE) + 1):
        if oh % d == 0 and d * per_row <= ROW_TILE_BUDGET:
            toh = d
    return toh


# ---------------------------------------------------------------------------
# Pallas kernels
# ---------------------------------------------------------------------------
def _conv_tap_kernel(x_ref, w_ref, b_ref, o_ref, *, kw2, ow, relu):
    """One kh row-tap of a stride-2 conv, accumulated into the resident output block.

    x_ref: (1, toh, wp2, 2*Cin)   bf16 width space-to-depth rows for this tap
    w_ref: (1, kw2, 2*Cin, CoutP) bf16 phase-merged weights for this tap
    b_ref: (1, CoutP)             f32 bias
    o_ref: (1, toh, OW, CoutP)    f32, revisited across the kh grid axis
    """
    dh = pl.program_id(2)

    @pl.when(dh == 0)
    def _init():
        o_ref[...] = jnp.zeros_like(o_ref)

    toh = x_ref.shape[1]
    cout = o_ref.shape[-1]

    def row_body(r, carry):
        row = x_ref[0, r]                                   # (wp2, 2*Cin)
        acc = jnp.zeros((ow, cout), jnp.float32)
        for d2 in range(kw2):                               # static unroll (<= 4 taps)
            acc = acc + jnp.dot(row[d2:d2 + ow, :], w_ref[0, d2],
                                preferred_element_type=jnp.float32)
        o_ref[0, r] += acc
        return carry

    lax.fori_loop(0, toh, row_body, 0)

    @pl.when(dh == pl.num_programs(2) - 1)
    def _epilogue():
        y = o_ref[...] + b_ref[...]
        if relu:
            y = jnp.maximum(y, 0.0)
        o_ref[...] = y


def _pose_head_kernel(x_ref, w_ref, b_ref, o_ref, *, inv_s):
    """Fused pose_conv (1x1) + spatial mean + 0.01 scale, whole batch in one step."""
    m = jnp.sum(x_ref[...], axis=0) * inv_s                 # (N, C) spatial mean
    o_ref[...] = jnp.dot(m, w_ref[...], preferred_element_type=jnp.float32) + b_ref[...]


# ---------------------------------------------------------------------------
# Wrappers
# ---------------------------------------------------------------------------
def conv2d_s2_relu_pallas(x, wz, bz, k, pad, *, relu=True):
    """Stride-2 Conv2d (PyTorch semantics) + bias + ReLU.

    x : (N, H, W, C) f32 NHWC activation (C may already be lane-padded)
    wz: (kh, kw2, 2*C, CoutP) bf16 phase-merged weights (from prepare_params)
    bz: (1, CoutP) f32 bias
    """
    n, h, w, c = x.shape
    kh = kw = k
    assert kw % 2 == 1
    kw2 = (kw + 1) // 2
    oh = (h + 2 * pad - kh) // 2 + 1
    ow = (w + 2 * pad - kw) // 2 + 1
    c2, cout_p = wz.shape[-2], wz.shape[-1]
    assert wz.shape[0] == kh and c2 == 2 * c

    # Zero-pad spatially.  The right edge is padded so the space-to-depth view
    # always has >= ow + kw2 - 1 columns; extra columns only meet zero weights.
    wp = 2 * (ow + kw2 - 1)
    hp = h + 2 * pad
    xp = jnp.pad(x.astype(MXU_DTYPE),
                 ((0, 0), (pad, pad), (pad, wp - w - pad), (0, 0)))
    wp2 = wp // 2
    z = xp.reshape(n, hp, wp2, c2)          # width space-to-depth: (.., w2, phase*C + c)

    # Row-tap slabs: taps[dh * N + b, r] = z[b, 2*r + dh]   -> (kh*N, OH, wp2, 2C)
    taps = jnp.stack(
        [z[:, dh:dh + 2 * (oh - 1) + 1:2, :, :] for dh in range(kh)], axis=0
    ).reshape(kh * n, oh, wp2, c2)

    toh = _pick_row_tile(oh, wp2, c2, ow, cout_p)
    grid = (n, oh // toh, kh)

    return pl.pallas_call(
        functools.partial(_conv_tap_kernel, kw2=kw2, ow=ow, relu=relu),
        out_shape=jax.ShapeDtypeStruct((n, oh, ow, cout_p), jnp.float32),
        grid=grid,
        in_specs=[
            pl.BlockSpec((1, toh, wp2, c2), lambda b, t, i: (i * n + b, t, 0, 0)),
            pl.BlockSpec((1, kw2, c2, cout_p), lambda b, t, i: (i, 0, 0, 0)),
            pl.BlockSpec((1, cout_p), lambda b, t, i: (0, 0)),
        ],
        out_specs=pl.BlockSpec((1, toh, ow, cout_p), lambda b, t, i: (b, t, 0, 0)),
        compiler_params=pltpu.CompilerParams(
            dimension_semantics=("parallel", "parallel", "arbitrary"),
            vmem_limit_bytes=VMEM_LIMIT_BYTES,
        ),
    )(taps, wz, bz)


def pose_head_pallas(feat, w_pose, b_pose):
    """Fused pose_conv (1x1) + mean over H,W + 0.01 scale. Returns (N, 6*(nf-1))."""
    n, oh, ow, c = feat.shape
    s = oh * ow
    cout = w_pose.shape[-1]
    x = feat.reshape(n, s, c).transpose(1, 0, 2)            # (S, N, C): reduce leading dim
    return pl.pallas_call(
        functools.partial(_pose_head_kernel, inv_s=1.0 / s),
        out_shape=jax.ShapeDtypeStruct((n, cout), jnp.float32),
        grid=(1,),
        in_specs=[
            pl.BlockSpec((s, n, c), lambda i: (0, 0, 0)),
            pl.BlockSpec((c, cout), lambda i: (0, 0)),
            pl.BlockSpec((1, cout), lambda i: (0, 0)),
        ],
        out_specs=pl.BlockSpec((n, cout), lambda i: (0, 0)),
        compiler_params=pltpu.CompilerParams(
            dimension_semantics=("arbitrary",),
            vmem_limit_bytes=VMEM_LIMIT_BYTES,
        ),
    )(x, w_pose, b_pose)


def pose_cnn_forward(x_nchw, prepared):
    """Full PoseCNN forward. Input NCHW like PyTorch; output (N, nf-1, 1, 6)."""
    out = jnp.transpose(x_nchw, (0, 2, 3, 1))               # NCHW -> NHWC, f32
    # TODO(synk): fuse convs 5-7 + pose head into one pallas_call (weights resident in
    # VMEM) to amortize launch overhead once the spatial size collapses to ~1x1.
    for (wz, bz), (k, s, p) in zip(prepared["convs"], CONV_CFG):
        assert s == 2
        out = conv2d_s2_relu_pallas(out, wz, bz, k, p, relu=True)
    w_pose, b_pose = prepared["pose"]
    out = pose_head_pallas(out, w_pose, b_pose)             # (N, 6*(nf-1))
    return out.reshape(-1, NUM_INPUT_FRAMES - 1, 1, 6)


# ---------------------------------------------------------------------------
# One-time parameter repacking (hoisted out of the forward path)
# ---------------------------------------------------------------------------
def _prepare_conv(W, b, cin_padded):
    """PyTorch (Cout, Cin, kh, kw) -> lane-padded, width-phase-merged kernel layout."""
    cout, cin, kh, kw = W.shape
    cout_p = _round_up(cout, LANE)
    kw2 = (kw + 1) // 2
    wt = jnp.transpose(W, (2, 3, 1, 0))                              # (kh, kw, cin, cout)
    wt = jnp.pad(wt, ((0, 0), (0, 2 * kw2 - kw),
                      (0, cin_padded - cin), (0, cout_p - cout)))
    wz = wt.reshape(kh, kw2, 2, cin_padded, cout_p).reshape(
        kh, kw2, 2 * cin_padded, cout_p)
    bz = jnp.pad(b, (0, cout_p - cout)).reshape(1, cout_p).astype(jnp.float32)
    return wz.astype(MXU_DTYPE), bz


def prepare_params(params):
    cin_padded = 3 * NUM_INPUT_FRAMES
    convs = []
    for W, b in params["convs"]:
        wz, bz = _prepare_conv(W, b, cin_padded)
        convs.append((wz, bz))
        cin_padded = wz.shape[-1]              # next layer's (lane-padded) input channels
    w_pose, b_pose = params["pose"]
    cout = w_pose.shape[0]
    w_mat = (0.01 * w_pose.reshape(cout, -1).T).astype(jnp.float32)  # (256, 6), 0.01 folded
    b_mat = (0.01 * b_pose).reshape(1, cout).astype(jnp.float32)
    return {"convs": convs, "pose": (w_mat, b_mat)}


# ---------------------------------------------------------------------------
# Deterministic parameter init (PyTorch-style uniform(-1/sqrt(fan_in), +))
# ---------------------------------------------------------------------------
def init_conv(key, cin, cout, k):
    kw_, kb_ = jax.random.split(key)
    bound = 1.0 / jnp.sqrt(float(cin * k * k))
    W = jax.random.uniform(kw_, (cout, cin, k, k), jnp.float32, -bound, bound)
    b = jax.random.uniform(kb_, (cout,), jnp.float32, -bound, bound)
    return W, b


def init_params(key):
    keys = jax.random.split(key, len(CONV_CFG) + 1)
    convs = [init_conv(keys[i], CONV_CH[i], CONV_CH[i + 1], k)
             for i, (k, _, _) in enumerate(CONV_CFG)]
    pose = init_conv(keys[-1], 256, 6 * (NUM_INPUT_FRAMES - 1), 1)
    return {"convs": convs, "pose": pose}


# ---------------------------------------------------------------------------
# Pure-JAX reference (XLA convs) for correctness checking
# ---------------------------------------------------------------------------
def reference_forward(x_nchw, params, mxu_dtype=jnp.float32):
    out = x_nchw
    for (W, b), (k, s, p) in zip(params["convs"], CONV_CFG):
        out = lax.conv_general_dilated(
            out.astype(mxu_dtype), W.astype(mxu_dtype), (s, s), [(p, p), (p, p)],
            preferred_element_type=jnp.float32)
        out = jnp.maximum(out + b.reshape(1, -1, 1, 1), 0.0)
    w_pose, b_pose = params["pose"]
    out = lax.conv_general_dilated(out, w_pose, (1, 1), [(0, 0), (0, 0)])
    out = out + b_pose.reshape(1, -1, 1, 1)
    out = out.mean(axis=(2, 3))
    return 0.01 * out.reshape(-1, NUM_INPUT_FRAMES - 1, 1, 6)


if __name__ == "__main__":
    key = jax.random.PRNGKey(0)
    k_params, k_x = jax.random.split(key)
    params = init_params(k_params)
    prepared = prepare_params(params)        # one-time weight repack, outside the forward

    # Small input consistent with the module: N=2, C=3*num_input_frames=6, 32x32.
    x = jax.random.normal(k_x, (2, 3 * NUM_INPUT_FRAMES, 32, 32), jnp.float32)

    fwd = jax.jit(pose_cnn_forward)
    out = jax.block_until_ready(fwd(x, prepared))
    assert out.shape == (2, NUM_INPUT_FRAMES - 1, 1, 6), out.shape

    # Tight check against a precision-matched (bf16 operands / f32 accumulate) reference.
    ref = jax.block_until_ready(reference_forward(x, params, MXU_DTYPE))
    assert jnp.allclose(out, ref, rtol=1e-3, atol=1e-5), (
        f"max abs err vs matched ref {jnp.max(jnp.abs(out - ref))}")

    # Sanity check against the full-f32 reference (looser tol: bf16 MXU operands).
    ref32 = jax.block_until_ready(reference_forward(x, params, jnp.float32))
    assert jnp.allclose(out, ref32, rtol=5e-2, atol=5e-4), (
        f"max abs err vs f32 ref {jnp.max(jnp.abs(out - ref32))}")

    print("KERNEL_OK")
</pallas_src>

<mosaic_0001>
module attributes {stable_mosaic.version = 11 : i64} {
  func.func @_conv_tap_kernel(%arg0: i32, %arg1: i32, %arg2: i32, %arg3: memref<1x16x19x12xbf16, #tpu.memory_space<vmem>>, %arg4: memref<1x4x12x128xbf16, #tpu.memory_space<vmem>>, %arg5: memref<1x128xf32, #tpu.memory_space<vmem>>, %arg6: memref<1x16x16x128xf32, #tpu.memory_space<vmem>>) attributes {dimension_semantics = [#tpu.dimension_semantics<parallel>, #tpu.dimension_semantics<parallel>, #tpu.dimension_semantics<arbitrary>], iteration_bounds = array<i64: 2, 1, 7>, scalar_prefetch = 0 : i64, scratch_operands = 0 : i64, tpu.core_type = #tpu.core_type<tc>, window_params = [{transform_indices = @transform_0, window_bounds = array<i64: 1, 16, 19, 12>}, {transform_indices = @transform_1, window_bounds = array<i64: 1, 4, 12, 128>}, {pipeline_mode = #tpu.pipeline_mode<synchronous>, transform_indices = @transform_2, window_bounds = array<i64: 1, 128>}, {transform_indices = @transform_3, window_bounds = array<i64: 1, 16, 16, 128>}]} {
    %c0_i32 = arith.constant 0 : i32
    %0 = arith.cmpi eq, %arg2, %c0_i32 : i32
    %1 = arith.extui %0 : i1 to i32
    %c0_i32_0 = arith.constant 0 : i32
    %2 = arith.cmpi ne, %1, %c0_i32_0 : i32
    scf.if %2 {
      %cst = arith.constant 0.000000e+00 : f32
      %7 = vector.broadcast %cst : f32 to vector<1x16x16x128xf32>
      %c0 = arith.constant 0 : index
      %c0_4 = arith.constant 0 : index
      %c0_5 = arith.constant 0 : index
      %c0_6 = arith.constant 0 : index
      %8 = vector.load %arg6[%c0, %c0_4, %c0_5, %c0_6] : memref<1x16x16x128xf32, #tpu.memory_space<vmem>>, vector<1x16x16x128xf32>
      tpu.vector_store %arg6[%c0, %c0_4, %c0_5, %c0_6], %7 {strides = array<i32>} : memref<1x16x16x128xf32, #tpu.memory_space<vmem>>, vector<1x16x16x128xf32>,
    } else {
    }
    %c0_i32_1 = arith.constant 0 : i32
    %c16_i32 = arith.constant 16 : i32
    %3 = arith.addi %c0_i32_1, %c16_i32 : i32
    %c1_i32 = arith.constant 1 : i32
    scf.for %arg7 = %c0_i32_1 to %3 step %c1_i32  : i32 {
      %c0 = arith.constant 0 : index
      %7 = arith.index_cast %arg7 : i32 to index
      %c0_4 = arith.constant 0 : index
      %c0_5 = arith.constant 0 : index
      %8 = vector.load %arg3[%c0, %7, %c0_4, %c0_5] : memref<1x16x19x12xbf16, #tpu.memory_space<vmem>>, vector<1x1x19x12xbf16>
      %9 = vector.shape_cast %8 : vector<1x1x19x12xbf16> to vector<19x12xbf16>
      %cst = arith.constant 0.000000e+00 : f32
      %10 = vector.broadcast %cst : f32 to vector<16x128xf32>
      %11 = vector.extract_strided_slice %9 {offsets = [0, 0], sizes = [16, 12], strides = [1, 1]} : vector<19x12xbf16> to vector<16x12xbf16>
      %c0_6 = arith.constant 0 : index
      %c0_7 = arith.constant 0 : index
      %c0_8 = arith.constant 0 : index
      %c0_9 = arith.constant 0 : index
      %12 = vector.load %arg4[%c0_6, %c0_7, %c0_8, %c0_9] : memref<1x4x12x128xbf16, #tpu.memory_space<vmem>>, vector<1x1x12x128xbf16>
      %13 = vector.shape_cast %12 : vector<1x1x12x128xbf16> to vector<12x128xbf16>
      %cst_10 = arith.constant dense<0.000000e+00> : vector<16x128xf32>
      %14 = tpu.matmul %11, %13, %cst_10 {dimension_numbers = #tpu.dot_dimension_numbers<[1], [0], [0], [1], [0, 0, 1, 1], [], []>} : vector<16x12xbf16>, vector<12x128xbf16>, vector<16x128xf32> -> vector<16x128xf32>
      %15 = arith.addf %10, %14 : vector<16x128xf32>
      %16 = vector.extract_strided_slice %9 {offsets = [1, 0], sizes = [16, 12], strides = [1, 1]} : vector<19x12xbf16> to vector<16x12xbf16>
      %c0_11 = arith.constant 0 : index
      %c1 = arith.constant 1 : index
      %c0_12 = arith.constant 0 : index
      %c0_13 = arith.constant 0 : index
      %17 = vector.load %arg4[%c0_11, %c1, %c0_12, %c0_13] : memref<1x4x12x128xbf16, #tpu.memory_space<vmem>>, vector<1x1x12x128xbf16>
      %18 = vector.shape_cast %17 : vector<1x1x12x128xbf16> to vector<12x128xbf16>
      %cst_14 = arith.constant dense<0.000000e+00> : vector<16x128xf32>
      %19 = tpu.matmul %16, %18, %cst_14 {dimension_numbers = #tpu.dot_dimension_numbers<[1], [0], [0], [1], [0, 0, 1, 1], [], []>} : vector<16x12xbf16>, vector<12x128xbf16>, vector<16x128xf32> -> vector<16x128xf32>
      %20 = arith.addf %15, %19 : vector<16x128xf32>
      %21 = vector.extract_strided_slice %9 {offsets = [2, 0], sizes = [16, 12], strides = [1, 1]} : vector<19x12xbf16> to vector<16x12xbf16>
      %c0_15 = arith.constant 0 : index
      %c2 = arith.constant 2 : index
      %c0_16 = arith.constant 0 : index
      %c0_17 = arith.constant 0 : index
      %22 = vector.load %arg4[%c0_15, %c2, %c0_16, %c0_17] : memref<1x4x12x128xbf16, #tpu.memory_space<vmem>>, vector<1x1x12x128xbf16>
      %23 = vector.shape_cast %22 : vector<1x1x12x128xbf16> to vector<12x128xbf16>
      %cst_18 = arith.constant dense<0.000000e+00> : vector<16x128xf32>
      %24 = tpu.matmul %21, %23, %cst_18 {dimension_numbers = #tpu.dot_dimension_numbers<[1], [0], [0], [1], [0, 0, 1, 1], [], []>} : vector<16x12xbf16>, vector<12x128xbf16>, vector<16x128xf32> -> vector<16x128xf32>
      %25 = arith.addf %20, %24 : vector<16x128xf32>
      %26 = vector.extract_strided_slice %9 {offsets = [3, 0], sizes = [16, 12], strides = [1, 1]} : vector<19x12xbf16> to vector<16x12xbf16>
      %c0_19 = arith.constant 0 : index
      %c3 = arith.constant 3 : index
      %c0_20 = arith.constant 0 : index
      %c0_21 = arith.constant 0 : index
      %27 = vector.load %arg4[%c0_19, %c3, %c0_20, %c0_21] : memref<1x4x12x128xbf16, #tpu.memory_space<vmem>>, vector<1x1x12x128xbf16>
      %28 = vector.shape_cast %27 : vector<1x1x12x128xbf16> to vector<12x128xbf16>
      %cst_22 = arith.constant dense<0.000000e+00> : vector<16x128xf32>
      %29 = tpu.matmul %26, %28, %cst_22 {dimension_numbers = #tpu.dot_dimension_numbers<[1], [0], [0], [1], [0, 0, 1, 1], [], []>} : vector<16x12xbf16>, vector<12x128xbf16>, vector<16x128xf32> -> vector<16x128xf32>
      %30 = arith.addf %25, %29 : vector<16x128xf32>
      %c0_23 = arith.constant 0 : index
      %31 = arith.index_cast %arg7 : i32 to index
      %c0_24 = arith.constant 0 : index
      %c0_25 = arith.constant 0 : index
      %32 = vector.load %arg6[%c0_23, %31, %c0_24, %c0_25] : memref<1x16x16x128xf32, #tpu.memory_space<vmem>>, vector<1x1x16x128xf32>
      %33 = vector.shape_cast %32 : vector<1x1x16x128xf32> to vector<16x128xf32>
      %34 = arith.addf %33, %30 : vector<16x128xf32>
      %c0_26 = arith.constant 0 : index
      %35 = arith.index_cast %arg7 : i32 to index
      %c0_27 = arith.constant 0 : index
      %c0_28 = arith.constant 0 : index
      %36 = vector.load %arg6[%c0_26, %35, %c0_27, %c0_28] : memref<1x16x16x128xf32, #tpu.memory_space<vmem>>, vector<1x1x16x128xf32>
      %37 = vector.shape_cast %36 : vector<1x1x16x128xf32> to vector<16x128xf32>
      %38 = vector.shape_cast %34 : vector<16x128xf32> to vector<1x1x16x128xf32>
      tpu.vector_store %arg6[%c0_26, %35, %c0_27, %c0_28], %38 {strides = array<i32>} : memref<1x16x16x128xf32, #tpu.memory_space<vmem>>, vector<1x1x16x128xf32>,
    }
    %c16_i32_2 = arith.constant 16 : i32
    %c6_i32 = arith.constant 6 : i32
    %4 = arith.cmpi eq, %arg2, %c6_i32 : i32
    %5 = arith.extui %4 : i1 to i32
    %c0_i32_3 = arith.constant 0 : i32
    %6 = arith.cmpi ne, %5, %c0_i32_3 : i32
    scf.if %6 {
      %c0 = arith.constant 0 : index
      %c0_4 = arith.constant 0 : index
      %c0_5 = arith.constant 0 : index
      %c0_6 = arith.constant 0 : index
      %7 = vector.load %arg6[%c0, %c0_4, %c0_5, %c0_6] : memref<1x16x16x128xf32, #tpu.memory_space<vmem>>, vector<1x16x16x128xf32>
      %c0_7 = arith.constant 0 : index
      %c0_8 = arith.constant 0 : index
      %8 = vector.load %arg5[%c0_7, %c0_8] : memref<1x128xf32, #tpu.memory_space<vmem>>, vector<1x128xf32>
      %9 = vector.shape_cast %8 : vector<1x128xf32> to vector<1x1x1x128xf32>
      %10 = vector.broadcast %9 : vector<1x1x1x128xf32> to vector<1x16x16x128xf32>
      %11 = arith.addf %7, %10 : vector<1x16x16x128xf32>
      %cst = arith.constant 0.000000e+00 : f32
      %12 = vector.broadcast %cst : f32 to vector<1x16x16x128xf32>
      %13 = arith.maximumf %11, %12 : vector<1x16x16x128xf32>
      %c0_9 = arith.constant 0 : index
      %c0_10 = arith.constant 0 : index
      %c0_11 = arith.constant 0 : index
      %c0_12 = arith.constant 0 : index
      %14 = vector.load %arg6[%c0_9, %c0_10, %c0_11, %c0_12] : memref<1x16x16x128xf32, #tpu.memory_space<vmem>>, vector<1x16x16x128xf32>
      tpu.vector_store %arg6[%c0_9, %c0_10, %c0_11, %c0_12], %13 {strides = array<i32>} : memref<1x16x16x128xf32, #tpu.memory_space<vmem>>, vector<1x16x16x128xf32>,
    } else {
    }
    return
  }
  func.func @transform_0(%arg0: i32, %arg1: i32, %arg2: i32) -> (i32, i32, i32, i32) {
    %c2_i32 = arith.constant 2 : i32
    %0 = arith.muli %arg2, %c2_i32 : i32
    %1 = arith.addi %0, %arg0 : i32
    %c0_i32 = arith.constant 0 : i32
    %c0_i32_0 = arith.constant 0 : i32
    %c0_i32_1 = arith.constant 0 : i32
    return %1, %arg1, %c0_i32, %c0_i32_0 : i32, i32, i32, i32
  }
  func.func @transform_1(%arg0: i32, %arg1: i32, %arg2: i32) -> (i32, i32, i32, i32) {
    %c0_i32 = arith.constant 0 : i32
    %c0_i32_0 = arith.constant 0 : i32
    %c0_i32_1 = arith.constant 0 : i32
    %c0_i32_2 = arith.constant 0 : i32
    return %arg2, %c0_i32, %c0_i32_0, %c0_i32_1 : i32, i32, i32, i32
  }
  func.func @transform_2(%arg0: i32, %arg1: i32, %arg2: i32) -> (i32, i32) {
    %c0_i32 = arith.constant 0 : i32
    %c0_i32_0 = arith.constant 0 : i32
    %c0_i32_1 = arith.constant 0 : i32
    return %c0_i32, %c0_i32_0 : i32, i32
  }
  func.func @transform_3(%arg0: i32, %arg1: i32, %arg2: i32) -> (i32, i32, i32, i32) {
    %c0_i32 = arith.constant 0 : i32
    %c0_i32_0 = arith.constant 0 : i32
    %c0_i32_1 = arith.constant 0 : i32
    return %arg0, %arg1, %c0_i32, %c0_i32_0 : i32, i32, i32, i32
  }
}

module attributes {stable_mosaic.version = 11 : i64} {
  func.func @_conv_tap_kernel(%arg0: i32, %arg1: i32, %arg2: i32, %arg3: memref<1x8x10x256xbf16, #tpu.memory_space<vmem>>, %arg4: memref<1x3x256x128xbf16, #tpu.memory_space<vmem>>, %arg5: memref<1x128xf32, #tpu.memory_space<vmem>>, %arg6: memref<1x8x8x128xf32, #tpu.memory_space<vmem>>) attributes {dimension_semantics = [#tpu.dimension_semantics<parallel>, #tpu.dimension_semantics<parallel>, #tpu.dimension_semantics<arbitrary>], iteration_bounds = array<i64: 2, 1, 5>, scalar_prefetch = 0 : i64, scratch_operands = 0 : i64, tpu.core_type = #tpu.core_type<tc>, window_params = [{transform_indices = @transform_0, window_bounds = array<i64: 1, 8, 10, 256>}, {transform_indices = @transform_1, window_bounds = array<i64: 1, 3, 256, 128>}, {pipeline_mode = #tpu.pipeline_mode<synchronous>, transform_indices = @transform_2, window_bounds = array<i64: 1, 128>}, {transform_indices = @transform_3, window_bounds = array<i64: 1, 8, 8, 128>}]} {
    %c0_i32 = arith.constant 0 : i32
    %0 = arith.cmpi eq, %arg2, %c0_i32 : i32
    %1 = arith.extui %0 : i1 to i32
    %c0_i32_0 = arith.constant 0 : i32
    %2 = arith.cmpi ne, %1, %c0_i32_0 : i32
    scf.if %2 {
      %cst = arith.constant 0.000000e+00 : f32
      %7 = vector.broadcast %cst : f32 to vector<1x8x8x128xf32>
      %c0 = arith.constant 0 : index
      %c0_4 = arith.constant 0 : index
      %c0_5 = arith.constant 0 : index
      %c0_6 = arith.constant 0 : index
      %8 = vector.load %arg6[%c0, %c0_4, %c0_5, %c0_6] : memref<1x8x8x128xf32, #tpu.memory_space<vmem>>, vector<1x8x8x128xf32>
      tpu.vector_store %arg6[%c0, %c0_4, %c0_5, %c0_6], %7 {strides = array<i32>} : memref<1x8x8x128xf32, #tpu.memory_space<vmem>>, vector<1x8x8x128xf32>,
    } else {
    }
    %c0_i32_1 = arith.constant 0 : i32
    %c8_i32 = arith.constant 8 : i32
    %3 = arith.addi %c0_i32_1, %c8_i32 : i32
    %c1_i32 = arith.constant 1 : i32
    scf.for %arg7 = %c0_i32_1 to %3 step %c1_i32  : i32 {
      %c0 = arith.constant 0 : index
      %7 = arith.index_cast %arg7 : i32 to index
      %c0_4 = arith.constant 0 : index
      %c0_5 = arith.constant 0 : index
      %8 = vector.load %arg3[%c0, %7, %c0_4, %c0_5] : memref<1x8x10x256xbf16, #tpu.memory_space<vmem>>, vector<1x1x10x256xbf16>
      %9 = vector.shape_cast %8 : vector<1x1x10x256xbf16> to vector<10x256xbf16>
      %cst = arith.constant 0.000000e+00 : f32
      %10 = vector.broadcast %cst : f32 to vector<8x128xf32>
      %11 = vector.extract_strided_slice %9 {offsets = [0, 0], sizes = [8, 256], strides = [1, 1]} : vector<10x256xbf16> to vector<8x256xbf16>
      %c0_6 = arith.constant 0 : index
      %c0_7 = arith.constant 0 : index
      %c0_8 = arith.constant 0 : index
      %c0_9 = arith.constant 0 : index
      %12 = vector.load %arg4[%c0_6, %c0_7, %c0_8, %c0_9] : memref<1x3x256x128xbf16, #tpu.memory_space<vmem>>, vector<1x1x256x128xbf16>
      %13 = vector.shape_cast %12 : vector<1x1x256x128xbf16> to vector<256x128xbf16>
      %cst_10 = arith.constant dense<0.000000e+00> : vector<8x128xf32>
      %14 = tpu.matmul %11, %13, %cst_10 {dimension_numbers = #tpu.dot_dimension_numbers<[1], [0], [0], [1], [0, 0, 1, 1], [], []>} : vector<8x256xbf16>, vector<256x128xbf16>, vector<8x128xf32> -> vector<8x128xf32>
      %15 = arith.addf %10, %14 : vector<8x128xf32>
      %16 = vector.extract_strided_slice %9 {offsets = [1, 0], sizes = [8, 256], strides = [1, 1]} : vector<10x256xbf16> to vector<8x256xbf16>
      %c0_11 = arith.constant 0 : index
      %c1 = arith.constant 1 : index
      %c0_12 = arith.constant 0 : index
      %c0_13 = arith.constant 0 : index
      %17 = vector.load %arg4[%c0_11, %c1, %c0_12, %c0_13] : memref<1x3x256x128xbf16, #tpu.memory_space<vmem>>, vector<1x1x256x128xbf16>
      %18 = vector.shape_cast %17 : vector<1x1x256x128xbf16> to vector<256x128xbf16>
      %cst_14 = arith.constant dense<0.000000e+00> : vector<8x128xf32>
      %19 = tpu.matmul %16, %18, %cst_14 {dimension_numbers = #tpu.dot_dimension_numbers<[1], [0], [0], [1], [0, 0, 1, 1], [], []>} : vector<8x256xbf16>, vector<256x128xbf16>, vector<8x128xf32> -> vector<8x128xf32>
      %20 = arith.addf %15, %19 : vector<8x128xf32>
      %21 = vector.extract_strided_slice %9 {offsets = [2, 0], sizes = [8, 256], strides = [1, 1]} : vector<10x256xbf16> to vector<8x256xbf16>
      %c0_15 = arith.constant 0 : index
      %c2 = arith.constant 2 : index
      %c0_16 = arith.constant 0 : index
      %c0_17 = arith.constant 0 : index
      %22 = vector.load %arg4[%c0_15, %c2, %c0_16, %c0_17] : memref<1x3x256x128xbf16, #tpu.memory_space<vmem>>, vector<1x1x256x128xbf16>
      %23 = vector.shape_cast %22 : vector<1x1x256x128xbf16> to vector<256x128xbf16>
      %cst_18 = arith.constant dense<0.000000e+00> : vector<8x128xf32>
      %24 = tpu.matmul %21, %23, %cst_18 {dimension_numbers = #tpu.dot_dimension_numbers<[1], [0], [0], [1], [0, 0, 1, 1], [], []>} : vector<8x256xbf16>, vector<256x128xbf16>, vector<8x128xf32> -> vector<8x128xf32>
      %25 = arith.addf %20, %24 : vector<8x128xf32>
      %c0_19 = arith.constant 0 : index
      %26 = arith.index_cast %arg7 : i32 to index
      %c0_20 = arith.constant 0 : index
      %c0_21 = arith.constant 0 : index
      %27 = vector.load %arg6[%c0_19, %26, %c0_20, %c0_21] : memref<1x8x8x128xf32, #tpu.memory_space<vmem>>, vector<1x1x8x128xf32>
      %28 = vector.shape_cast %27 : vector<1x1x8x128xf32> to vector<8x128xf32>
      %29 = arith.addf %28, %25 : vector<8x128xf32>
      %c0_22 = arith.constant 0 : index
      %30 = arith.index_cast %arg7 : i32 to index
      %c0_23 = arith.constant 0 : index
      %c0_24 = arith.constant 0 : index
      %31 = vector.load %arg6[%c0_22, %30, %c0_23, %c0_24] : memref<1x8x8x128xf32, #tpu.memory_space<vmem>>, vector<1x1x8x128xf32>
      %32 = vector.shape_cast %31 : vector<1x1x8x128xf32> to vector<8x128xf32>
      %33 = vector.shape_cast %29 : vector<8x128xf32> to vector<1x1x8x128xf32>
      tpu.vector_store %arg6[%c0_22, %30, %c0_23, %c0_24], %33 {strides = array<i32>} : memref<1x8x8x128xf32, #tpu.memory_space<vmem>>, vector<1x1x8x128xf32>,
    }
    %c8_i32_2 = arith.constant 8 : i32
    %c4_i32 = arith.constant 4 : i32
    %4 = arith.cmpi eq, %arg2, %c4_i32 : i32
    %5 = arith.extui %4 : i1 to i32
    %c0_i32_3 = arith.constant 0 : i32
    %6 = arith.cmpi ne, %5, %c0_i32_3 : i32
    scf.if %6 {
      %c0 = arith.constant 0 : index
      %c0_4 = arith.constant 0 : index
      %c0_5 = arith.constant 0 : index
      %c0_6 = arith.constant 0 : index
      %7 = vector.load %arg6[%c0, %c0_4, %c0_5, %c0_6] : memref<1x8x8x128xf32, #tpu.memory_space<vmem>>, vector<1x8x8x128xf32>
      %c0_7 = arith.constant 0 : index
      %c0_8 = arith.constant 0 : index
      %8 = vector.load %arg5[%c0_7, %c0_8] : memref<1x128xf32, #tpu.memory_space<vmem>>, vector<1x128xf32>
      %9 = vector.shape_cast %8 : vector<1x128xf32> to vector<1x1x1x128xf32>
      %10 = vector.broadcast %9 : vector<1x1x1x128xf32> to vector<1x8x8x128xf32>
      %11 = arith.addf %7, %10 : vector<1x8x8x128xf32>
      %cst = arith.constant 0.000000e+00 : f32
      %12 = vector.broadcast %cst : f32 to vector<1x8x8x128xf32>
      %13 = arith.maximumf %11, %12 : vector<1x8x8x128xf32>
      %c0_9 = arith.constant 0 : index
      %c0_10 = arith.constant 0 : index
      %c0_11 = arith.constant 0 : index
      %c0_12 = arith.constant 0 : index
      %14 = vector.load %arg6[%c0_9, %c0_10, %c0_11, %c0_12] : memref<1x8x8x128xf32, #tpu.memory_space<vmem>>, vector<1x8x8x128xf32>
      tpu.vector_store %arg6[%c0_9, %c0_10, %c0_11, %c0_12], %13 {strides = array<i32>} : memref<1x8x8x128xf32, #tpu.memory_space<vmem>>, vector<1x8x8x128xf32>,
    } else {
    }
    return
  }
  func.func @transform_0(%arg0: i32, %arg1: i32, %arg2: i32) -> (i32, i32, i32, i32) {
    %c2_i32 = arith.constant 2 : i32
    %0 = arith.muli %arg2, %c2_i32 : i32
    %1 = arith.addi %0, %arg0 : i32
    %c0_i32 = arith.constant 0 : i32
    %c0_i32_0 = arith.constant 0 : i32
    %c0_i32_1 = arith.constant 0 : i32
    return %1, %arg1, %c0_i32, %c0_i32_0 : i32, i32, i32, i32
  }
  func.func @transform_1(%arg0: i32, %arg1: i32, %arg2: i32) -> (i32, i32, i32, i32) {
    %c0_i32 = arith.constant 0 : i32
    %c0_i32_0 = arith.constant 0 : i32
    %c0_i32_1 = arith.constant 0 : i32
    %c0_i32_2 = arith.constant 0 : i32
    return %arg2, %c0_i32, %c0_i32_0, %c0_i32_1 : i32, i32, i32, i32
  }
  func.func @transform_2(%arg0: i32, %arg1: i32, %arg2: i32) -> (i32, i32) {
    %c0_i32 = arith.constant 0 : i32
    %c0_i32_0 = arith.constant 0 : i32
    %c0_i32_1 = arith.constant 0 : i32
    return %c0_i32, %c0_i32_0 : i32, i32
  }
  func.func @transform_3(%arg0: i32, %arg1: i32, %arg2: i32) -> (i32, i32, i32, i32) {
    %c0_i32 = arith.constant 0 : i32
    %c0_i32_0 = arith.constant 0 : i32
    %c0_i32_1 = arith.constant 0 : i32
    return %arg0, %arg1, %c0_i32, %c0_i32_0 : i32, i32, i32, i32
  }
}

module attributes {stable_mosaic.version = 11 : i64} {
  func.func @_conv_tap_kernel(%arg0: i32, %arg1: i32, %arg2: i32, %arg3: memref<1x4x5x256xbf16, #tpu.memory_space<vmem>>, %arg4: memref<1x2x256x128xbf16, #tpu.memory_space<vmem>>, %arg5: memref<1x128xf32, #tpu.memory_space<vmem>>, %arg6: memref<1x4x4x128xf32, #tpu.memory_space<vmem>>) attributes {dimension_semantics = [#tpu.dimension_semantics<parallel>, #tpu.dimension_semantics<parallel>, #tpu.dimension_semantics<arbitrary>], iteration_bounds = array<i64: 2, 1, 3>, scalar_prefetch = 0 : i64, scratch_operands = 0 : i64, tpu.core_type = #tpu.core_type<tc>, window_params = [{transform_indices = @transform_0, window_bounds = array<i64: 1, 4, 5, 256>}, {transform_indices = @transform_1, window_bounds = array<i64: 1, 2, 256, 128>}, {pipeline_mode = #tpu.pipeline_mode<synchronous>, transform_indices = @transform_2, window_bounds = array<i64: 1, 128>}, {transform_indices = @transform_3, window_bounds = array<i64: 1, 4, 4, 128>}]} {
    %c0_i32 = arith.constant 0 : i32
    %0 = arith.cmpi eq, %arg2, %c0_i32 : i32
    %1 = arith.extui %0 : i1 to i32
    %c0_i32_0 = arith.constant 0 : i32
    %2 = arith.cmpi ne, %1, %c0_i32_0 : i32
    scf.if %2 {
      %cst = arith.constant 0.000000e+00 : f32
      %7 = vector.broadcast %cst : f32 to vector<1x4x4x128xf32>
      %c0 = arith.constant 0 : index
      %c0_4 = arith.constant 0 : index
      %c0_5 = arith.constant 0 : index
      %c0_6 = arith.constant 0 : index
      %8 = vector.load %arg6[%c0, %c0_4, %c0_5, %c0_6] : memref<1x4x4x128xf32, #tpu.memory_space<vmem>>, vector<1x4x4x128xf32>
      tpu.vector_store %arg6[%c0, %c0_4, %c0_5, %c0_6], %7 {strides = array<i32>} : memref<1x4x4x128xf32, #tpu.memory_space<vmem>>, vector<1x4x4x128xf32>,
    } else {
    }
    %c0_i32_1 = arith.constant 0 : i32
    %c4_i32 = arith.constant 4 : i32
    %3 = arith.addi %c0_i32_1, %c4_i32 : i32
    %c1_i32 = arith.constant 1 : i32
    scf.for %arg7 = %c0_i32_1 to %3 step %c1_i32  : i32 {
      %c0 = arith.constant 0 : index
      %7 = arith.index_cast %arg7 : i32 to index
      %c0_4 = arith.constant 0 : index
      %c0_5 = arith.constant 0 : index
      %8 = vector.load %arg3[%c0, %7, %c0_4, %c0_5] : memref<1x4x5x256xbf16, #tpu.memory_space<vmem>>, vector<1x1x5x256xbf16>
      %9 = vector.shape_cast %8 : vector<1x1x5x256xbf16> to vector<5x256xbf16>
      %cst = arith.constant 0.000000e+00 : f32
      %10 = vector.broadcast %cst : f32 to vector<4x128xf32>
      %11 = vector.extract_strided_slice %9 {offsets = [0, 0], sizes = [4, 256], strides = [1, 1]} : vector<5x256xbf16> to vector<4x256xbf16>
      %c0_6 = arith.constant 0 : index
      %c0_7 = arith.constant 0 : index
      %c0_8 = arith.constant 0 : index
      %c0_9 = arith.constant 0 : index
      %12 = vector.load %arg4[%c0_6, %c0_7, %c0_8, %c0_9] : memref<1x2x256x128xbf16, #tpu.memory_space<vmem>>, vector<1x1x256x128xbf16>
      %13 = vector.shape_cast %12 : vector<1x1x256x128xbf16> to vector<256x128xbf16>
      %cst_10 = arith.constant dense<0.000000e+00> : vector<4x128xf32>
      %14 = tpu.matmul %11, %13, %cst_10 {dimension_numbers = #tpu.dot_dimension_numbers<[1], [0], [0], [1], [0, 0, 1, 1], [], []>} : vector<4x256xbf16>, vector<256x128xbf16>, vector<4x128xf32> -> vector<4x128xf32>
      %15 = arith.addf %10, %14 : vector<4x128xf32>
      %16 = vector.extract_strided_slice %9 {offsets = [1, 0], sizes = [4, 256], strides = [1, 1]} : vector<5x256xbf16> to vector<4x256xbf16>
      %c0_11 = arith.constant 0 : index
      %c1 = arith.constant 1 : index
      %c0_12 = arith.constant 0 : index
      %c0_13 = arith.constant 0 : index
      %17 = vector.load %arg4[%c0_11, %c1, %c0_12, %c0_13] : memref<1x2x256x128xbf16, #tpu.memory_space<vmem>>, vector<1x1x256x128xbf16>
      %18 = vector.shape_cast %17 : vector<1x1x256x128xbf16> to vector<256x128xbf16>
      %cst_14 = arith.constant dense<0.000000e+00> : vector<4x128xf32>
      %19 = tpu.matmul %16, %18, %cst_14 {dimension_numbers = #tpu.dot_dimension_numbers<[1], [0], [0], [1], [0, 0, 1, 1], [], []>} : vector<4x256xbf16>, vector<256x128xbf16>, vector<4x128xf32> -> vector<4x128xf32>
      %20 = arith.addf %15, %19 : vector<4x128xf32>
      %c0_15 = arith.constant 0 : index
      %21 = arith.index_cast %arg7 : i32 to index
      %c0_16 = arith.constant 0 : index
      %c0_17 = arith.constant 0 : index
      %22 = vector.load %arg6[%c0_15, %21, %c0_16, %c0_17] : memref<1x4x4x128xf32, #tpu.memory_space<vmem>>, vector<1x1x4x128xf32>
      %23 = vector.shape_cast %22 : vector<1x1x4x128xf32> to vector<4x128xf32>
      %24 = arith.addf %23, %20 : vector<4x128xf32>
      %c0_18 = arith.constant 0 : index
      %25 = arith.index_cast %arg7 : i32 to index
      %c0_19 = arith.constant 0 : index
      %c0_20 = arith.constant 0 : index
      %26 = vector.load %arg6[%c0_18, %25, %c0_19, %c0_20] : memref<1x4x4x128xf32, #tpu.memory_space<vmem>>, vector<1x1x4x128xf32>
      %27 = vector.shape_cast %26 : vector<1x1x4x128xf32> to vector<4x128xf32>
      %28 = vector.shape_cast %24 : vector<4x128xf32> to vector<1x1x4x128xf32>
      tpu.vector_store %arg6[%c0_18, %25, %c0_19, %c0_20], %28 {strides = array<i32>} : memref<1x4x4x128xf32, #tpu.memory_space<vmem>>, vector<1x1x4x128xf32>,
    }
    %c4_i32_2 = arith.constant 4 : i32
    %c2_i32 = arith.constant 2 : i32
    %4 = arith.cmpi eq, %arg2, %c2_i32 : i32
    %5 = arith.extui %4 : i1 to i32
    %c0_i32_3 = arith.constant 0 : i32
    %6 = arith.cmpi ne, %5, %c0_i32_3 : i32
    scf.if %6 {
      %c0 = arith.constant 0 : index
      %c0_4 = arith.constant 0 : index
      %c0_5 = arith.constant 0 : index
      %c0_6 = arith.constant 0 : index
      %7 = vector.load %arg6[%c0, %c0_4, %c0_5, %c0_6] : memref<1x4x4x128xf32, #tpu.memory_space<vmem>>, vector<1x4x4x128xf32>
      %c0_7 = arith.constant 0 : index
      %c0_8 = arith.constant 0 : index
      %8 = vector.load %arg5[%c0_7, %c0_8] : memref<1x128xf32, #tpu.memory_space<vmem>>, vector<1x128xf32>
      %9 = vector.shape_cast %8 : vector<1x128xf32> to vector<1x1x1x128xf32>
      %10 = vector.broadcast %9 : vector<1x1x1x128xf32> to vector<1x4x4x128xf32>
      %11 = arith.addf %7, %10 : vector<1x4x4x128xf32>
      %cst = arith.constant 0.000000e+00 : f32
      %12 = vector.broadcast %cst : f32 to vector<1x4x4x128xf32>
      %13 = arith.maximumf %11, %12 : vector<1x4x4x128xf32>
      %c0_9 = arith.constant 0 : index
      %c0_10 = arith.constant 0 : index
      %c0_11 = arith.constant 0 : index
      %c0_12 = arith.constant 0 : index
      %14 = vector.load %arg6[%c0_9, %c0_10, %c0_11, %c0_12] : memref<1x4x4x128xf32, #tpu.memory_space<vmem>>, vector<1x4x4x128xf32>
      tpu.vector_store %arg6[%c0_9, %c0_10, %c0_11, %c0_12], %13 {strides = array<i32>} : memref<1x4x4x128xf32, #tpu.memory_space<vmem>>, vector<1x4x4x128xf32>,
    } else {
    }
    return
  }
  func.func @transform_0(%arg0: i32, %arg1: i32, %arg2: i32) -> (i32, i32, i32, i32) {
    %c2_i32 = arith.constant 2 : i32
    %0 = arith.muli %arg2, %c2_i32 : i32
    %1 = arith.addi %0, %arg0 : i32
    %c0_i32 = arith.constant 0 : i32
    %c0_i32_0 = arith.constant 0 : i32
    %c0_i32_1 = arith.constant 0 : i32
    return %1, %arg1, %c0_i32, %c0_i32_0 : i32, i32, i32, i32
  }
  func.func @transform_1(%arg0: i32, %arg1: i32, %arg2: i32) -> (i32, i32, i32, i32) {
    %c0_i32 = arith.constant 0 : i32
    %c0_i32_0 = arith.constant 0 : i32
    %c0_i32_1 = arith.constant 0 : i32
    %c0_i32_2 = arith.constant 0 : i32
    return %arg2, %c0_i32, %c0_i32_0, %c0_i32_1 : i32, i32, i32, i32
  }
  func.func @transform_2(%arg0: i32, %arg1: i32, %arg2: i32) -> (i32, i32) {
    %c0_i32 = arith.constant 0 : i32
    %c0_i32_0 = arith.constant 0 : i32
    %c0_i32_1 = arith.constant 0 : i32
    return %c0_i32, %c0_i32_0 : i32, i32
  }
  func.func @transform_3(%arg0: i32, %arg1: i32, %arg2: i32) -> (i32, i32, i32, i32) {
    %c0_i32 = arith.constant 0 : i32
    %c0_i32_0 = arith.constant 0 : i32
    %c0_i32_1 = arith.constant 0 : i32
    return %arg0, %arg1, %c0_i32, %c0_i32_0 : i32, i32, i32, i32
  }
}

module attributes {stable_mosaic.version = 11 : i64} {
  func.func @_conv_tap_kernel(%arg0: i32, %arg1: i32, %arg2: i32, %arg3: memref<1x1x2x256xbf16, #tpu.memory_space<vmem>>, %arg4: memref<1x2x256x256xbf16, #tpu.memory_space<vmem>>, %arg5: memref<1x256xf32, #tpu.memory_space<vmem>>, %arg6: memref<1x1x1x256xf32, #tpu.memory_space<vmem>>) attributes {dimension_semantics = [#tpu.dimension_semantics<parallel>, #tpu.dimension_semantics<parallel>, #tpu.dimension_semantics<arbitrary>], iteration_bounds = array<i64: 2, 1, 3>, scalar_prefetch = 0 : i64, scratch_operands = 0 : i64, tpu.core_type = #tpu.core_type<tc>, window_params = [{transform_indices = @transform_0, window_bounds = array<i64: 1, 1, 2, 256>}, {transform_indices = @transform_1, window_bounds = array<i64: 1, 2, 256, 256>}, {pipeline_mode = #tpu.pipeline_mode<synchronous>, transform_indices = @transform_2, window_bounds = array<i64: 1, 256>}, {transform_indices = @transform_3, window_bounds = array<i64: 1, 1, 1, 256>}]} {
    %c0_i32 = arith.constant 0 : i32
    %0 = arith.cmpi eq, %arg2, %c0_i32 : i32
    %1 = arith.extui %0 : i1 to i32
    %c0_i32_0 = arith.constant 0 : i32
    %2 = arith.cmpi ne, %1, %c0_i32_0 : i32
    scf.if %2 {
      %cst_20 = arith.constant 0.000000e+00 : f32
      %28 = vector.broadcast %cst_20 : f32 to vector<1x1x1x256xf32>
      %c0_21 = arith.constant 0 : index
      %c0_22 = arith.constant 0 : index
      %c0_23 = arith.constant 0 : index
      %c0_24 = arith.constant 0 : index
      %29 = vector.load %arg6[%c0_21, %c0_22, %c0_23, %c0_24] : memref<1x1x1x256xf32, #tpu.memory_space<vmem>>, vector<1x1x1x256xf32>
      tpu.vector_store %arg6[%c0_21, %c0_22, %c0_23, %c0_24], %28 {strides = array<i32>} : memref<1x1x1x256xf32, #tpu.memory_space<vmem>>, vector<1x1x1x256xf32>,
    } else {
    }
    %c0_i32_1 = arith.constant 0 : i32
    %c0 = arith.constant 0 : index
    %3 = arith.index_cast %c0_i32_1 : i32 to index
    %c0_2 = arith.constant 0 : index
    %c0_3 = arith.constant 0 : index
    %4 = vector.load %arg3[%c0, %3, %c0_2, %c0_3] : memref<1x1x2x256xbf16, #tpu.memory_space<vmem>>, vector<1x1x2x256xbf16>
    %5 = vector.shape_cast %4 : vector<1x1x2x256xbf16> to vector<2x256xbf16>
    %cst = arith.constant 0.000000e+00 : f32
    %6 = vector.broadcast %cst : f32 to vector<1x256xf32>
    %7 = vector.extract_strided_slice %5 {offsets = [0, 0], sizes = [1, 256], strides = [1, 1]} : vector<2x256xbf16> to vector<1x256xbf16>
    %c0_4 = arith.constant 0 : index
    %c0_5 = arith.constant 0 : index
    %c0_6 = arith.constant 0 : index
    %c0_7 = arith.constant 0 : index
    %8 = vector.load %arg4[%c0_4, %c0_5, %c0_6, %c0_7] : memref<1x2x256x256xbf16, #tpu.memory_space<vmem>>, vector<1x1x256x256xbf16>
    %9 = vector.shape_cast %8 : vector<1x1x256x256xbf16> to vector<256x256xbf16>
    %cst_8 = arith.constant dense<0.000000e+00> : vector<1x256xf32>
    %10 = tpu.matmul %7, %9, %cst_8 {dimension_numbers = #tpu.dot_dimension_numbers<[1], [0], [0], [1], [0, 0, 1, 1], [], []>} : vector<1x256xbf16>, vector<256x256xbf16>, vector<1x256xf32> -> vector<1x256xf32>
    %11 = arith.addf %6, %10 : vector<1x256xf32>
    %12 = vector.extract_strided_slice %5 {offsets = [1, 0], sizes = [1, 256], strides = [1, 1]} : vector<2x256xbf16> to vector<1x256xbf16>
    %c0_9 = arith.constant 0 : index
    %c1 = arith.constant 1 : index
    %c0_10 = arith.constant 0 : index
    %c0_11 = arith.constant 0 : index
    %13 = vector.load %arg4[%c0_9, %c1, %c0_10, %c0_11] : memref<1x2x256x256xbf16, #tpu.memory_space<vmem>>, vector<1x1x256x256xbf16>
    %14 = vector.shape_cast %13 : vector<1x1x256x256xbf16> to vector<256x256xbf16>
    %cst_12 = arith.constant dense<0.000000e+00> : vector<1x256xf32>
    %15 = tpu.matmul %12, %14, %cst_12 {dimension_numbers = #tpu.dot_dimension_numbers<[1], [0], [0], [1], [0, 0, 1, 1], [], []>} : vector<1x256xbf16>, vector<256x256xbf16>, vector<1x256xf32> -> vector<1x256xf32>
    %16 = arith.addf %11, %15 : vector<1x256xf32>
    %c0_13 = arith.constant 0 : index
    %17 = arith.index_cast %c0_i32_1 : i32 to index
    %c0_14 = arith.constant 0 : index
    %c0_15 = arith.constant 0 : index
    %18 = vector.load %arg6[%c0_13, %17, %c0_14, %c0_15] : memref<1x1x1x256xf32, #tpu.memory_space<vmem>>, vector<1x1x1x256xf32>
    %19 = vector.shape_cast %18 : vector<1x1x1x256xf32> to vector<1x256xf32>
    %20 = arith.addf %19, %16 : vector<1x256xf32>
    %c0_16 = arith.constant 0 : index
    %21 = arith.index_cast %c0_i32_1 : i32 to index
    %c0_17 = arith.constant 0 : index
    %c0_18 = arith.constant 0 : index
    %22 = vector.load %arg6[%c0_16, %21, %c0_17, %c0_18] : memref<1x1x1x256xf32, #tpu.memory_space<vmem>>, vector<1x1x1x256xf32>
    %23 = vector.shape_cast %22 : vector<1x1x1x256xf32> to vector<1x256xf32>
    %24 = vector.shape_cast %20 : vector<1x256xf32> to vector<1x1x1x256xf32>
    tpu.vector_store %arg6[%c0_16, %21, %c0_17, %c0_18], %24 {strides = array<i32>} : memref<1x1x1x256xf32, #tpu.memory_space<vmem>>, vector<1x1x1x256xf32>,
    %c1_i32 = arith.constant 1 : i32
    %c2_i32 = arith.constant 2 : i32
    %25 = arith.cmpi eq, %arg2, %c2_i32 : i32
    %26 = arith.extui %25 : i1 to i32
    %c0_i32_19 = arith.constant 0 : i32
    %27 = arith.cmpi ne, %26, %c0_i32_19 : i32
    scf.if %27 {
      %c0_20 = arith.constant 0 : index
      %c0_21 = arith.constant 0 : index
      %c0_22 = arith.constant 0 : index
      %c0_23 = arith.constant 0 : index
      %28 = vector.load %arg6[%c0_20, %c0_21, %c0_22, %c0_23] : memref<1x1x1x256xf32, #tpu.memory_space<vmem>>, vector<1x1x1x256xf32>
      %c0_24 = arith.constant 0 : index
      %c0_25 = arith.constant 0 : index
      %29 = vector.load %arg5[%c0_24, %c0_25] : memref<1x256xf32, #tpu.memory_space<vmem>>, vector<1x256xf32>
      %30 = vector.shape_cast %29 : vector<1x256xf32> to vector<1x1x1x256xf32>
      %31 = arith.addf %28, %30 : vector<1x1x1x256xf32>
      %cst_26 = arith.constant 0.000000e+00 : f32
      %32 = vector.broadcast %cst_26 : f32 to vector<1x1x1x256xf32>
      %33 = arith.maximumf %31, %32 : vector<1x1x1x256xf32>
      %c0_27 = arith.constant 0 : index
      %c0_28 = arith.constant 0 : index
      %c0_29 = arith.constant 0 : index
      %c0_30 = arith.constant 0 : index
      %34 = vector.load %arg6[%c0_27, %c0_28, %c0_29, %c0_30] : memref<1x1x1x256xf32, #tpu.memory_space<vmem>>, vector<1x1x1x256xf32>
      tpu.vector_store %arg6[%c0_27, %c0_28, %c0_29, %c0_30], %33 {strides = array<i32>} : memref<1x1x1x256xf32, #tpu.memory_space<vmem>>, vector<1x1x1x256xf32>,
    } else {
    }
    return
  }
  func.func @transform_0(%arg0: i32, %arg1: i32, %arg2: i32) -> (i32, i32, i32, i32) {
    %c2_i32 = arith.constant 2 : i32
    %0 = arith.muli %arg2, %c2_i32 : i32
    %1 = arith.addi %0, %arg0 : i32
    %c0_i32 = arith.constant 0 : i32
    %c0_i32_0 = arith.constant 0 : i32
    %c0_i32_1 = arith.constant 0 : i32
    return %1, %arg1, %c0_i32, %c0_i32_0 : i32, i32, i32, i32
  }
  func.func @transform_1(%arg0: i32, %arg1: i32, %arg2: i32) -> (i32, i32, i32, i32) {
    %c0_i32 = arith.constant 0 : i32
    %c0_i32_0 = arith.constant 0 : i32
    %c0_i32_1 = arith.constant 0 : i32
    %c0_i32_2 = arith.constant 0 : i32
    return %arg2, %c0_i32, %c0_i32_0, %c0_i32_1 : i32, i32, i32, i32
  }
  func.func @transform_2(%arg0: i32, %arg1: i32, %arg2: i32) -> (i32, i32) {
    %c0_i32 = arith.constant 0 : i32
    %c0_i32_0 = arith.constant 0 : i32
    %c0_i32_1 = arith.constant 0 : i32
    return %c0_i32, %c0_i32_0 : i32, i32
  }
  func.func @transform_3(%arg0: i32, %arg1: i32, %arg2: i32) -> (i32, i32, i32, i32) {
    %c0_i32 = arith.constant 0 : i32
    %c0_i32_0 = arith.constant 0 : i32
    %c0_i32_1 = arith.constant 0 : i32
    return %arg0, %arg1, %c0_i32, %c0_i32_0 : i32, i32, i32, i32
  }
}

module attributes {stable_mosaic.version = 11 : i64} {
  func.func @_conv_tap_kernel(%arg0: i32, %arg1: i32, %arg2: i32, %arg3: memref<1x2x3x256xbf16, #tpu.memory_space<vmem>>, %arg4: memref<1x2x256x128xbf16, #tpu.memory_space<vmem>>, %arg5: memref<1x128xf32, #tpu.memory_space<vmem>>, %arg6: memref<1x2x2x128xf32, #tpu.memory_space<vmem>>) attributes {dimension_semantics = [#tpu.dimension_semantics<parallel>, #tpu.dimension_semantics<parallel>, #tpu.dimension_semantics<arbitrary>], iteration_bounds = array<i64: 2, 1, 3>, scalar_prefetch = 0 : i64, scratch_operands = 0 : i64, tpu.core_type = #tpu.core_type<tc>, window_params = [{transform_indices = @transform_0, window_bounds = array<i64: 1, 2, 3, 256>}, {transform_indices = @transform_1, window_bounds = array<i64: 1, 2, 256, 128>}, {pipeline_mode = #tpu.pipeline_mode<synchronous>, transform_indices = @transform_2, window_bounds = array<i64: 1, 128>}, {transform_indices = @transform_3, window_bounds = array<i64: 1, 2, 2, 128>}]} {
    %c0_i32 = arith.constant 0 : i32
    %0 = arith.cmpi eq, %arg2, %c0_i32 : i32
    %1 = arith.extui %0 : i1 to i32
    %c0_i32_0 = arith.constant 0 : i32
    %2 = arith.cmpi ne, %1, %c0_i32_0 : i32
    scf.if %2 {
      %cst = arith.constant 0.000000e+00 : f32
      %7 = vector.broadcast %cst : f32 to vector<1x2x2x128xf32>
      %c0 = arith.constant 0 : index
      %c0_5 = arith.constant 0 : index
      %c0_6 = arith.constant 0 : index
      %c0_7 = arith.constant 0 : index
      %8 = vector.load %arg6[%c0, %c0_5, %c0_6, %c0_7] : memref<1x2x2x128xf32, #tpu.memory_space<vmem>>, vector<1x2x2x128xf32>
      tpu.vector_store %arg6[%c0, %c0_5, %c0_6, %c0_7], %7 {strides = array<i32>} : memref<1x2x2x128xf32, #tpu.memory_space<vmem>>, vector<1x2x2x128xf32>,
    } else {
    }
    %c0_i32_1 = arith.constant 0 : i32
    %c2_i32 = arith.constant 2 : i32
    %3 = arith.addi %c0_i32_1, %c2_i32 : i32
    %c1_i32 = arith.constant 1 : i32
    scf.for %arg7 = %c0_i32_1 to %3 step %c1_i32  : i32 {
      %c0 = arith.constant 0 : index
      %7 = arith.index_cast %arg7 : i32 to index
      %c0_5 = arith.constant 0 : index
      %c0_6 = arith.constant 0 : index
      %8 = vector.load %arg3[%c0, %7, %c0_5, %c0_6] : memref<1x2x3x256xbf16, #tpu.memory_space<vmem>>, vector<1x1x3x256xbf16>
      %9 = vector.shape_cast %8 : vector<1x1x3x256xbf16> to vector<3x256xbf16>
      %cst = arith.constant 0.000000e+00 : f32
      %10 = vector.broadcast %cst : f32 to vector<2x128xf32>
      %11 = vector.extract_strided_slice %9 {offsets = [0, 0], sizes = [2, 256], strides = [1, 1]} : vector<3x256xbf16> to vector<2x256xbf16>
      %c0_7 = arith.constant 0 : index
      %c0_8 = arith.constant 0 : index
      %c0_9 = arith.constant 0 : index
      %c0_10 = arith.constant 0 : index
      %12 = vector.load %arg4[%c0_7, %c0_8, %c0_9, %c0_10] : memref<1x2x256x128xbf16, #tpu.memory_space<vmem>>, vector<1x1x256x128xbf16>
      %13 = vector.shape_cast %12 : vector<1x1x256x128xbf16> to vector<256x128xbf16>
      %cst_11 = arith.constant dense<0.000000e+00> : vector<2x128xf32>
      %14 = tpu.matmul %11, %13, %cst_11 {dimension_numbers = #tpu.dot_dimension_numbers<[1], [0], [0], [1], [0, 0, 1, 1], [], []>} : vector<2x256xbf16>, vector<256x128xbf16>, vector<2x128xf32> -> vector<2x128xf32>
      %15 = arith.addf %10, %14 : vector<2x128xf32>
      %16 = vector.extract_strided_slice %9 {offsets = [1, 0], sizes = [2, 256], strides = [1, 1]} : vector<3x256xbf16> to vector<2x256xbf16>
      %c0_12 = arith.constant 0 : index
      %c1 = arith.constant 1 : index
      %c0_13 = arith.constant 0 : index
      %c0_14 = arith.constant 0 : index
      %17 = vector.load %arg4[%c0_12, %c1, %c0_13, %c0_14] : memref<1x2x256x128xbf16, #tpu.memory_space<vmem>>, vector<1x1x256x128xbf16>
      %18 = vector.shape_cast %17 : vector<1x1x256x128xbf16> to vector<256x128xbf16>
      %cst_15 = arith.constant dense<0.000000e+00> : vector<2x128xf32>
      %19 = tpu.matmul %16, %18, %cst_15 {dimension_numbers = #tpu.dot_dimension_numbers<[1], [0], [0], [1], [0, 0, 1, 1], [], []>} : vector<2x256xbf16>, vector<256x128xbf16>, vector<2x128xf32> -> vector<2x128xf32>
      %20 = arith.addf %15, %19 : vector<2x128xf32>
      %c0_16 = arith.constant 0 : index
      %21 = arith.index_cast %arg7 : i32 to index
      %c0_17 = arith.constant 0 : index
      %c0_18 = arith.constant 0 : index
      %22 = vector.load %arg6[%c0_16, %21, %c0_17, %c0_18] : memref<1x2x2x128xf32, #tpu.memory_space<vmem>>, vector<1x1x2x128xf32>
      %23 = vector.shape_cast %22 : vector<1x1x2x128xf32> to vector<2x128xf32>
      %24 = arith.addf %23, %20 : vector<2x128xf32>
      %c0_19 = arith.constant 0 : index
      %25 = arith.index_cast %arg7 : i32 to index
      %c0_20 = arith.constant 0 : index
      %c0_21 = arith.constant 0 : index
      %26 = vector.load %arg6[%c0_19, %25, %c0_20, %c0_21] : memref<1x2x2x128xf32, #tpu.memory_space<vmem>>, vector<1x1x2x128xf32>
      %27 = vector.shape_cast %26 : vector<1x1x2x128xf32> to vector<2x128xf32>
      %28 = vector.shape_cast %24 : vector<2x128xf32> to vector<1x1x2x128xf32>
      tpu.vector_store %arg6[%c0_19, %25, %c0_20, %c0_21], %28 {strides = array<i32>} : memref<1x2x2x128xf32, #tpu.memory_space<vmem>>, vector<1x1x2x128xf32>,
    }
    %c2_i32_2 = arith.constant 2 : i32
    %c2_i32_3 = arith.constant 2 : i32
    %4 = arith.cmpi eq, %arg2, %c2_i32_3 : i32
    %5 = arith.extui %4 : i1 to i32
    %c0_i32_4 = arith.constant 0 : i32
    %6 = arith.cmpi ne, %5, %c0_i32_4 : i32
    scf.if %6 {
      %c0 = arith.constant 0 : index
      %c0_5 = arith.constant 0 : index
      %c0_6 = arith.constant 0 : index
      %c0_7 = arith.constant 0 : index
      %7 = vector.load %arg6[%c0, %c0_5, %c0_6, %c0_7] : memref<1x2x2x128xf32, #tpu.memory_space<vmem>>, vector<1x2x2x128xf32>
      %c0_8 = arith.constant 0 : index
      %c0_9 = arith.constant 0 : index
      %8 = vector.load %arg5[%c0_8, %c0_9] : memref<1x128xf32, #tpu.memory_space<vmem>>, vector<1x128xf32>
      %9 = vector.shape_cast %8 : vector<1x128xf32> to vector<1x1x1x128xf32>
      %10 = vector.broadcast %9 : vector<1x1x1x128xf32> to vector<1x2x2x128xf32>
      %11 = arith.addf %7, %10 : vector<1x2x2x128xf32>
      %cst = arith.constant 0.000000e+00 : f32
      %12 = vector.broadcast %cst : f32 to vector<1x2x2x128xf32>
      %13 = arith.maximumf %11, %12 : vector<1x2x2x128xf32>
      %c0_10 = arith.constant 0 : index
      %c0_11 = arith.constant 0 : index
      %c0_12 = arith.constant 0 : index
      %c0_13 = arith.constant 0 : index
      %14 = vector.load %arg6[%c0_10, %c0_11, %c0_12, %c0_13] : memref<1x2x2x128xf32, #tpu.memory_space<vmem>>, vector<1x2x2x128xf32>
      tpu.vector_store %arg6[%c0_10, %c0_11, %c0_12, %c0_13], %13 {strides = array<i32>} : memref<1x2x2x128xf32, #tpu.memory_space<vmem>>, vector<1x2x2x128xf32>,
    } else {
    }
    return
  }
  func.func @transform_0(%arg0: i32, %arg1: i32, %arg2: i32) -> (i32, i32, i32, i32) {
    %c2_i32 = arith.constant 2 : i32
    %0 = arith.muli %arg2, %c2_i32 : i32
    %1 = arith.addi %0, %arg0 : i32
    %c0_i32 = arith.constant 0 : i32
    %c0_i32_0 = arith.constant 0 : i32
    %c0_i32_1 = arith.constant 0 : i32
    return %1, %arg1, %c0_i32, %c0_i32_0 : i32, i32, i32, i32
  }
  func.func @transform_1(%arg0: i32, %arg1: i32, %arg2: i32) -> (i32, i32, i32, i32) {
    %c0_i32 = arith.constant 0 : i32
    %c0_i32_0 = arith.constant 0 : i32
    %c0_i32_1 = arith.constant 0 : i32
    %c0_i32_2 = arith.constant 0 : i32
    return %arg2, %c0_i32, %c0_i32_0, %c0_i32_1 : i32, i32, i32, i32
  }
  func.func @transform_2(%arg0: i32, %arg1: i32, %arg2: i32) -> (i32, i32) {
    %c0_i32 = arith.constant 0 : i32
    %c0_i32_0 = arith.constant 0 : i32
    %c0_i32_1 = arith.constant 0 : i32
    return %c0_i32, %c0_i32_0 : i32, i32
  }
  func.func @transform_3(%arg0: i32, %arg1: i32, %arg2: i32) -> (i32, i32, i32, i32) {
    %c0_i32 = arith.constant 0 : i32
    %c0_i32_0 = arith.constant 0 : i32
    %c0_i32_1 = arith.constant 0 : i32
    return %arg0, %arg1, %c0_i32, %c0_i32_0 : i32, i32, i32, i32
  }
}

module attributes {stable_mosaic.version = 11 : i64} {
  func.func @_conv_tap_kernel(%arg0: i32, %arg1: i32, %arg2: i32, %arg3: memref<1x1x2x512xbf16, #tpu.memory_space<vmem>>, %arg4: memref<1x2x512x256xbf16, #tpu.memory_space<vmem>>, %arg5: memref<1x256xf32, #tpu.memory_space<vmem>>, %arg6: memref<1x1x1x256xf32, #tpu.memory_space<vmem>>) attributes {dimension_semantics = [#tpu.dimension_semantics<parallel>, #tpu.dimension_semantics<parallel>, #tpu.dimension_semantics<arbitrary>], iteration_bounds = array<i64: 2, 1, 3>, scalar_prefetch = 0 : i64, scratch_operands = 0 : i64, tpu.core_type = #tpu.core_type<tc>, window_params = [{transform_indices = @transform_0, window_bounds = array<i64: 1, 1, 2, 512>}, {transform_indices = @transform_1, window_bounds = array<i64: 1, 2, 512, 256>}, {pipeline_mode = #tpu.pipeline_mode<synchronous>, transform_indices = @transform_2, window_bounds = array<i64: 1, 256>}, {transform_indices = @transform_3, window_bounds = array<i64: 1, 1, 1, 256>}]} {
    %c0_i32 = arith.constant 0 : i32
    %0 = arith.cmpi eq, %arg2, %c0_i32 : i32
    %1 = arith.extui %0 : i1 to i32
    %c0_i32_0 = arith.constant 0 : i32
    %2 = arith.cmpi ne, %1, %c0_i32_0 : i32
    scf.if %2 {
      %cst_20 = arith.constant 0.000000e+00 : f32
      %28 = vector.broadcast %cst_20 : f32 to vector<1x1x1x256xf32>
      %c0_21 = arith.constant 0 : index
      %c0_22 = arith.constant 0 : index
      %c0_23 = arith.constant 0 : index
      %c0_24 = arith.constant 0 : index
      %29 = vector.load %arg6[%c0_21, %c0_22, %c0_23, %c0_24] : memref<1x1x1x256xf32, #tpu.memory_space<vmem>>, vector<1x1x1x256xf32>
      tpu.vector_store %arg6[%c0_21, %c0_22, %c0_23, %c0_24], %28 {strides = array<i32>} : memref<1x1x1x256xf32, #tpu.memory_space<vmem>>, vector<1x1x1x256xf32>,
    } else {
    }
    %c0_i32_1 = arith.constant 0 : i32
    %c0 = arith.constant 0 : index
    %3 = arith.index_cast %c0_i32_1 : i32 to index
    %c0_2 = arith.constant 0 : index
    %c0_3 = arith.constant 0 : index
    %4 = vector.load %arg3[%c0, %3, %c0_2, %c0_3] : memref<1x1x2x512xbf16, #tpu.memory_space<vmem>>, vector<1x1x2x512xbf16>
    %5 = vector.shape_cast %4 : vector<1x1x2x512xbf16> to vector<2x512xbf16>
    %cst = arith.constant 0.000000e+00 : f32
    %6 = vector.broadcast %cst : f32 to vector<1x256xf32>
    %7 = vector.extract_strided_slice %5 {offsets = [0, 0], sizes = [1, 512], strides = [1, 1]} : vector<2x512xbf16> to vector<1x512xbf16>
    %c0_4 = arith.constant 0 : index
    %c0_5 = arith.constant 0 : index
    %c0_6 = arith.constant 0 : index
    %c0_7 = arith.constant 0 : index
    %8 = vector.load %arg4[%c0_4, %c0_5, %c0_6, %c0_7] : memref<1x2x512x256xbf16, #tpu.memory_space<vmem>>, vector<1x1x512x256xbf16>
    %9 = vector.shape_cast %8 : vector<1x1x512x256xbf16> to vector<512x256xbf16>
    %cst_8 = arith.constant dense<0.000000e+00> : vector<1x256xf32>
    %10 = tpu.matmul %7, %9, %cst_8 {dimension_numbers = #tpu.dot_dimension_numbers<[1], [0], [0], [1], [0, 0, 1, 1], [], []>} : vector<1x512xbf16>, vector<512x256xbf16>, vector<1x256xf32> -> vector<1x256xf32>
    %11 = arith.addf %6, %10 : vector<1x256xf32>
    %12 = vector.extract_strided_slice %5 {offsets = [1, 0], sizes = [1, 512], strides = [1, 1]} : vector<2x512xbf16> to vector<1x512xbf16>
    %c0_9 = arith.constant 0 : index
    %c1 = arith.constant 1 : index
    %c0_10 = arith.constant 0 : index
    %c0_11 = arith.constant 0 : index
    %13 = vector.load %arg4[%c0_9, %c1, %c0_10, %c0_11] : memref<1x2x512x256xbf16, #tpu.memory_space<vmem>>, vector<1x1x512x256xbf16>
    %14 = vector.shape_cast %13 : vector<1x1x512x256xbf16> to vector<512x256xbf16>
    %cst_12 = arith.constant dense<0.000000e+00> : vector<1x256xf32>
    %15 = tpu.matmul %12, %14, %cst_12 {dimension_numbers = #tpu.dot_dimension_numbers<[1], [0], [0], [1], [0, 0, 1, 1], [], []>} : vector<1x512xbf16>, vector<512x256xbf16>, vector<1x256xf32> -> vector<1x256xf32>
    %16 = arith.addf %11, %15 : vector<1x256xf32>
    %c0_13 = arith.constant 0 : index
    %17 = arith.index_cast %c0_i32_1 : i32 to index
    %c0_14 = arith.constant 0 : index
    %c0_15 = arith.constant 0 : index
    %18 = vector.load %arg6[%c0_13, %17, %c0_14, %c0_15] : memref<1x1x1x256xf32, #tpu.memory_space<vmem>>, vector<1x1x1x256xf32>
    %19 = vector.shape_cast %18 : vector<1x1x1x256xf32> to vector<1x256xf32>
    %20 = arith.addf %19, %16 : vector<1x256xf32>
    %c0_16 = arith.constant 0 : index
    %21 = arith.index_cast %c0_i32_1 : i32 to index
    %c0_17 = arith.constant 0 : index
    %c0_18 = arith.constant 0 : index
    %22 = vector.load %arg6[%c0_16, %21, %c0_17, %c0_18] : memref<1x1x1x256xf32, #tpu.memory_space<vmem>>, vector<1x1x1x256xf32>
    %23 = vector.shape_cast %22 : vector<1x1x1x256xf32> to vector<1x256xf32>
    %24 = vector.shape_cast %20 : vector<1x256xf32> to vector<1x1x1x256xf32>
    tpu.vector_store %arg6[%c0_16, %21, %c0_17, %c0_18], %24 {strides = array<i32>} : memref<1x1x1x256xf32, #tpu.memory_space<vmem>>, vector<1x1x1x256xf32>,
    %c1_i32 = arith.constant 1 : i32
    %c2_i32 = arith.constant 2 : i32
    %25 = arith.cmpi eq, %arg2, %c2_i32 : i32
    %26 = arith.extui %25 : i1 to i32
    %c0_i32_19 = arith.constant 0 : i32
    %27 = arith.cmpi ne, %26, %c0_i32_19 : i32
    scf.if %27 {
      %c0_20 = arith.constant 0 : index
      %c0_21 = arith.constant 0 : index
      %c0_22 = arith.constant 0 : index
      %c0_23 = arith.constant 0 : index
      %28 = vector.load %arg6[%c0_20, %c0_21, %c0_22, %c0_23] : memref<1x1x1x256xf32, #tpu.memory_space<vmem>>, vector<1x1x1x256xf32>
      %c0_24 = arith.constant 0 : index
      %c0_25 = arith.constant 0 : index
      %29 = vector.load %arg5[%c0_24, %c0_25] : memref<1x256xf32, #tpu.memory_space<vmem>>, vector<1x256xf32>
      %30 = vector.shape_cast %29 : vector<1x256xf32> to vector<1x1x1x256xf32>
      %31 = arith.addf %28, %30 : vector<1x1x1x256xf32>
      %cst_26 = arith.constant 0.000000e+00 : f32
      %32 = vector.broadcast %cst_26 : f32 to vector<1x1x1x256xf32>
      %33 = arith.maximumf %31, %32 : vector<1x1x1x256xf32>
      %c0_27 = arith.constant 0 : index
      %c0_28 = arith.constant 0 : index
      %c0_29 = arith.constant 0 : index
      %c0_30 = arith.constant 0 : index
      %34 = vector.load %arg6[%c0_27, %c0_28, %c0_29, %c0_30] : memref<1x1x1x256xf32, #tpu.memory_space<vmem>>, vector<1x1x1x256xf32>
      tpu.vector_store %arg6[%c0_27, %c0_28, %c0_29, %c0_30], %33 {strides = array<i32>} : memref<1x1x1x256xf32, #tpu.memory_space<vmem>>, vector<1x1x1x256xf32>,
    } else {
    }
    return
  }
  func.func @transform_0(%arg0: i32, %arg1: i32, %arg2: i32) -> (i32, i32, i32, i32) {
    %c2_i32 = arith.constant 2 : i32
    %0 = arith.muli %arg2, %c2_i32 : i32
    %1 = arith.addi %0, %arg0 : i32
    %c0_i32 = arith.constant 0 : i32
    %c0_i32_0 = arith.constant 0 : i32
    %c0_i32_1 = arith.constant 0 : i32
    return %1, %arg1, %c0_i32, %c0_i32_0 : i32, i32, i32, i32
  }
  func.func @transform_1(%arg0: i32, %arg1: i32, %arg2: i32) -> (i32, i32, i32, i32) {
    %c0_i32 = arith.constant 0 : i32
    %c0_i32_0 = arith.constant 0 : i32
    %c0_i32_1 = arith.constant 0 : i32
    %c0_i32_2 = arith.constant 0 : i32
    return %arg2, %c0_i32, %c0_i32_0, %c0_i32_1 : i32, i32, i32, i32
  }
  func.func @transform_2(%arg0: i32, %arg1: i32, %arg2: i32) -> (i32, i32) {
    %c0_i32 = arith.constant 0 : i32
    %c0_i32_0 = arith.constant 0 : i32
    %c0_i32_1 = arith.constant 0 : i32
    return %c0_i32, %c0_i32_0 : i32, i32
  }
  func.func @transform_3(%arg0: i32, %arg1: i32, %arg2: i32) -> (i32, i32, i32, i32) {
    %c0_i32 = arith.constant 0 : i32
    %c0_i32_0 = arith.constant 0 : i32
    %c0_i32_1 = arith.constant 0 : i32
    return %arg0, %arg1, %c0_i32, %c0_i32_0 : i32, i32, i32, i32
  }
}

module attributes {stable_mosaic.version = 11 : i64} {
  func.func @_pose_head_kernel(%arg0: i32, %arg1: memref<1x2x256xf32, #tpu.memory_space<vmem>>, %arg2: memref<256x6xf32, #tpu.memory_space<vmem>>, %arg3: memref<1x6xf32, #tpu.memory_space<vmem>>, %arg4: memref<2x6xf32, #tpu.memory_space<vmem>>) attributes {dimension_semantics = [#tpu.dimension_semantics<arbitrary>], iteration_bounds = array<i64: 1>, scalar_prefetch = 0 : i64, scratch_operands = 0 : i64, tpu.core_type = #tpu.core_type<tc>, window_params = [{pipeline_mode = #tpu.pipeline_mode<synchronous>, transform_indices = @transform_0, window_bounds = array<i64: 1, 2, 256>}, {pipeline_mode = #tpu.pipeline_mode<synchronous>, transform_indices = @transform_1, window_bounds = array<i64: 256, 6>}, {pipeline_mode = #tpu.pipeline_mode<synchronous>, transform_indices = @transform_2, window_bounds = array<i64: 1, 6>}, {pipeline_mode = #tpu.pipeline_mode<synchronous>, transform_indices = @transform_3, window_bounds = array<i64: 2, 6>}]} {
    %c0 = arith.constant 0 : index
    %c0_0 = arith.constant 0 : index
    %c0_1 = arith.constant 0 : index
    %0 = vector.load %arg1[%c0, %c0_0, %c0_1] : memref<1x2x256xf32, #tpu.memory_space<vmem>>, vector<1x2x256xf32>
    %cst = arith.constant dense<0.000000e+00> : vector<2x256xf32>
    %1 = vector.multi_reduction <add>, %0, %cst [0] : vector<1x2x256xf32> to vector<2x256xf32>
    %cst_2 = arith.constant 1.000000e+00 : f32
    %2 = vector.broadcast %cst_2 : f32 to vector<2x256xf32>
    %3 = arith.mulf %1, %2 : vector<2x256xf32>
    %c0_3 = arith.constant 0 : index
    %c0_4 = arith.constant 0 : index
    %4 = vector.load %arg2[%c0_3, %c0_4] : memref<256x6xf32, #tpu.memory_space<vmem>>, vector<256x6xf32>
    %cst_5 = arith.constant dense<0.000000e+00> : vector<2x6xf32>
    %5 = tpu.matmul %3, %4, %cst_5 {dimension_numbers = #tpu.dot_dimension_numbers<[1], [0], [0], [1], [0, 0, 1, 1], [], []>} : vector<2x256xf32>, vector<256x6xf32>, vector<2x6xf32> -> vector<2x6xf32>
    %c0_6 = arith.constant 0 : index
    %c0_7 = arith.constant 0 : index
    %6 = vector.load %arg3[%c0_6, %c0_7] : memref<1x6xf32, #tpu.memory_space<vmem>>, vector<1x6xf32>
    %7 = vector.broadcast %6 : vector<1x6xf32> to vector<2x6xf32>
    %8 = arith.addf %5, %7 : vector<2x6xf32>
    %c0_8 = arith.constant 0 : index
    %c0_9 = arith.constant 0 : index
    %9 = vector.load %arg4[%c0_8, %c0_9] : memref<2x6xf32, #tpu.memory_space<vmem>>, vector<2x6xf32>
    tpu.vector_store %arg4[%c0_8, %c0_9], %8 {strides = array<i32>} : memref<2x6xf32, #tpu.memory_space<vmem>>, vector<2x6xf32>,
    return
  }
  func.func @transform_0(%arg0: i32) -> (i32, i32, i32) {
    %c0_i32 = arith.constant 0 : i32
    %c0_i32_0 = arith.constant 0 : i32
    %c0_i32_1 = arith.constant 0 : i32
    %c0_i32_2 = arith.constant 0 : i32
    return %c0_i32, %c0_i32_0, %c0_i32_1 : i32, i32, i32
  }
  func.func @transform_1(%arg0: i32) -> (i32, i32) {
    %c0_i32 = arith.constant 0 : i32
    %c0_i32_0 = arith.constant 0 : i32
    %c0_i32_1 = arith.constant 0 : i32
    return %c0_i32, %c0_i32_0 : i32, i32
  }
  func.func @transform_2(%arg0: i32) -> (i32, i32) {
    %c0_i32 = arith.constant 0 : i32
    %c0_i32_0 = arith.constant 0 : i32
    %c0_i32_1 = arith.constant 0 : i32
    return %c0_i32, %c0_i32_0 : i32, i32
  }
  func.func @transform_3(%arg0: i32) -> (i32, i32) {
    %c0_i32 = arith.constant 0 : i32
    %c0_i32_0 = arith.constant 0 : i32
    %c0_i32_1 = arith.constant 0 : i32
    return %c0_i32, %c0_i32_0 : i32, i32
  }
}

</mosaic_0001>

<llo_original>
// kernel: pose_cnn_forward.8
$region0: #{pose_cnn_forward.8}
  #allocation0 [shape = 'u32[]', space=smem, size = 0x4, offset = 0x4, fixed_abs, tag = 'smem constant byte address 0x4 - core index']
  #allocation1 [shape = 'u32[144,128]{1,0:T(1,128)}', space=vmem, size = 0x12000, scoped, tag = 'internal scratch']
  %s0 = inlined_call_operand.vmem [shape: bf16[14,16,19,12], index: 0, kind: input, shape index: {}]
  %s1 = inlined_call_operand.vmem [shape: bf16[7,4,12,128], index: 1, kind: input, shape index: {}]
  %s2 = inlined_call_operand.vmem [shape: f32[1,128], index: 2, kind: input, shape index: {}]
  %s3 = inlined_call_operand.vmem [shape: f32[2,16,16,128], index: 3, kind: output, shape index: {}]
  %s4 = sld [smem:[#allocation0]]
  $region60: #{pose_cnn_forward.8} parent=0
    _
  %s6 = ssub.s32 1, %s4
  %s7 = scalar_select 0, %s6, %s4
  loop: start=0, step=1, limit=16
  $region2: #{pose_cnn_forward.8} parent=0 // loop_pre_header
    _
  $region3: #{pose_cnn_forward.8} parent=0 // loop_header
    %s9 = sphi 0, %s13
    %p10 = scmp.ge.s32.totalorder %s9, 16
    %s16 = sphi 0, %s35
    %s17 = sphi 0, %s31
    %s18 = sphi 0, %s27
    %s19 = sphi 0, %s16
    %s20 = sphi 0, %s17
    %s21 = sphi 0, %s18
    %s22 = sphi 0, %s19
    %s23 = sphi 0, %s20
    %s24 = sphi 0, %s21
    %s44 = sphi 0, %s46
    %s47 = sphi 0, %s44
    %s48 = sphi 0, %s47
    %s64 = sphi 0, %s48
    %s70 = sphi 0, %s72
    %s73 = sphi 0, %s70
    %s74 = sphi 0, %s73
    %s90 = sphi 0, %s74
    %s94 = sphi 0, %s94
    %s96 = sphi 0, %s94
    %s97 = sphi 0, %s96
    %s111 = sphi 0, %s97
    %s119 = sphi 0, %s121
    %s122 = sphi 0, %s119
    %s123 = sphi 0, %s122
    %s139 = sphi 0, %s123
  $region4: #{pose_cnn_forward.8} parent=0 // loop_header_branch
    %12 = sbr.rel (%p10) target = $region8
  $region5: #{pose_cnn_forward.8} parent=0 // loop_body
    %s14 = ssub.s32 %s9, 1
    %s15 = ssub.s32 %s9, 2
    %s25 = sadd.s32 1, %s18
    %p26 = scmp.ge.s32.totalorder %s25, 7
    %s27 = scalar_select %p26, 0, %s25
    %s28 = sadd.s32 1, %s17
    %s29 = scalar_select %p26, %s28, %s17
    %p30 = scmp.ge.s32.totalorder %s29, 1
    %s31 = scalar_select %p30, 0, %s29
    %s32 = sadd.s32 1, %s16
    %s33 = scalar_select %p30, %s32, %s16
    %p34 = scmp.ge.s32.totalorder %s33, 2
    %s35 = scalar_select %p34, 0, %s33
    %s36 = smul.u32 %s18, 2
    %s37 = sadd.s32 %s36, %s16
    %s38 = smul.u32 %s27, 2
    %s39 = sadd.s32 %s38, %s35
    %s40 = ssub.s32 %s37, %s39
    %s41 = ssub.s32 %s17, %s31
    %s42 = sor.u32 %s40, %s41
    %p43 = scmp.eq.s32.totalorder %s42, 0
    %s45 = sadd.s32 %s44, 1
    %s46 = scalar_select %p43, %s44, %s45
    %p49 = pneg %p43
    %p50 = scmp.eq.s32.totalorder %s9, 13
    %p51 = por %p49, %p50
    %p52 = scmp.ne.s32.totalorder %s44, %s47
    %p53 = scmp.eq.s32.totalorder %s9, 0
    %p54 = por %p52, %p53
    %p55 = scmp.ne.s32.totalorder %s44, %s47
    %p56 = scmp.eq.s32.totalorder %s14, 13
    %p57 = por %p55, %p56
    %p58 = scmp.ne.s32.totalorder %s47, %s48
    %p59 = scmp.eq.s32.totalorder %s14, 0
    %p60 = por %p58, %p59
    %p61 = scmp.ne.s32.totalorder %s47, %s48
    %p62 = scmp.eq.s32.totalorder %s15, 13
    %p63 = por %p61, %p62
    %p65 = scmp.ne.s32.totalorder %s48, %s64
    %p66 = scmp.eq.s32.totalorder %s15, 0
    %p67 = por %p65, %p66
    %s68 = ssub.s32 %s18, %s27
    %p69 = scmp.eq.s32.totalorder %s68, 0
    %s71 = sadd.s32 %s70, 1
    %s72 = scalar_select %p69, %s70, %s71
    %p75 = pneg %p69
    %p76 = scmp.eq.s32.totalorder %s9, 13
    %p77 = por %p75, %p76
    %p78 = scmp.ne.s32.totalorder %s70, %s73
    %p79 = scmp.eq.s32.totalorder %s9, 0
    %p80 = por %p78, %p79
    %p81 = scmp.ne.s32.totalorder %s70, %s73
    %p82 = scmp.eq.s32.totalorder %s14, 13
    %p83 = por %p81, %p82
    %p84 = scmp.ne.s32.totalorder %s73, %s74
    %p85 = scmp.eq.s32.totalorder %s14, 0
    %p86 = por %p84, %p85
    %p87 = scmp.ne.s32.totalorder %s73, %s74
    %p88 = scmp.eq.s32.totalorder %s15, 13
    %p89 = por %p87, %p88
    %p91 = scmp.ne.s32.totalorder %s74, %s90
    %p92 = scmp.eq.s32.totalorder %s15, 0
    %p93 = por %p91, %p92
    %s95 = sadd.s32 %s94, 1
    %p98 = scmp.eq.s32.totalorder %s9, 13
    %p99 = scmp.ne.s32.totalorder %s94, %s96
    %p100 = scmp.eq.s32.totalorder %s9, 0
    %p101 = por %p99, %p100
    %p102 = scmp.ne.s32.totalorder %s94, %s96
    %p103 = scmp.eq.s32.totalorder %s14, 13
    %p104 = por %p102, %p103
    %p105 = scmp.ne.s32.totalorder %s96, %s97
    %p106 = scmp.eq.s32.totalorder %s14, 0
    %p107 = por %p105, %p106
    %p108 = scmp.ne.s32.totalorder %s96, %s97
    %p109 = scmp.eq.s32.totalorder %s15, 13
    %p110 = por %p108, %p109
    %p112 = scmp.ne.s32.totalorder %s97, %s111
    %p113 = scmp.eq.s32.totalorder %s15, 0
    %p114 = por %p112, %p113
    %s115 = ssub.s32 %s16, %s35
    %s116 = ssub.s32 %s17, %s31
    %s117 = sor.u32 %s115, %s116
    %p118 = scmp.eq.s32.totalorder %s117, 0
    %s120 = sadd.s32 %s119, 1
    %s121 = scalar_select %p118, %s119, %s120
    %p124 = pneg %p118
    %p125 = scmp.eq.s32.totalorder %s9, 13
    %p126 = por %p124, %p125
    %p127 = scmp.ne.s32.totalorder %s119, %s122
    %p128 = scmp.eq.s32.totalorder %s9, 0
    %p129 = por %p127, %p128
    %p130 = scmp.ne.s32.totalorder %s119, %s122
    %p131 = scmp.eq.s32.totalorder %s14, 13
    %p132 = por %p130, %p131
    %p133 = scmp.ne.s32.totalorder %s122, %s123
    %p134 = scmp.eq.s32.totalorder %s14, 0
    %p135 = por %p133, %p134
    %p136 = scmp.ne.s32.totalorder %s122, %s123
    %p137 = scmp.eq.s32.totalorder %s15, 13
    %p138 = por %p136, %p137
    %p140 = scmp.ne.s32.totalorder %s123, %s139
    %p141 = scmp.eq.s32.totalorder %s15, 0
    %p142 = por %p140, %p141
    %p143 = scmp.le.s32.totalorder 1, %s9
    %p144 = scmp.lt.s32.totalorder %s9, 15
    %p145 = pnand %p143, %p144
    %p146 = pneg %p145
    // Predicated region
    $region9: #{pose_cnn_forward.8} parent=5 // pred_check
      _
    $region10: #{pose_cnn_forward.8} parent=5 // pred_check_branch
      %148 = sbr.rel (%p145) target = $region12
    $region11: #{pose_cnn_forward.8} parent=5 // pred_region
      %s149 = ssub.s32 %s9, 1
      // Predicated region
      $region13: #{pose_cnn_forward.8} parent=11 // pred_check
        %p150 = pneg %p107
      $region14: #{pose_cnn_forward.8} parent=11 // pred_check_branch
        %152 = sbr.rel (%p150) target = $region16
      $region15: #{pose_cnn_forward.8} parent=11 // pred_region
        _
      $region16: #{pose_cnn_forward.8} parent=11 // pred_fallthru
        _
    $region12: #{pose_cnn_forward.8} parent=5 // pred_fallthru
      _
    %p153 = scmp.lt.s32.totalorder %s9, 14
    // Predicated region
    $region17: #{pose_cnn_forward.8} parent=5 // pred_check
      %p154 = pneg %p153
    $region18: #{pose_cnn_forward.8} parent=5 // pred_check_branch
      %156 = sbr.rel (%p154) target = $region20
    $region19: #{pose_cnn_forward.8} parent=5 // pred_region
      // Predicated region
      $region21: #{pose_cnn_forward.8} parent=19 // pred_check
        %p157 = pneg %p54
      $region22: #{pose_cnn_forward.8} parent=19 // pred_check_branch
        %159 = sbr.rel (%p157) target = $region24
      $region23: #{pose_cnn_forward.8} parent=19 // pred_region
        %s160 = smul.u32 %s18, 2
        %s161 = sadd.s32 %s160, %s16
        %s162 = smul.u32 16, %s17
        %p163 = scmp.lt.s32.totalorder %s161, 13
        %s164 = scalar_select %p163, %s161, 13
        %p165 = scmp.lt.s32.totalorder %s162, 15
        %s166 = scalar_select %p165, %s162, 15
        %s167 = smul.addr %s166, 3
        %s168 = smul.addr %s164, 48
        %s169 = sadd.s32 %s167, %s168
        %s170 = smul.addr %s169, 4
        %s171 = scalar_lea.vmem %s0, %s170
        %s172 = smul.u32 %s18, 2
        %s173 = sadd.s32 %s172, %s16
        %s174 = smul.u32 16, %s17
      $region24: #{pose_cnn_forward.8} parent=19 // pred_fallthru
        _
      // Predicated region
      $region25: #{pose_cnn_forward.8} parent=19 // pred_check
        %p175 = pneg %p80
      $region26: #{pose_cnn_forward.8} parent=19 // pred_check_branch
        %177 = sbr.rel (%p175) target = $region28
      $region27: #{pose_cnn_forward.8} parent=19 // pred_region
        %p178 = scmp.lt.s32.totalorder %s18, 6
        %s179 = scalar_select %p178, %s18, 6
        %s180 = smul.addr %s179, 8
        %s181 = smul.addr %s180, 4
        %s182 = scalar_lea.vmem %s1, %s181
      $region28: #{pose_cnn_forward.8} parent=19 // pred_fallthru
        _
    $region20: #{pose_cnn_forward.8} parent=5 // pred_fallthru
      _
    %p183 = scmp.le.s32.totalorder 1, %s9
    %p184 = scmp.lt.s32.totalorder %s9, 15
    %p185 = pnand %p183, %p184
    %p186 = pneg %p185
    // Predicated region
    $region29: #{pose_cnn_forward.8} parent=5 // pred_check
      _
    $region30: #{pose_cnn_forward.8} parent=5 // pred_check_branch
      %188 = sbr.rel (%p185) target = $region32
    $region31: #{pose_cnn_forward.8} parent=5 // pred_region
      %s189 = ssub.s32 %s9, 1
      %s190 = smul.u32 %s21, 2
      %s191 = sadd.s32 %s190, %s19
      %s192 = smul.u32 16, %s20
      %p193 = scmp.lt.s32.totalorder %s191, 13
      %s194 = scalar_select %p193, %s191, 13
      %p195 = scmp.lt.s32.totalorder %s192, 15
      %s196 = scalar_select %p195, %s192, 15
      %s197 = smul.addr %s196, 3
      %s198 = smul.addr %s194, 48
      %s199 = sadd.s32 %s197, %s198
      %s200 = smul.addr %s199, 4
      %s201 = scalar_lea.vmem %s0, %s200
      %p202 = pneg %p60
      %p203 = pneg %p57
      %p204 = scmp.lt.s32.totalorder %s21, 6
      %s205 = scalar_select %p204, %s21, 6
      %s206 = smul.addr %s205, 8
      %s207 = smul.addr %s206, 4
      %s208 = scalar_lea.vmem %s1, %s207
      %p209 = pneg %p86
      %p210 = pneg %p83
      %p211 = pneg %p107
      %p212 = pneg %p104
      %p213 = pneg %p135
      %p214 = pneg %p132
      %s215 = smul.u32 16, %s20
      %p216 = scmp.lt.s32.totalorder %s19, 1
      %s217 = scalar_select %p216, %s19, 1
      %p218 = scmp.lt.s32.totalorder %s215, 15
      %s219 = scalar_select %p218, %s215, 15
      %s220 = smul.addr %s219, 2
      %s221 = smul.addr %s217, 32
      %s222 = sadd.s32 %s220, %s221
      %s223 = smul.addr %s222, 8
      %s224 = scalar_lea.vmem %s3, %s223
      %s225 = smul.u32 %s21, 2
      %s226 = sadd.s32 %s225, %s19
      %s227 = smul.u32 16, %s20
      %p228 = scmp.lt.s32.totalorder %s226, 13
      %s229 = scalar_select %p228, %s226, 13
      %p230 = scmp.lt.s32.totalorder %s227, 15
      %s231 = scalar_select %p230, %s227, 15
      %s232 = smul.addr %s231, 3
      %s233 = smul.addr %s229, 48
      %s234 = sadd.s32 %s232, %s233
      %s235 = smul.addr %s234, 4
      %s236 = scalar_lea.vmem %s0, %s235
      %s237 = smul.u32 %s21, 2
      %s238 = sadd.s32 %s237, %s19
      %s239 = smul.u32 16, %s20
      %p240 = scmp.lt.s32.totalorder %s21, 6
      %s241 = scalar_select %p240, %s21, 6
      %s242 = smul.addr %s241, 8
      %s243 = smul.addr %s242, 4
      %s244 = scalar_lea.vmem %s1, %s243
      %s245 = smul.u32 16, %s20
      %p246 = scmp.lt.s32.totalorder %s19, 1
      %s247 = scalar_select %p246, %s19, 1
      %p248 = scmp.lt.s32.totalorder %s245, 15
      %s249 = scalar_select %p248, %s245, 15
      %s250 = smul.addr %s249, 2
      %s251 = smul.addr %s247, 32
      %s252 = sadd.s32 %s250, %s251
      %s253 = smul.addr %s252, 8
      %s254 = scalar_lea.vmem %s3, %s253
      %s255 = smul.u32 16, %s20
      %p257 = scmp.eq.s32.totalorder %s21, 0
      // Predicated region
      $region33: #{pose_cnn_forward.8} parent=31 // pred_check
        %p258 = pneg %p257
      $region34: #{pose_cnn_forward.8} parent=31 // pred_check_branch
        %260 = sbr.rel (%p258) target = $region36
      $region35: #{pose_cnn_forward.8} parent=31 // pred_region
        %261 = vst [vmem:[%s254] sm:$0xff] 0.0
        %262 = vst [vmem:[%s254 + $0x8] sm:$0xff] 0.0
        %263 = vst [vmem:[%s254 + $0x10] sm:$0xff] 0.0
        %264 = vst [vmem:[%s254 + $0x18] sm:$0xff] 0.0
        %265 = vst [vmem:[%s254 + $0x20] sm:$0xff] 0.0
        %266 = vst [vmem:[%s254 + $0x28] sm:$0xff] 0.0
        %267 = vst [vmem:[%s254 + $0x30] sm:$0xff] 0.0
        %268 = vst [vmem:[%s254 + $0x38] sm:$0xff] 0.0
        %269 = vst [vmem:[%s254 + $0x40] sm:$0xff] 0.0
        %270 = vst [vmem:[%s254 + $0x48] sm:$0xff] 0.0
        %271 = vst [vmem:[%s254 + $0x50] sm:$0xff] 0.0
        %272 = vst [vmem:[%s254 + $0x58] sm:$0xff] 0.0
        %273 = vst [vmem:[%s254 + $0x60] sm:$0xff] 0.0
        %274 = vst [vmem:[%s254 + $0x68] sm:$0xff] 0.0
        %275 = vst [vmem:[%s254 + $0x70] sm:$0xff] 0.0
        %276 = vst [vmem:[%s254 + $0x78] sm:$0xff] 0.0
        %277 = vst [vmem:[%s254 + $0x80] sm:$0xff] 0.0
        %278 = vst [vmem:[%s254 + $0x88] sm:$0xff] 0.0
        %279 = vst [vmem:[%s254 + $0x90] sm:$0xff] 0.0
        %280 = vst [vmem:[%s254 + $0x98] sm:$0xff] 0.0
        %281 = vst [vmem:[%s254 + $0xa0] sm:$0xff] 0.0
        %282 = vst [vmem:[%s254 + $0xa8] sm:$0xff] 0.0
        %283 = vst [vmem:[%s254 + $0xb0] sm:$0xff] 0.0
        %284 = vst [vmem:[%s254 + $0xb8] sm:$0xff] 0.0
        %285 = vst [vmem:[%s254 + $0xc0] sm:$0xff] 0.0
        %286 = vst [vmem:[%s254 + $0xc8] sm:$0xff] 0.0
        %287 = vst [vmem:[%s254 + $0xd0] sm:$0xff] 0.0
        %288 = vst [vmem:[%s254 + $0xd8] sm:$0xff] 0.0
        %289 = vst [vmem:[%s254 + $0xe0] sm:$0xff] 0.0
        %290 = vst [vmem:[%s254 + $0xe8] sm:$0xff] 0.0
        %291 = vst [vmem:[%s254 + $0xf0] sm:$0xff] 0.0
        %292 = vst [vmem:[%s254 + $0xf8] sm:$0xff] 0.0
      $region36: #{pose_cnn_forward.8} parent=31 // pred_fallthru
        _
      loop: start=0, step=1, limit=16
      $region37: #{pose_cnn_forward.8} parent=31 // loop_pre_header
        _
      $region38: #{pose_cnn_forward.8} parent=31 // loop_header
        %s294 = sphi 0, %s298
        %p295 = scmp.ge.s32.totalorder %s294, 16
      $region39: #{pose_cnn_forward.8} parent=31 // loop_header_branch
        %297 = sbr.rel (%p295) target = $region43
      $region40: #{pose_cnn_forward.8} parent=31 // loop_body
        %s299 = smul.u32 %s294, 3
        %s300 = smul.addr %s299, 4
        %s301 = scalar_lea.vmem %s236, %s300
        %v302 = vld [vmem:[%s301] sm:$0xf]
        %v303 = vld [vmem:[%s301 + $0x4] sm:$0xf]
        %v304 = vld [vmem:[%s301 + $0x8] sm:$0x3]
        %v305 = vld [vmem:[%s244] sm:$0xf]
        %v306 = vld [vmem:[%s244 + $0x4] sm:$0x3]
        %s307 = scalar_lea.vmem %s244, 8
        %v308 = vld [vmem:[%s307] sm:$0xf]
        %v309 = vld [vmem:[%s307 + $0x4] sm:$0x3]
        %v313 = vunpack.c.l.b16 %v302
        %v314 = vunpack.c.l.b16 %v303
        %v315 = vunpack.c.l.b16 %v304
        %v316 = vpack.c.b16 %v314, %v313
        %v317 = vpack.c.b16 %v315, %v315
        %vm318 = vsmask.f32 7424
        %v320 = vshrl.u32 %v316, 16
        %v322 = vshll.u32 %v316, 16
        %v324 = vrot.slane %v322, 1
        %v325 = vor.u32 %v320, %v324
        %v327 = vshll.u32 %v317, 16
        %v329 = vrot.slane %v327, 1
        %v330 = vsel %vm318, %v325, %v329
        %v333 = vunpack.c.l.b16 %v308
        %v334 = vunpack.c.l.b16 %v309
        %v335 = vpack.c.b16 %v334, %v333
        %vm336 = vcmask 97280
        %v338 = vsel %vm336, %v330, 0
        %vm340 = vcmask 1045504
        %v342 = vsel %vm340, %v335, 0
        %344 = vmatprep.subr.bf16.mxu0 0
        %345 = vmatpush1.bf16.msra.mxu0 0
        %346 = vmatprep.subr.bf16.mxu0 0
        %347 = vmatpush1.bf16.msra.mxu0 0
        %348 = vmatprep.subr.bf16.mxu0 0
        %349 = vmatpush1.bf16.msra.mxu0 0
        %350 = vmatprep.subr.bf16.mxu0 0
        %351 = vmatpush1.bf16.msra.mxu0 0
        %352 = vmatprep.subr.bf16.mxu0 0
        %353 = vmatpush1.bf16.msra.mxu0 0
        %354 = vmatprep.subr.bf16.mxu0 0
        %355 = vmatpush1.bf16.msra.mxu0 0
        %356 = vmatprep.subr.bf16.mxu0 0
        %357 = vmatpush1.bf16.msra.mxu0 0
        %358 = vmatprep.subr.bf16.mxu0 0
        %359 = vmatpush1.bf16.msra.mxu0 %v342
        %360 = vmatprep.subr.bf16.mxu0 0
        %361 = vmatpush2.bf16.msra.mxu0 0
        %362 = vmatprep.subr.bf16.mxu0 0
        %363 = vmatpush2.bf16.msra.mxu0 0
        %364 = vmatprep.subr.bf16.mxu0 0
        %365 = vmatpush2.bf16.msra.mxu0 0
        %366 = vmatprep.subr.bf16.mxu0 0
        %367 = vmatpush2.bf16.msra.mxu0 0
        %368 = vmatprep.subr.bf16.mxu0 0
        %369 = vmatpush2.bf16.msra.mxu0 0
        %370 = vmatprep.subr.bf16.mxu0 0
        %371 = vmatpush2.bf16.msra.mxu0 0
        %372 = vmatprep.subr.bf16.mxu0 0
        %373 = vmatpush2.bf16.msra.mxu0 0
        %374 = vmatprep.subr.bf16.mxu0 0
        %375 = vmatpush2.bf16.msra.mxu0 0
        %376 = vmatprep.mubr.bf16.mxu0 0
        %377 = vmatmul.mubr.bf16.gmra.mxu0 %v338
        %v378 = vpop.f32.mrf.mxu0
        %v379 = vadd.f32 0.0, %v378
        %v380 = vpop.f32.mrf.mxu0
        %v381 = vpop.f32.mrf.mxu0
        %v382 = vadd.f32 0.0, %v381
        %v383 = vpop.f32.mrf.mxu0
        %384 = vdwg.mxu0
        %v387 = vunpack.c.l.b16 %v305
        %v388 = vunpack.c.l.b16 %v306
        %v389 = vpack.c.b16 %v388, %v387
        %v390 = vsel %vm336, %v316, 0
        %v393 = vsel %vm340, %v389, 0
        %395 = vmatprep.subr.bf16.mxu0 0
        %396 = vmatpush1.bf16.msra.mxu0 0
        %397 = vmatprep.subr.bf16.mxu0 0
        %398 = vmatpush1.bf16.msra.mxu0 0
        %399 = vmatprep.subr.bf16.mxu0 0
        %400 = vmatpush1.bf16.msra.mxu0 0
        %401 = vmatprep.subr.bf16.mxu0 0
        %402 = vmatpush1.bf16.msra.mxu0 0
        %403 = vmatprep.subr.bf16.mxu0 0
        %404 = vmatpush1.bf16.msra.mxu0 0
        %405 = vmatprep.subr.bf16.mxu0 0
        %406 = vmatpush1.bf16.msra.mxu0 0
        %407 = vmatprep.subr.bf16.mxu0 0
        %408 = vmatpush1.bf16.msra.mxu0 0
        %409 = vmatprep.subr.bf16.mxu0 0
        %410 = vmatpush1.bf16.msra.mxu0 %v393
        %411 = vmatprep.subr.bf16.mxu0 0
        %412 = vmatpush2.bf16.msra.mxu0 0
        %413 = vmatprep.subr.bf16.mxu0 0
        %414 = vmatpush2.bf16.msra.mxu0 0
        %415 = vmatprep.subr.bf16.mxu0 0
        %416 = vmatpush2.bf16.msra.mxu0 0
        %417 = vmatprep.subr.bf16.mxu0 0
        %418 = vmatpush2.bf16.msra.mxu0 0
        %419 = vmatprep.subr.bf16.mxu0 0
        %420 = vmatpush2.bf16.msra.mxu0 0
        %421 = vmatprep.subr.bf16.mxu0 0
        %422 = vmatpush2.bf16.msra.mxu0 0
        %423 = vmatprep.subr.bf16.mxu0 0
        %424 = vmatpush2.bf16.msra.mxu0 0
        %425 = vmatprep.subr.bf16.mxu0 0
        %426 = vmatpush2.bf16.msra.mxu0 0
        %427 = vmatprep.mubr.bf16.mxu0 0
        %428 = vmatmul.mubr.bf16.gmra.mxu0 %v390
        %v429 = vpop.f32.mrf.mxu0
        %v430 = vadd.f32 %v379, %v429
        %v431 = vpop.f32.mrf.mxu0
        %v432 = vpop.f32.mrf.mxu0
        %v433 = vadd.f32 %v382, %v432
        %v434 = vpop.f32.mrf.mxu0
        %435 = vdwg.mxu0
        %s436 = scalar_lea.vmem %s244, 16
        %v437 = vld [vmem:[%s436] sm:$0xf]
        %v438 = vld [vmem:[%s436 + $0x4] sm:$0x3]
        %vm439 = vcmask 1046528
        %v440 = vrot.slane %v316, 1
        %v441 = vrot.slane %v317, 1
        %v442 = vsel %vm439, %v440, %v441
        %v445 = vunpack.c.l.b16 %v437
        %v446 = vunpack.c.l.b16 %v438
        %v447 = vpack.c.b16 %v446, %v445
        %v449 = vsel %vm336, %v442, 0
        %v452 = vsel %vm340, %v447, 0
        %454 = vmatprep.subr.bf16.mxu0 0
        %455 = vmatpush1.bf16.msra.mxu0 0
        %456 = vmatprep.subr.bf16.mxu0 0
        %457 = vmatpush1.bf16.msra.mxu0 0
        %458 = vmatprep.subr.bf16.mxu0 0
        %459 = vmatpush1.bf16.msra.mxu0 0
        %460 = vmatprep.subr.bf16.mxu0 0
        %461 = vmatpush1.bf16.msra.mxu0 0
        %462 = vmatprep.subr.bf16.mxu0 0
        %463 = vmatpush1.bf16.msra.mxu0 0
        %464 = vmatprep.subr.bf16.mxu0 0
        %465 = vmatpush1.bf16.msra.mxu0 0
        %466 = vmatprep.subr.bf16.mxu0 0
        %467 = vmatpush1.bf16.msra.mxu0 0
        %468 = vmatprep.subr.bf16.mxu0 0
        %469 = vmatpush1.bf16.msra.mxu0 %v452
        %470 = vmatprep.subr.bf16.mxu0 0
        %471 = vmatpush2.bf16.msra.mxu0 0
        %472 = vmatprep.subr.bf16.mxu0 0
        %473 = vmatpush2.bf16.msra.mxu0 0
        %474 = vmatprep.subr.bf16.mxu0 0
        %475 = vmatpush2.bf16.msra.mxu0 0
        %476 = vmatprep.subr.bf16.mxu0 0
        %477 = vmatpush2.bf16.msra.mxu0 0
        %478 = vmatprep.subr.bf16.mxu0 0
        %479 = vmatpush2.bf16.msra.mxu0 0
        %480 = vmatprep.subr.bf16.mxu0 0
        %481 = vmatpush2.bf16.msra.mxu0 0
        %482 = vmatprep.subr.bf16.mxu0 0
        %483 = vmatpush2.bf16.msra.mxu0 0
        %484 = vmatprep.subr.bf16.mxu0 0
        %485 = vmatpush2.bf16.msra.mxu0 0
        %486 = vmatprep.mubr.bf16.mxu0 0
        %487 = vmatmul.mubr.bf16.gmra.mxu0 %v449
        %v488 = vpop.f32.mrf.mxu0
        %v489 = vadd.f32 0.0, %v488
        %v490 = vpop.f32.mrf.mxu0
        %v491 = vpop.f32.mrf.mxu0
        %v492 = vadd.f32 0.0, %v491
        %v493 = vpop.f32.mrf.mxu0
        %494 = vdwg.mxu0
        %v495 = vadd.f32 %v430, %v489
        %v496 = vadd.f32 %v433, %v492
        %s497 = scalar_lea.vmem %s244, 24
        %v498 = vld [vmem:[%s497] sm:$0xf]
        %v499 = vld [vmem:[%s497 + $0x4] sm:$0x3]
        %vm500 = vsmask.f32 6400
        %v501 = vrot.slane %v320, 1
        %v502 = vrot.slane %v322, 2
        %v503 = vor.u32 %v501, %v502
        %v504 = vshrl.u32 %v317, 16
        %v506 = vrot.slane %v504, 1
        %v507 = vrot.slane %v327, 2
        %v508 = vor.u32 %v506, %v507
        %v509 = vsel %vm500, %v503, %v508
        %v512 = vunpack.c.l.b16 %v498
        %v513 = vunpack.c.l.b16 %v499
        %v514 = vpack.c.b16 %v513, %v512
        %v516 = vsel %vm336, %v509, 0
        %v519 = vsel %vm340, %v514, 0
        %521 = vmatprep.subr.bf16.mxu0 0
        %522 = vmatpush1.bf16.msra.mxu0 0
        %523 = vmatprep.subr.bf16.mxu0 0
        %524 = vmatpush1.bf16.msra.mxu0 0
        %525 = vmatprep.subr.bf16.mxu0 0
        %526 = vmatpush1.bf16.msra.mxu0 0
        %527 = vmatprep.subr.bf16.mxu0 0
        %528 = vmatpush1.bf16.msra.mxu0 0
        %529 = vmatprep.subr.bf16.mxu0 0
        %530 = vmatpush1.bf16.msra.mxu0 0
        %531 = vmatprep.subr.bf16.mxu0 0
        %532 = vmatpush1.bf16.msra.mxu0 0
        %533 = vmatprep.subr.bf16.mxu0 0
        %534 = vmatpush1.bf16.msra.mxu0 0
        %535 = vmatprep.subr.bf16.mxu0 0
        %536 = vmatpush1.bf16.msra.mxu0 %v519
        %537 = vmatprep.subr.bf16.mxu0 0
        %538 = vmatpush2.bf16.msra.mxu0 0
        %539 = vmatprep.subr.bf16.mxu0 0
        %540 = vmatpush2.bf16.msra.mxu0 0
        %541 = vmatprep.subr.bf16.mxu0 0
        %542 = vmatpush2.bf16.msra.mxu0 0
        %543 = vmatprep.subr.bf16.mxu0 0
        %544 = vmatpush2.bf16.msra.mxu0 0
        %545 = vmatprep.subr.bf16.mxu0 0
        %546 = vmatpush2.bf16.msra.mxu0 0
        %547 = vmatprep.subr.bf16.mxu0 0
        %548 = vmatpush2.bf16.msra.mxu0 0
        %549 = vmatprep.subr.bf16.mxu0 0
        %550 = vmatpush2.bf16.msra.mxu0 0
        %551 = vmatprep.subr.bf16.mxu0 0
        %552 = vmatpush2.bf16.msra.mxu0 0
        %553 = vmatprep.mubr.bf16.mxu0 0
        %554 = vmatmul.mubr.bf16.gmra.mxu0 %v516
        %v555 = vpop.f32.mrf.mxu0
        %v556 = vadd.f32 0.0, %v555
        %v557 = vpop.f32.mrf.mxu0
        %v558 = vpop.f32.mrf.mxu0
        %v559 = vadd.f32 0.0, %v558
        %v560 = vpop.f32.mrf.mxu0
        %561 = vdwg.mxu0
        %v562 = vadd.f32 %v495, %v556
        %v563 = vadd.f32 %v496, %v559
        %s564 = smul.u32 %s294, 16
        %s565 = scalar_lea.vmem %s254, %s564
        %v566 = vld [vmem:[%s565] sm:$0xff]
        %v567 = vld [vmem:[%s565 + $0x8] sm:$0xff]
        %v568 = vadd.f32 %v566, %v562
        %v569 = vadd.f32 %v567, %v563
        %570 = vst [vmem:[%s565] sm:$0xff] %v568
        %571 = vst [vmem:[%s565 + $0x8] sm:$0xff] %v569
      $region41: #{pose_cnn_forward.8} parent=31 // loop_footer
        %s298 = sadd.s32 1, %s294
      $region42: #{pose_cnn_forward.8} parent=31 // loop_footer_branch
        %293 = sbr.rel target = $region38
      $region43: #{pose_cnn_forward.8} parent=31 // loop_exit
        _
      %p572 = scmp.eq.s32.totalorder %s21, 6
      // Predicated region
      $region44: #{pose_cnn_forward.8} parent=31 // pred_check
        %p573 = pneg %p572
      $region45: #{pose_cnn_forward.8} parent=31 // pred_check_branch
        %575 = sbr.rel (%p573) target = $region47
      $region46: #{pose_cnn_forward.8} parent=31 // pred_region
        %v576 = vld [vmem:[%s254] sm:$0xff]
        %v577 = vld [vmem:[%s254 + $0x8] sm:$0xff]
        %v578 = vld [vmem:[%s254 + $0x10] sm:$0xff]
        %v579 = vld [vmem:[%s254 + $0x18] sm:$0xff]
        %v580 = vld [vmem:[%s254 + $0x20] sm:$0xff]
        %v581 = vld [vmem:[%s254 + $0x28] sm:$0xff]
        %v582 = vld [vmem:[%s254 + $0x30] sm:$0xff]
        %v583 = vld [vmem:[%s254 + $0x38] sm:$0xff]
        %v584 = vld [vmem:[%s254 + $0x40] sm:$0xff]
        %v585 = vld [vmem:[%s254 + $0x48] sm:$0xff]
        %v586 = vld [vmem:[%s254 + $0x50] sm:$0xff]
        %v587 = vld [vmem:[%s254 + $0x58] sm:$0xff]
        %v588 = vld [vmem:[%s254 + $0x60] sm:$0xff]
        %v589 = vld [vmem:[%s254 + $0x68] sm:$0xff]
        %v590 = vld [vmem:[%s254 + $0x70] sm:$0xff]
        %v591 = vld [vmem:[%s254 + $0x78] sm:$0xff]
        %v592 = vld [vmem:[%s254 + $0x80] sm:$0xff]
        %v593 = vld [vmem:[%s254 + $0x88] sm:$0xff]
        %v594 = vld [vmem:[%s254 + $0x90] sm:$0xff]
        %v595 = vld [vmem:[%s254 + $0x98] sm:$0xff]
        %v596 = vld [vmem:[%s254 + $0xa0] sm:$0xff]
        %v597 = vld [vmem:[%s254 + $0xa8] sm:$0xff]
        %v598 = vld [vmem:[%s254 + $0xb0] sm:$0xff]
        %v599 = vld [vmem:[%s254 + $0xb8] sm:$0xff]
        %v600 = vld [vmem:[%s254 + $0xc0] sm:$0xff]
        %v601 = vld [vmem:[%s254 + $0xc8] sm:$0xff]
        %v602 = vld [vmem:[%s254 + $0xd0] sm:$0xff]
        %v603 = vld [vmem:[%s254 + $0xd8] sm:$0xff]
        %v604 = vld [vmem:[%s254 + $0xe0] sm:$0xff]
        %v605 = vld [vmem:[%s254 + $0xe8] sm:$0xff]
        %v606 = vld [vmem:[%s254 + $0xf0] sm:$0xff]
        %v607 = vld [vmem:[%s254 + $0xf8] sm:$0xff]
        %v608 = vld [vmem:[%s2] sm:$0x1]
        %v610 = vlaneseq
        %v611 = vshrl.u32 %v610, 7
        %v612 = vsub.s32 0, %v611
        %v613 = vrot.slane %v608, %v612
        %v615 = vadd.f32 %v576, %v613
        %v616 = vadd.f32 %v577, %v613
        %v617 = vadd.f32 %v578, %v613
        %v618 = vadd.f32 %v579, %v613
        %v619 = vadd.f32 %v580, %v613
        %v620 = vadd.f32 %v581, %v613
        %v621 = vadd.f32 %v582, %v613
        %v622 = vadd.f32 %v583, %v613
        %v623 = vadd.f32 %v584, %v613
        %v624 = vadd.f32 %v585, %v613
        %v625 = vadd.f32 %v586, %v613
        %v626 = vadd.f32 %v587, %v613
        %v627 = vadd.f32 %v588, %v613
        %v628 = vadd.f32 %v589, %v613
        %v629 = vadd.f32 %v590, %v613
        %v630 = vadd.f32 %v591, %v613
        %v631 = vadd.f32 %v592, %v613
        %v632 = vadd.f32 %v593, %v613
        %v633 = vadd.f32 %v594, %v613
        %v634 = vadd.f32 %v595, %v613
        %v635 = vadd.f32 %v596, %v613
        %v636 = vadd.f32 %v597, %v613
        %v637 = vadd.f32 %v598, %v613
        %v638 = vadd.f32 %v599, %v613
        %v639 = vadd.f32 %v600, %v613
        %v640 = vadd.f32 %v601, %v613
        %v641 = vadd.f32 %v602, %v613
        %v642 = vadd.f32 %v603, %v613
        %v643 = vadd.f32 %v604, %v613
        %v644 = vadd.f32 %v605, %v613
        %v645 = vadd.f32 %v606, %v613
        %v646 = vadd.f32 %v607, %v613
        %v647 = vmax.f32 %v615, 0.0
        %v648 = vmax.f32 %v616, 0.0
        %v649 = vmax.f32 %v617, 0.0
        %v650 = vmax.f32 %v618, 0.0
        %v651 = vmax.f32 %v619, 0.0
        %v652 = vmax.f32 %v620, 0.0
        %v653 = vmax.f32 %v621, 0.0
        %v654 = vmax.f32 %v622, 0.0
        %v655 = vmax.f32 %v623, 0.0
        %v656 = vmax.f32 %v624, 0.0
        %v657 = vmax.f32 %v625, 0.0
        %v658 = vmax.f32 %v626, 0.0
        %v659 = vmax.f32 %v627, 0.0
        %v660 = vmax.f32 %v628, 0.0
        %v661 = vmax.f32 %v629, 0.0
        %v662 = vmax.f32 %v630, 0.0
        %v663 = vmax.f32 %v631, 0.0
        %v664 = vmax.f32 %v632, 0.0
        %v665 = vmax.f32 %v633, 0.0
        %v666 = vmax.f32 %v634, 0.0
        %v667 = vmax.f32 %v635, 0.0
        %v668 = vmax.f32 %v636, 0.0
        %v669 = vmax.f32 %v637, 0.0
        %v670 = vmax.f32 %v638, 0.0
        %v671 = vmax.f32 %v639, 0.0
        %v672 = vmax.f32 %v640, 0.0
        %v673 = vmax.f32 %v641, 0.0
        %v674 = vmax.f32 %v642, 0.0
        %v675 = vmax.f32 %v643, 0.0
        %v676 = vmax.f32 %v644, 0.0
        %v677 = vmax.f32 %v645, 0.0
        %v678 = vmax.f32 %v646, 0.0
        %679 = vst [vmem:[%s254] sm:$0xff] %v647
        %680 = vst [vmem:[%s254 + $0x8] sm:$0xff] %v648
        %681 = vst [vmem:[%s254 + $0x10] sm:$0xff] %v649
        %682 = vst [vmem:[%s254 + $0x18] sm:$0xff] %v650
        %683 = vst [vmem:[%s254 + $0x20] sm:$0xff] %v651
        %684 = vst [vmem:[%s254 + $0x28] sm:$0xff] %v652
        %685 = vst [vmem:[%s254 + $0x30] sm:$0xff] %v653
        %686 = vst [vmem:[%s254 + $0x38] sm:$0xff] %v654
        %687 = vst [vmem:[%s254 + $0x40] sm:$0xff] %v655
        %688 = vst [vmem:[%s254 + $0x48] sm:$0xff] %v656
        %689 = vst [vmem:[%s254 + $0x50] sm:$0xff] %v657
        %690 = vst [vmem:[%s254 + $0x58] sm:$0xff] %v658
        %691 = vst [vmem:[%s254 + $0x60] sm:$0xff] %v659
        %692 = vst [vmem:[%s254 + $0x68] sm:$0xff] %v660
        %693 = vst [vmem:[%s254 + $0x70] sm:$0xff] %v661
        %694 = vst [vmem:[%s254 + $0x78] sm:$0xff] %v662
        %695 = vst [vmem:[%s254 + $0x80] sm:$0xff] %v663
        %696 = vst [vmem:[%s254 + $0x88] sm:$0xff] %v664
        %697 = vst [vmem:[%s254 + $0x90] sm:$0xff] %v665
        %698 = vst [vmem:[%s254 + $0x98] sm:$0xff] %v666
        %699 = vst [vmem:[%s254 + $0xa0] sm:$0xff] %v667
        %700 = vst [vmem:[%s254 + $0xa8] sm:$0xff] %v668
        %701 = vst [vmem:[%s254 + $0xb0] sm:$0xff] %v669
        %702 = vst [vmem:[%s254 + $0xb8] sm:$0xff] %v670
        %703 = vst [vmem:[%s254 + $0xc0] sm:$0xff] %v671
        %704 = vst [vmem:[%s254 + $0xc8] sm:$0xff] %v672
        %705 = vst [vmem:[%s254 + $0xd0] sm:$0xff] %v673
        %706 = vst [vmem:[%s254 + $0xd8] sm:$0xff] %v674
        %707 = vst [vmem:[%s254 + $0xe0] sm:$0xff] %v675
        %708 = vst [vmem:[%s254 + $0xe8] sm:$0xff] %v676
        %709 = vst [vmem:[%s254 + $0xf0] sm:$0xff] %v677
        %710 = vst [vmem:[%s254 + $0xf8] sm:$0xff] %v678
      $region47: #{pose_cnn_forward.8} parent=31 // pred_fallthru
        _
      %s711 = smul.u32 16, %s20
      %p712 = scmp.lt.s32.totalorder %s19, 1
      %s713 = scalar_select %p712, %s19, 1
      %p714 = scmp.lt.s32.totalorder %s711, 15
      %s715 = scalar_select %p714, %s711, 15
      %s716 = smul.addr %s715, 2
      %s717 = smul.addr %s713, 32
      %s718 = sadd.s32 %s716, %s717
      %s719 = smul.addr %s718, 8
      %s720 = scalar_lea.vmem %s3, %s719
      // Predicated region
      $region48: #{pose_cnn_forward.8} parent=31 // pred_check
        %p721 = pneg %p132
      $region49: #{pose_cnn_forward.8} parent=31 // pred_check_branch
        %723 = sbr.rel (%p721) target = $region51
      $region50: #{pose_cnn_forward.8} parent=31 // pred_region
        %s724 = smul.u32 16, %s20
      $region51: #{pose_cnn_forward.8} parent=31 // pred_fallthru
        _
    $region32: #{pose_cnn_forward.8} parent=5 // pred_fallthru
      _
    %p725 = scmp.le.s32.totalorder 2, %s9
    // Predicated region
    $region52: #{pose_cnn_forward.8} parent=5 // pred_check
      %p726 = pneg %p725
    $region53: #{pose_cnn_forward.8} parent=5 // pred_check_branch
      %728 = sbr.rel (%p726) target = $region55
    $region54: #{pose_cnn_forward.8} parent=5 // pred_region
      %s729 = ssub.s32 %s9, 2
      // Predicated region
      $region56: #{pose_cnn_forward.8} parent=54 // pred_check
        %p730 = pneg %p138
      $region57: #{pose_cnn_forward.8} parent=54 // pred_check_branch
        %732 = sbr.rel (%p730) target = $region59
      $region58: #{pose_cnn_forward.8} parent=54 // pred_region
        %s733 = smul.u32 16, %s23
        %p734 = scmp.lt.s32.totalorder %s22, 1
        %s735 = scalar_select %p734, %s22, 1
        %p736 = scmp.lt.s32.totalorder %s733, 15
        %s737 = scalar_select %p736, %s733, 15
        %s738 = smul.addr %s737, 2
        %s739 = smul.addr %s735, 32
        %s740 = sadd.s32 %s738, %s739
        %s741 = smul.addr %s740, 8
        %s742 = scalar_lea.vmem %s3, %s741
      $region59: #{pose_cnn_forward.8} parent=54 // pred_fallthru
        _
    $region55: #{pose_cnn_forward.8} parent=5 // pred_fallthru
      _
  $region6: #{pose_cnn_forward.8} parent=0 // loop_footer
    %s13 = sadd.s32 1, %s9
  $region7: #{pose_cnn_forward.8} parent=0 // loop_footer_branch
    %8 = sbr.rel target = $region3
  $region8: #{pose_cnn_forward.8} parent=0 // loop_exit
    _

// kernel: pose_cnn_forward.9
$region0: #{pose_cnn_forward.9}
  #allocation0 [shape = 'u32[]', space=smem, size = 0x4, offset = 0x4, fixed_abs, tag = 'smem constant byte address 0x4 - core index']
  #allocation1 [shape = 'u32[144,128]{1,0:T(1,128)}', space=vmem, size = 0x12000, scoped, tag = 'internal scratch']
  %s0 = inlined_call_operand.vmem [shape: bf16[10,8,10,256], index: 0, kind: input, shape index: {}]
  %s1 = inlined_call_operand.vmem [shape: bf16[5,3,256,128], index: 1, kind: input, shape index: {}]
  %s2 = inlined_call_operand.vmem [shape: f32[1,128], index: 2, kind: input, shape index: {}]
  %s3 = inlined_call_operand.vmem [shape: f32[2,8,8,128], index: 3, kind: output, shape index: {}]
  %s4 = sld [smem:[#allocation0]]
  $region60: #{pose_cnn_forward.9} parent=0
    _
  %s6 = ssub.s32 1, %s4
  %s7 = scalar_select 0, %s6, %s4
  loop: start=0, step=1, limit=12
  $region2: #{pose_cnn_forward.9} parent=0 // loop_pre_header
    _
  $region3: #{pose_cnn_forward.9} parent=0 // loop_header
    %s9 = sphi 0, %s13
    %p10 = scmp.ge.s32.totalorder %s9, 12
    %s16 = sphi 0, %s35
    %s17 = sphi 0, %s31
    %s18 = sphi 0, %s27
    %s19 = sphi 0, %s16
    %s20 = sphi 0, %s17
    %s21 = sphi 0, %s18
    %s22 = sphi 0, %s19
    %s23 = sphi 0, %s20
    %s24 = sphi 0, %s21
    %s44 = sphi 0, %s46
    %s47 = sphi 0, %s44
    %s48 = sphi 0, %s47
    %s64 = sphi 0, %s48
    %s70 = sphi 0, %s72
    %s73 = sphi 0, %s70
    %s74 = sphi 0, %s73
    %s90 = sphi 0, %s74
    %s94 = sphi 0, %s94
    %s96 = sphi 0, %s94
    %s97 = sphi 0, %s96
    %s111 = sphi 0, %s97
    %s119 = sphi 0, %s121
    %s122 = sphi 0, %s119
    %s123 = sphi 0, %s122
    %s139 = sphi 0, %s123
  $region4: #{pose_cnn_forward.9} parent=0 // loop_header_branch
    %12 = sbr.rel (%p10) target = $region8
  $region5: #{pose_cnn_forward.9} parent=0 // loop_body
    %s14 = ssub.s32 %s9, 1
    %s15 = ssub.s32 %s9, 2
    %s25 = sadd.s32 1, %s18
    %p26 = scmp.ge.s32.totalorder %s25, 5
    %s27 = scalar_select %p26, 0, %s25
    %s28 = sadd.s32 1, %s17
    %s29 = scalar_select %p26, %s28, %s17
    %p30 = scmp.ge.s32.totalorder %s29, 1
    %s31 = scalar_select %p30, 0, %s29
    %s32 = sadd.s32 1, %s16
    %s33 = scalar_select %p30, %s32, %s16
    %p34 = scmp.ge.s32.totalorder %s33, 2
    %s35 = scalar_select %p34, 0, %s33
    %s36 = smul.u32 %s18, 2
    %s37 = sadd.s32 %s36, %s16
    %s38 = smul.u32 %s27, 2
    %s39 = sadd.s32 %s38, %s35
    %s40 = ssub.s32 %s37, %s39
    %s41 = ssub.s32 %s17, %s31
    %s42 = sor.u32 %s40, %s41
    %p43 = scmp.eq.s32.totalorder %s42, 0
    %s45 = sadd.s32 %s44, 1
    %s46 = scalar_select %p43, %s44, %s45
    %p49 = pneg %p43
    %p50 = scmp.eq.s32.totalorder %s9, 9
    %p51 = por %p49, %p50
    %p52 = scmp.ne.s32.totalorder %s44, %s47
    %p53 = scmp.eq.s32.totalorder %s9, 0
    %p54 = por %p52, %p53
    %p55 = scmp.ne.s32.totalorder %s44, %s47
    %p56 = scmp.eq.s32.totalorder %s14, 9
    %p57 = por %p55, %p56
    %p58 = scmp.ne.s32.totalorder %s47, %s48
    %p59 = scmp.eq.s32.totalorder %s14, 0
    %p60 = por %p58, %p59
    %p61 = scmp.ne.s32.totalorder %s47, %s48
    %p62 = scmp.eq.s32.totalorder %s15, 9
    %p63 = por %p61, %p62
    %p65 = scmp.ne.s32.totalorder %s48, %s64
    %p66 = scmp.eq.s32.totalorder %s15, 0
    %p67 = por %p65, %p66
    %s68 = ssub.s32 %s18, %s27
    %p69 = scmp.eq.s32.totalorder %s68, 0
    %s71 = sadd.s32 %s70, 1
    %s72 = scalar_select %p69, %s70, %s71
    %p75 = pneg %p69
    %p76 = scmp.eq.s32.totalorder %s9, 9
    %p77 = por %p75, %p76
    %p78 = scmp.ne.s32.totalorder %s70, %s73
    %p79 = scmp.eq.s32.totalorder %s9, 0
    %p80 = por %p78, %p79
    %p81 = scmp.ne.s32.totalorder %s70, %s73
    %p82 = scmp.eq.s32.totalorder %s14, 9
    %p83 = por %p81, %p82
    %p84 = scmp.ne.s32.totalorder %s73, %s74
    %p85 = scmp.eq.s32.totalorder %s14, 0
    %p86 = por %p84, %p85
    %p87 = scmp.ne.s32.totalorder %s73, %s74
    %p88 = scmp.eq.s32.totalorder %s15, 9
    %p89 = por %p87, %p88
    %p91 = scmp.ne.s32.totalorder %s74, %s90
    %p92 = scmp.eq.s32.totalorder %s15, 0
    %p93 = por %p91, %p92
    %s95 = sadd.s32 %s94, 1
    %p98 = scmp.eq.s32.totalorder %s9, 9
    %p99 = scmp.ne.s32.totalorder %s94, %s96
    %p100 = scmp.eq.s32.totalorder %s9, 0
    %p101 = por %p99, %p100
    %p102 = scmp.ne.s32.totalorder %s94, %s96
    %p103 = scmp.eq.s32.totalorder %s14, 9
    %p104 = por %p102, %p103
    %p105 = scmp.ne.s32.totalorder %s96, %s97
    %p106 = scmp.eq.s32.totalorder %s14, 0
    %p107 = por %p105, %p106
    %p108 = scmp.ne.s32.totalorder %s96, %s97
    %p109 = scmp.eq.s32.totalorder %s15, 9
    %p110 = por %p108, %p109
    %p112 = scmp.ne.s32.totalorder %s97, %s111
    %p113 = scmp.eq.s32.totalorder %s15, 0
    %p114 = por %p112, %p113
    %s115 = ssub.s32 %s16, %s35
    %s116 = ssub.s32 %s17, %s31
    %s117 = sor.u32 %s115, %s116
    %p118 = scmp.eq.s32.totalorder %s117, 0
    %s120 = sadd.s32 %s119, 1
    %s121 = scalar_select %p118, %s119, %s120
    %p124 = pneg %p118
    %p125 = scmp.eq.s32.totalorder %s9, 9
    %p126 = por %p124, %p125
    %p127 = scmp.ne.s32.totalorder %s119, %s122
    %p128 = scmp.eq.s32.totalorder %s9, 0
    %p129 = por %p127, %p128
    %p130 = scmp.ne.s32.totalorder %s119, %s122
    %p131 = scmp.eq.s32.totalorder %s14, 9
    %p132 = por %p130, %p131
    %p133 = scmp.ne.s32.totalorder %s122, %s123
    %p134 = scmp.eq.s32.totalorder %s14, 0
    %p135 = por %p133, %p134
    %p136 = scmp.ne.s32.totalorder %s122, %s123
    %p137 = scmp.eq.s32.totalorder %s15, 9
    %p138 = por %p136, %p137
    %p140 = scmp.ne.s32.totalorder %s123, %s139
    %p141 = scmp.eq.s32.totalorder %s15, 0
    %p142 = por %p140, %p141
    %p143 = scmp.le.s32.totalorder 1, %s9
    %p144 = scmp.lt.s32.totalorder %s9, 11
    %p145 = pnand %p143, %p144
    %p146 = pneg %p145
    // Predicated region
    $region9: #{pose_cnn_forward.9} parent=5 // pred_check
      _
    $region10: #{pose_cnn_forward.9} parent=5 // pred_check_branch
      %148 = sbr.rel (%p145) target = $region12
    $region11: #{pose_cnn_forward.9} parent=5 // pred_region
      %s149 = ssub.s32 %s9, 1
      // Predicated region
      $region13: #{pose_cnn_forward.9} parent=11 // pred_check
        %p150 = pneg %p107
      $region14: #{pose_cnn_forward.9} parent=11 // pred_check_branch
        %152 = sbr.rel (%p150) target = $region16
      $region15: #{pose_cnn_forward.9} parent=11 // pred_region
        _
      $region16: #{pose_cnn_forward.9} parent=11 // pred_fallthru
        _
    $region12: #{pose_cnn_forward.9} parent=5 // pred_fallthru
      _
    %p153 = scmp.lt.s32.totalorder %s9, 10
    // Predicated region
    $region17: #{pose_cnn_forward.9} parent=5 // pred_check
      %p154 = pneg %p153
    $region18: #{pose_cnn_forward.9} parent=5 // pred_check_branch
      %156 = sbr.rel (%p154) target = $region20
    $region19: #{pose_cnn_forward.9} parent=5 // pred_region
      // Predicated region
      $region21: #{pose_cnn_forward.9} parent=19 // pred_check
        %p157 = pneg %p54
      $region22: #{pose_cnn_forward.9} parent=19 // pred_check_branch
        %159 = sbr.rel (%p157) target = $region24
      $region23: #{pose_cnn_forward.9} parent=19 // pred_region
        %s160 = smul.u32 %s18, 2
        %s161 = sadd.s32 %s160, %s16
        %s162 = smul.u32 8, %s17
        %p163 = scmp.lt.s32.totalorder %s161, 9
        %s164 = scalar_select %p163, %s161, 9
        %p165 = scmp.lt.s32.totalorder %s162, 7
        %s166 = scalar_select %p165, %s162, 7
        %s167 = smul.addr %s166, 4
        %s168 = smul.addr %s164, 32
        %s169 = sadd.s32 %s167, %s168
        %s170 = smul.addr %s169, 4
        %s171 = scalar_lea.vmem %s0, %s170
        %s172 = smul.u32 %s18, 2
        %s173 = sadd.s32 %s172, %s16
        %s174 = smul.u32 8, %s17
      $region24: #{pose_cnn_forward.9} parent=19 // pred_fallthru
        _
      // Predicated region
      $region25: #{pose_cnn_forward.9} parent=19 // pred_check
        %p175 = pneg %p80
      $region26: #{pose_cnn_forward.9} parent=19 // pred_check_branch
        %177 = sbr.rel (%p175) target = $region28
      $region27: #{pose_cnn_forward.9} parent=19 // pred_region
        %p178 = scmp.lt.s32.totalorder %s18, 4
        %s179 = scalar_select %p178, %s18, 4
        %s180 = smul.addr %s179, 96
        %s181 = smul.addr %s180, 4
        %s182 = scalar_lea.vmem %s1, %s181
      $region28: #{pose_cnn_forward.9} parent=19 // pred_fallthru
        _
    $region20: #{pose_cnn_forward.9} parent=5 // pred_fallthru
      _
    %p183 = scmp.le.s32.totalorder 1, %s9
    %p184 = scmp.lt.s32.totalorder %s9, 11
    %p185 = pnand %p183, %p184
    %p186 = pneg %p185
    // Predicated region
    $region29: #{pose_cnn_forward.9} parent=5 // pred_check
      _
    $region30: #{pose_cnn_forward.9} parent=5 // pred_check_branch
      %188 = sbr.rel (%p185) target = $region32
    $region31: #{pose_cnn_forward.9} parent=5 // pred_region
      %s189 = ssub.s32 %s9, 1
      %s190 = smul.u32 %s21, 2
      %s191 = sadd.s32 %s190, %s19
      %s192 = smul.u32 8, %s20
      %p193 = scmp.lt.s32.totalorder %s191, 9
      %s194 = scalar_select %p193, %s191, 9
      %p195 = scmp.lt.s32.totalorder %s192, 7
      %s196 = scalar_select %p195, %s192, 7
      %s197 = smul.addr %s196, 4
      %s198 = smul.addr %s194, 32
      %s199 = sadd.s32 %s197, %s198
      %s200 = smul.addr %s199, 4
      %s201 = scalar_lea.vmem %s0, %s200
      %p202 = pneg %p60
      %p203 = pneg %p57
      %p204 = scmp.lt.s32.totalorder %s21, 4
      %s205 = scalar_select %p204, %s21, 4
      %s206 = smul.addr %s205, 96
      %s207 = smul.addr %s206, 4
      %s208 = scalar_lea.vmem %s1, %s207
      %p209 = pneg %p86
      %p210 = pneg %p83
      %p211 = pneg %p107
      %p212 = pneg %p104
      %p213 = pneg %p135
      %p214 = pneg %p132
      %s215 = smul.u32 8, %s20
      %p216 = scmp.lt.s32.totalorder %s19, 1
      %s217 = scalar_select %p216, %s19, 1
      %p218 = scmp.lt.s32.totalorder %s215, 7
      %s219 = scalar_select %p218, %s215, 7
      %s220 = smul.addr %s217, 8
      %s221 = sadd.s32 %s219, %s220
      %s222 = smul.addr %s221, 8
      %s223 = scalar_lea.vmem %s3, %s222
      %s224 = smul.u32 %s21, 2
      %s225 = sadd.s32 %s224, %s19
      %s226 = smul.u32 8, %s20
      %p227 = scmp.lt.s32.totalorder %s225, 9
      %s228 = scalar_select %p227, %s225, 9
      %p229 = scmp.lt.s32.totalorder %s226, 7
      %s230 = scalar_select %p229, %s226, 7
      %s231 = smul.addr %s230, 4
      %s232 = smul.addr %s228, 32
      %s233 = sadd.s32 %s231, %s232
      %s234 = smul.addr %s233, 4
      %s235 = scalar_lea.vmem %s0, %s234
      %s236 = smul.u32 %s21, 2
      %s237 = sadd.s32 %s236, %s19
      %s238 = smul.u32 8, %s20
      %p239 = scmp.lt.s32.totalorder %s21, 4
      %s240 = scalar_select %p239, %s21, 4
      %s241 = smul.addr %s240, 96
      %s242 = smul.addr %s241, 4
      %s243 = scalar_lea.vmem %s1, %s242
      %s244 = smul.u32 8, %s20
      %p245 = scmp.lt.s32.totalorder %s19, 1
      %s246 = scalar_select %p245, %s19, 1
      %p247 = scmp.lt.s32.totalorder %s244, 7
      %s248 = scalar_select %p247, %s244, 7
      %s249 = smul.addr %s246, 8
      %s250 = sadd.s32 %s248, %s249
      %s251 = smul.addr %s250, 8
      %s252 = scalar_lea.vmem %s3, %s251
      %s253 = smul.u32 8, %s20
      %p255 = scmp.eq.s32.totalorder %s21, 0
      // Predicated region
      $region33: #{pose_cnn_forward.9} parent=31 // pred_check
        %p256 = pneg %p255
      $region34: #{pose_cnn_forward.9} parent=31 // pred_check_branch
        %258 = sbr.rel (%p256) target = $region36
      $region35: #{pose_cnn_forward.9} parent=31 // pred_region
        %259 = vst [vmem:[%s252] sm:$0xff] 0.0
        %260 = vst [vmem:[%s252 + $0x8] sm:$0xff] 0.0
        %261 = vst [vmem:[%s252 + $0x10] sm:$0xff] 0.0
        %262 = vst [vmem:[%s252 + $0x18] sm:$0xff] 0.0
        %263 = vst [vmem:[%s252 + $0x20] sm:$0xff] 0.0
        %264 = vst [vmem:[%s252 + $0x28] sm:$0xff] 0.0
        %265 = vst [vmem:[%s252 + $0x30] sm:$0xff] 0.0
        %266 = vst [vmem:[%s252 + $0x38] sm:$0xff] 0.0
      $region36: #{pose_cnn_forward.9} parent=31 // pred_fallthru
        _
      loop: start=0, step=1, limit=8
      $region37: #{pose_cnn_forward.9} parent=31 // loop_pre_header
        _
      $region38: #{pose_cnn_forward.9} parent=31 // loop_header
        %s268 = sphi 0, %s272
        %p269 = scmp.ge.s32.totalorder %s268, 8
      $region39: #{pose_cnn_forward.9} parent=31 // loop_header_branch
        %271 = sbr.rel (%p269) target = $region43
      $region40: #{pose_cnn_forward.9} parent=31 // loop_body
        %s273 = smul.u32 %s268, 4
        %s274 = smul.addr %s273, 4
        %s275 = scalar_lea.vmem %s235, %s274
        %v276 = vld [vmem:[%s275] sm:$0xff]
        %v277 = vld [vmem:[%s275 + $0x8] sm:$0x11]
        %v278 = vld [vmem:[%s243] sm:$0xf]
        %v279 = vld [vmem:[%s243 + $0x4] sm:$0xf]
        %v280 = vld [vmem:[%s243 + $0x8] sm:$0xf]
        %v281 = vld [vmem:[%s243 + $0xc] sm:$0xf]
        %v282 = vld [vmem:[%s243 + $0x10] sm:$0xf]
        %v283 = vld [vmem:[%s243 + $0x14] sm:$0xf]
        %v284 = vld [vmem:[%s243 + $0x18] sm:$0xf]
        %v285 = vld [vmem:[%s243 + $0x1c] sm:$0xf]
        %v286 = vld [vmem:[%s243 + $0x20] sm:$0xf]
        %v287 = vld [vmem:[%s243 + $0x24] sm:$0xf]
        %v288 = vld [vmem:[%s243 + $0x28] sm:$0xf]
        %v289 = vld [vmem:[%s243 + $0x2c] sm:$0xf]
        %v290 = vld [vmem:[%s243 + $0x30] sm:$0xf]
        %v291 = vld [vmem:[%s243 + $0x34] sm:$0xf]
        %v292 = vld [vmem:[%s243 + $0x38] sm:$0xf]
        %v293 = vld [vmem:[%s243 + $0x3c] sm:$0xf]
        %v294 = vld [vmem:[%s243 + $0x40] sm:$0xf]
        %v295 = vld [vmem:[%s243 + $0x44] sm:$0xf]
        %v296 = vld [vmem:[%s243 + $0x48] sm:$0xf]
        %v297 = vld [vmem:[%s243 + $0x4c] sm:$0xf]
        %v298 = vld [vmem:[%s243 + $0x50] sm:$0xf]
        %v299 = vld [vmem:[%s243 + $0x54] sm:$0xf]
        %v300 = vld [vmem:[%s243 + $0x58] sm:$0xf]
        %v301 = vld [vmem:[%s243 + $0x5c] sm:$0xf]
        %v302 = vld [vmem:[%s243 + $0x60] sm:$0xf]
        %v303 = vld [vmem:[%s243 + $0x64] sm:$0xf]
        %v304 = vld [vmem:[%s243 + $0x68] sm:$0xf]
        %v305 = vld [vmem:[%s243 + $0x6c] sm:$0xf]
        %v306 = vld [vmem:[%s243 + $0x70] sm:$0xf]
        %v307 = vld [vmem:[%s243 + $0x74] sm:$0xf]
        %v308 = vld [vmem:[%s243 + $0x78] sm:$0xf]
        %v309 = vld [vmem:[%s243 + $0x7c] sm:$0xf]
        %s310 = scalar_lea.vmem %s243, 128
        %v311 = vld [vmem:[%s310] sm:$0xf]
        %v312 = vld [vmem:[%s310 + $0x4] sm:$0xf]
        %v313 = vld [vmem:[%s310 + $0x8] sm:$0xf]
        %v314 = vld [vmem:[%s310 + $0xc] sm:$0xf]
        %v315 = vld [vmem:[%s310 + $0x10] sm:$0xf]
        %v316 = vld [vmem:[%s310 + $0x14] sm:$0xf]
        %v317 = vld [vmem:[%s310 + $0x18] sm:$0xf]
        %v318 = vld [vmem:[%s310 + $0x1c] sm:$0xf]
        %v319 = vld [vmem:[%s310 + $0x20] sm:$0xf]
        %v320 = vld [vmem:[%s310 + $0x24] sm:$0xf]
        %v321 = vld [vmem:[%s310 + $0x28] sm:$0xf]
        %v322 = vld [vmem:[%s310 + $0x2c] sm:$0xf]
        %v323 = vld [vmem:[%s310 + $0x30] sm:$0xf]
        %v324 = vld [vmem:[%s310 + $0x34] sm:$0xf]
        %v325 = vld [vmem:[%s310 + $0x38] sm:$0xf]
        %v326 = vld [vmem:[%s310 + $0x3c] sm:$0xf]
        %v327 = vld [vmem:[%s310 + $0x40] sm:$0xf]
        %v328 = vld [vmem:[%s310 + $0x44] sm:$0xf]
        %v329 = vld [vmem:[%s310 + $0x48] sm:$0xf]
        %v330 = vld [vmem:[%s310 + $0x4c] sm:$0xf]
        %v331 = vld [vmem:[%s310 + $0x50] sm:$0xf]
        %v332 = vld [vmem:[%s310 + $0x54] sm:$0xf]
        %v333 = vld [vmem:[%s310 + $0x58] sm:$0xf]
        %v334 = vld [vmem:[%s310 + $0x5c] sm:$0xf]
        %v335 = vld [vmem:[%s310 + $0x60] sm:$0xf]
        %v336 = vld [vmem:[%s310 + $0x64] sm:$0xf]
        %v337 = vld [vmem:[%s310 + $0x68] sm:$0xf]
        %v338 = vld [vmem:[%s310 + $0x6c] sm:$0xf]
        %v339 = vld [vmem:[%s310 + $0x70] sm:$0xf]
        %v340 = vld [vmem:[%s310 + $0x74] sm:$0xf]
        %v341 = vld [vmem:[%s310 + $0x78] sm:$0xf]
        %v342 = vld [vmem:[%s310 + $0x7c] sm:$0xf]
        %v345 = vunpack.c.l.b16 %v276
        %v346 = vunpack.c.h.b16 %v276
        %v347 = vunpack.c.l.b16 %v277
        %v348 = vunpack.c.h.b16 %v277
        %v349 = vpack.c.b16 %v347, %v345
        %v350 = vpack.c.b16 %v348, %v346
        %v352 = vshrl.u32 %v349, 16
        %v354 = vshll.u32 %v349, 16
        %v356 = vrot.slane %v354, 1
        %v357 = vor.u32 %v352, %v356
        %v359 = vshrl.u32 %v350, 16
        %v361 = vshll.u32 %v350, 16
        %v363 = vrot.slane %v361, 1
        %v364 = vor.u32 %v359, %v363
        %v399 = vunpack.c.l.b16 %v311
        %v400 = vunpack.c.l.b16 %v312
        %v401 = vunpack.c.l.b16 %v313
        %v402 = vunpack.c.l.b16 %v314
        %v403 = vunpack.c.l.b16 %v315
        %v404 = vunpack.c.l.b16 %v316
        %v405 = vunpack.c.l.b16 %v317
        %v406 = vunpack.c.l.b16 %v318
        %v407 = vunpack.c.l.b16 %v319
        %v408 = vunpack.c.l.b16 %v320
        %v409 = vunpack.c.l.b16 %v321
        %v410 = vunpack.c.l.b16 %v322
        %v411 = vunpack.c.l.b16 %v323
        %v412 = vunpack.c.l.b16 %v324
        %v413 = vunpack.c.l.b16 %v325
        %v414 = vunpack.c.l.b16 %v326
        %v415 = vunpack.c.l.b16 %v327
        %v416 = vunpack.c.l.b16 %v328
        %v417 = vunpack.c.l.b16 %v329
        %v418 = vunpack.c.l.b16 %v330
        %v419 = vunpack.c.l.b16 %v331
        %v420 = vunpack.c.l.b16 %v332
        %v421 = vunpack.c.l.b16 %v333
        %v422 = vunpack.c.l.b16 %v334
        %v423 = vunpack.c.l.b16 %v335
        %v424 = vunpack.c.l.b16 %v336
        %v425 = vunpack.c.l.b16 %v337
        %v426 = vunpack.c.l.b16 %v338
        %v427 = vunpack.c.l.b16 %v339
        %v428 = vunpack.c.l.b16 %v340
        %v429 = vunpack.c.l.b16 %v341
        %v430 = vunpack.c.l.b16 %v342
        %v431 = vpack.c.b16 %v400, %v399
        %v432 = vpack.c.b16 %v402, %v401
        %v433 = vpack.c.b16 %v404, %v403
        %v434 = vpack.c.b16 %v406, %v405
        %v435 = vpack.c.b16 %v408, %v407
        %v436 = vpack.c.b16 %v410, %v409
        %v437 = vpack.c.b16 %v412, %v411
        %v438 = vpack.c.b16 %v414, %v413
        %v439 = vpack.c.b16 %v416, %v415
        %v440 = vpack.c.b16 %v418, %v417
        %v441 = vpack.c.b16 %v420, %v419
        %v442 = vpack.c.b16 %v422, %v421
        %v443 = vpack.c.b16 %v424, %v423
        %v444 = vpack.c.b16 %v426, %v425
        %v445 = vpack.c.b16 %v428, %v427
        %v446 = vpack.c.b16 %v430, %v429
        %463 = vmatprep.subr.bf16.mxu0 0
        %464 = vmatpush1.bf16.msra.mxu0 %v438
        %465 = vmatprep.subr.bf16.mxu0 0
        %466 = vmatpush1.bf16.msra.mxu0 %v437
        %467 = vmatprep.subr.bf16.mxu0 0
        %468 = vmatpush1.bf16.msra.mxu0 %v436
        %469 = vmatprep.subr.bf16.mxu0 0
        %470 = vmatpush1.bf16.msra.mxu0 %v435
        %471 = vmatprep.subr.bf16.mxu0 0
        %472 = vmatpush1.bf16.msra.mxu0 %v434
        %473 = vmatprep.subr.bf16.mxu0 0
        %474 = vmatpush1.bf16.msra.mxu0 %v433
        %475 = vmatprep.subr.bf16.mxu0 0
        %476 = vmatpush1.bf16.msra.mxu0 %v432
        %477 = vmatprep.subr.bf16.mxu0 0
        %478 = vmatpush1.bf16.msra.mxu0 %v431
        %479 = vmatprep.subr.bf16.mxu0 0
        %480 = vmatpush2.bf16.msra.mxu0 %v446
        %481 = vmatprep.subr.bf16.mxu0 0
        %482 = vmatpush2.bf16.msra.mxu0 %v445
        %483 = vmatprep.subr.bf16.mxu0 0
        %484 = vmatpush2.bf16.msra.mxu0 %v444
        %485 = vmatprep.subr.bf16.mxu0 0
        %486 = vmatpush2.bf16.msra.mxu0 %v443
        %487 = vmatprep.subr.bf16.mxu0 0
        %488 = vmatpush2.bf16.msra.mxu0 %v442
        %489 = vmatprep.subr.bf16.mxu0 0
        %490 = vmatpush2.bf16.msra.mxu0 %v441
        %491 = vmatprep.subr.bf16.mxu0 0
        %492 = vmatpush2.bf16.msra.mxu0 %v440
        %493 = vmatprep.subr.bf16.mxu0 0
        %494 = vmatpush2.bf16.msra.mxu0 %v439
        %495 = vmatprep.mubr.bf16.mxu0 %v364
        %496 = vmatmul.mubr.bf16.gmra.mxu0 %v357
        %v497 = vpop.f32.mrf.mxu0
        %v498 = vadd.f32 0.0, %v497
        %v499 = vpop.f32.mrf.mxu0
        %v500 = vpop.f32.mrf.mxu0
        %v501 = vpop.f32.mrf.mxu0
        %502 = vdwg.mxu0
        %v503 = vpack.c.b16 %v345, %v345
        %v504 = vpack.c.b16 %v346, %v346
        %v539 = vunpack.c.l.b16 %v278
        %v540 = vunpack.c.l.b16 %v279
        %v541 = vunpack.c.l.b16 %v280
        %v542 = vunpack.c.l.b16 %v281
        %v543 = vunpack.c.l.b16 %v282
        %v544 = vunpack.c.l.b16 %v283
        %v545 = vunpack.c.l.b16 %v284
        %v546 = vunpack.c.l.b16 %v285
        %v547 = vunpack.c.l.b16 %v286
        %v548 = vunpack.c.l.b16 %v287
        %v549 = vunpack.c.l.b16 %v288
        %v550 = vunpack.c.l.b16 %v289
        %v551 = vunpack.c.l.b16 %v290
        %v552 = vunpack.c.l.b16 %v291
        %v553 = vunpack.c.l.b16 %v292
        %v554 = vunpack.c.l.b16 %v293
        %v555 = vunpack.c.l.b16 %v294
        %v556 = vunpack.c.l.b16 %v295
        %v557 = vunpack.c.l.b16 %v296
        %v558 = vunpack.c.l.b16 %v297
        %v559 = vunpack.c.l.b16 %v298
        %v560 = vunpack.c.l.b16 %v299
        %v561 = vunpack.c.l.b16 %v300
        %v562 = vunpack.c.l.b16 %v301
        %v563 = vunpack.c.l.b16 %v302
        %v564 = vunpack.c.l.b16 %v303
        %v565 = vunpack.c.l.b16 %v304
        %v566 = vunpack.c.l.b16 %v305
        %v567 = vunpack.c.l.b16 %v306
        %v568 = vunpack.c.l.b16 %v307
        %v569 = vunpack.c.l.b16 %v308
        %v570 = vunpack.c.l.b16 %v309
        %v571 = vpack.c.b16 %v540, %v539
        %v572 = vpack.c.b16 %v542, %v541
        %v573 = vpack.c.b16 %v544, %v543
        %v574 = vpack.c.b16 %v546, %v545
        %v575 = vpack.c.b16 %v548, %v547
        %v576 = vpack.c.b16 %v550, %v549
        %v577 = vpack.c.b16 %v552, %v551
        %v578 = vpack.c.b16 %v554, %v553
        %v579 = vpack.c.b16 %v556, %v555
        %v580 = vpack.c.b16 %v558, %v557
        %v581 = vpack.c.b16 %v560, %v559
        %v582 = vpack.c.b16 %v562, %v561
        %v583 = vpack.c.b16 %v564, %v563
        %v584 = vpack.c.b16 %v566, %v565
        %v585 = vpack.c.b16 %v568, %v567
        %v586 = vpack.c.b16 %v570, %v569
        %603 = vmatprep.subr.bf16.mxu0 0
        %604 = vmatpush1.bf16.msra.mxu0 %v578
        %605 = vmatprep.subr.bf16.mxu0 0
        %606 = vmatpush1.bf16.msra.mxu0 %v577
        %607 = vmatprep.subr.bf16.mxu0 0
        %608 = vmatpush1.bf16.msra.mxu0 %v576
        %609 = vmatprep.subr.bf16.mxu0 0
        %610 = vmatpush1.bf16.msra.mxu0 %v575
        %611 = vmatprep.subr.bf16.mxu0 0
        %612 = vmatpush1.bf16.msra.mxu0 %v574
        %613 = vmatprep.subr.bf16.mxu0 0
        %614 = vmatpush1.bf16.msra.mxu0 %v573
        %615 = vmatprep.subr.bf16.mxu0 0
        %616 = vmatpush1.bf16.msra.mxu0 %v572
        %617 = vmatprep.subr.bf16.mxu0 0
        %618 = vmatpush1.bf16.msra.mxu0 %v571
        %619 = vmatprep.subr.bf16.mxu0 0
        %620 = vmatpush2.bf16.msra.mxu0 %v586
        %621 = vmatprep.subr.bf16.mxu0 0
        %622 = vmatpush2.bf16.msra.mxu0 %v585
        %623 = vmatprep.subr.bf16.mxu0 0
        %624 = vmatpush2.bf16.msra.mxu0 %v584
        %625 = vmatprep.subr.bf16.mxu0 0
        %626 = vmatpush2.bf16.msra.mxu0 %v583
        %627 = vmatprep.subr.bf16.mxu0 0
        %628 = vmatpush2.bf16.msra.mxu0 %v582
        %629 = vmatprep.subr.bf16.mxu0 0
        %630 = vmatpush2.bf16.msra.mxu0 %v581
        %631 = vmatprep.subr.bf16.mxu0 0
        %632 = vmatpush2.bf16.msra.mxu0 %v580
        %633 = vmatprep.subr.bf16.mxu0 0
        %634 = vmatpush2.bf16.msra.mxu0 %v579
        %635 = vmatprep.mubr.bf16.mxu0 %v504
        %636 = vmatmul.mubr.bf16.gmra.mxu0 %v503
        %v637 = vpop.f32.mrf.mxu0
        %v638 = vadd.f32 %v498, %v637
        %v639 = vpop.f32.mrf.mxu0
        %v640 = vpop.f32.mrf.mxu0
        %v641 = vpop.f32.mrf.mxu0
        %642 = vdwg.mxu0
        %s643 = scalar_lea.vmem %s243, 256
        %v644 = vld [vmem:[%s643] sm:$0xf]
        %v645 = vld [vmem:[%s643 + $0x4] sm:$0xf]
        %v646 = vld [vmem:[%s643 + $0x8] sm:$0xf]
        %v647 = vld [vmem:[%s643 + $0xc] sm:$0xf]
        %v648 = vld [vmem:[%s643 + $0x10] sm:$0xf]
        %v649 = vld [vmem:[%s643 + $0x14] sm:$0xf]
        %v650 = vld [vmem:[%s643 + $0x18] sm:$0xf]
        %v651 = vld [vmem:[%s643 + $0x1c] sm:$0xf]
        %v652 = vld [vmem:[%s643 + $0x20] sm:$0xf]
        %v653 = vld [vmem:[%s643 + $0x24] sm:$0xf]
        %v654 = vld [vmem:[%s643 + $0x28] sm:$0xf]
        %v655 = vld [vmem:[%s643 + $0x2c] sm:$0xf]
        %v656 = vld [vmem:[%s643 + $0x30] sm:$0xf]
        %v657 = vld [vmem:[%s643 + $0x34] sm:$0xf]
        %v658 = vld [vmem:[%s643 + $0x38] sm:$0xf]
        %v659 = vld [vmem:[%s643 + $0x3c] sm:$0xf]
        %v660 = vld [vmem:[%s643 + $0x40] sm:$0xf]
        %v661 = vld [vmem:[%s643 + $0x44] sm:$0xf]
        %v662 = vld [vmem:[%s643 + $0x48] sm:$0xf]
        %v663 = vld [vmem:[%s643 + $0x4c] sm:$0xf]
        %v664 = vld [vmem:[%s643 + $0x50] sm:$0xf]
        %v665 = vld [vmem:[%s643 + $0x54] sm:$0xf]
        %v666 = vld [vmem:[%s643 + $0x58] sm:$0xf]
        %v667 = vld [vmem:[%s643 + $0x5c] sm:$0xf]
        %v668 = vld [vmem:[%s643 + $0x60] sm:$0xf]
        %v669 = vld [vmem:[%s643 + $0x64] sm:$0xf]
        %v670 = vld [vmem:[%s643 + $0x68] sm:$0xf]
        %v671 = vld [vmem:[%s643 + $0x6c] sm:$0xf]
        %v672 = vld [vmem:[%s643 + $0x70] sm:$0xf]
        %v673 = vld [vmem:[%s643 + $0x74] sm:$0xf]
        %v674 = vld [vmem:[%s643 + $0x78] sm:$0xf]
        %v675 = vld [vmem:[%s643 + $0x7c] sm:$0xf]
        %v676 = vrot.slane %v349, 1
        %v677 = vrot.slane %v350, 1
        %v712 = vunpack.c.l.b16 %v644
        %v713 = vunpack.c.l.b16 %v645
        %v714 = vunpack.c.l.b16 %v646
        %v715 = vunpack.c.l.b16 %v647
        %v716 = vunpack.c.l.b16 %v648
        %v717 = vunpack.c.l.b16 %v649
        %v718 = vunpack.c.l.b16 %v650
        %v719 = vunpack.c.l.b16 %v651
        %v720 = vunpack.c.l.b16 %v652
        %v721 = vunpack.c.l.b16 %v653
        %v722 = vunpack.c.l.b16 %v654
        %v723 = vunpack.c.l.b16 %v655
        %v724 = vunpack.c.l.b16 %v656
        %v725 = vunpack.c.l.b16 %v657
        %v726 = vunpack.c.l.b16 %v658
        %v727 = vunpack.c.l.b16 %v659
        %v728 = vunpack.c.l.b16 %v660
        %v729 = vunpack.c.l.b16 %v661
        %v730 = vunpack.c.l.b16 %v662
        %v731 = vunpack.c.l.b16 %v663
        %v732 = vunpack.c.l.b16 %v664
        %v733 = vunpack.c.l.b16 %v665
        %v734 = vunpack.c.l.b16 %v666
        %v735 = vunpack.c.l.b16 %v667
        %v736 = vunpack.c.l.b16 %v668
        %v737 = vunpack.c.l.b16 %v669
        %v738 = vunpack.c.l.b16 %v670
        %v739 = vunpack.c.l.b16 %v671
        %v740 = vunpack.c.l.b16 %v672
        %v741 = vunpack.c.l.b16 %v673
        %v742 = vunpack.c.l.b16 %v674
        %v743 = vunpack.c.l.b16 %v675
        %v744 = vpack.c.b16 %v713, %v712
        %v745 = vpack.c.b16 %v715, %v714
        %v746 = vpack.c.b16 %v717, %v716
        %v747 = vpack.c.b16 %v719, %v718
        %v748 = vpack.c.b16 %v721, %v720
        %v749 = vpack.c.b16 %v723, %v722
        %v750 = vpack.c.b16 %v725, %v724
        %v751 = vpack.c.b16 %v727, %v726
        %v752 = vpack.c.b16 %v729, %v728
        %v753 = vpack.c.b16 %v731, %v730
        %v754 = vpack.c.b16 %v733, %v732
        %v755 = vpack.c.b16 %v735, %v734
        %v756 = vpack.c.b16 %v737, %v736
        %v757 = vpack.c.b16 %v739, %v738
        %v758 = vpack.c.b16 %v741, %v740
        %v759 = vpack.c.b16 %v743, %v742
        %776 = vmatprep.subr.bf16.mxu0 0
        %777 = vmatpush1.bf16.msra.mxu0 %v751
        %778 = vmatprep.subr.bf16.mxu0 0
        %779 = vmatpush1.bf16.msra.mxu0 %v750
        %780 = vmatprep.subr.bf16.mxu0 0
        %781 = vmatpush1.bf16.msra.mxu0 %v749
        %782 = vmatprep.subr.bf16.mxu0 0
        %783 = vmatpush1.bf16.msra.mxu0 %v748
        %784 = vmatprep.subr.bf16.mxu0 0
        %785 = vmatpush1.bf16.msra.mxu0 %v747
        %786 = vmatprep.subr.bf16.mxu0 0
        %787 = vmatpush1.bf16.msra.mxu0 %v746
        %788 = vmatprep.subr.bf16.mxu0 0
        %789 = vmatpush1.bf16.msra.mxu0 %v745
        %790 = vmatprep.subr.bf16.mxu0 0
        %791 = vmatpush1.bf16.msra.mxu0 %v744
        %792 = vmatprep.subr.bf16.mxu0 0
        %793 = vmatpush2.bf16.msra.mxu0 %v759
        %794 = vmatprep.subr.bf16.mxu0 0
        %795 = vmatpush2.bf16.msra.mxu0 %v758
        %796 = vmatprep.subr.bf16.mxu0 0
        %797 = vmatpush2.bf16.msra.mxu0 %v757
        %798 = vmatprep.subr.bf16.mxu0 0
        %799 = vmatpush2.bf16.msra.mxu0 %v756
        %800 = vmatprep.subr.bf16.mxu0 0
        %801 = vmatpush2.bf16.msra.mxu0 %v755
        %802 = vmatprep.subr.bf16.mxu0 0
        %803 = vmatpush2.bf16.msra.mxu0 %v754
        %804 = vmatprep.subr.bf16.mxu0 0
        %805 = vmatpush2.bf16.msra.mxu0 %v753
        %806 = vmatprep.subr.bf16.mxu0 0
        %807 = vmatpush2.bf16.msra.mxu0 %v752
        %808 = vmatprep.mubr.bf16.mxu0 %v677
        %809 = vmatmul.mubr.bf16.gmra.mxu0 %v676
        %v810 = vpop.f32.mrf.mxu0
        %v811 = vadd.f32 0.0, %v810
        %v812 = vpop.f32.mrf.mxu0
        %v813 = vpop.f32.mrf.mxu0
        %v814 = vpop.f32.mrf.mxu0
        %815 = vdwg.mxu0
        %v816 = vadd.f32 %v638, %v811
        %s817 = smul.u32 %s268, 8
        %s818 = scalar_lea.vmem %s252, %s817
        %v819 = vld [vmem:[%s818] sm:$0xff]
        %v820 = vadd.f32 %v819, %v816
        %821 = vst [vmem:[%s818] sm:$0xff] %v820
      $region41: #{pose_cnn_forward.9} parent=31 // loop_footer
        %s272 = sadd.s32 1, %s268
      $region42: #{pose_cnn_forward.9} parent=31 // loop_footer_branch
        %267 = sbr.rel target = $region38
      $region43: #{pose_cnn_forward.9} parent=31 // loop_exit
        _
      %p822 = scmp.eq.s32.totalorder %s21, 4
      // Predicated region
      $region44: #{pose_cnn_forward.9} parent=31 // pred_check
        %p823 = pneg %p822
      $region45: #{pose_cnn_forward.9} parent=31 // pred_check_branch
        %825 = sbr.rel (%p823) target = $region47
      $region46: #{pose_cnn_forward.9} parent=31 // pred_region
        %v826 = vld [vmem:[%s252] sm:$0xff]
        %v827 = vld [vmem:[%s252 + $0x8] sm:$0xff]
        %v828 = vld [vmem:[%s252 + $0x10] sm:$0xff]
        %v829 = vld [vmem:[%s252 + $0x18] sm:$0xff]
        %v830 = vld [vmem:[%s252 + $0x20] sm:$0xff]
        %v831 = vld [vmem:[%s252 + $0x28] sm:$0xff]
        %v832 = vld [vmem:[%s252 + $0x30] sm:$0xff]
        %v833 = vld [vmem:[%s252 + $0x38] sm:$0xff]
        %v834 = vld [vmem:[%s2] sm:$0x1]
        %v836 = vlaneseq
        %v837 = vshrl.u32 %v836, 7
        %v838 = vsub.s32 0, %v837
        %v839 = vrot.slane %v834, %v838
        %v841 = vadd.f32 %v826, %v839
        %v842 = vadd.f32 %v827, %v839
        %v843 = vadd.f32 %v828, %v839
        %v844 = vadd.f32 %v829, %v839
        %v845 = vadd.f32 %v830, %v839
        %v846 = vadd.f32 %v831, %v839
        %v847 = vadd.f32 %v832, %v839
        %v848 = vadd.f32 %v833, %v839
        %v849 = vmax.f32 %v841, 0.0
        %v850 = vmax.f32 %v842, 0.0
        %v851 = vmax.f32 %v843, 0.0
        %v852 = vmax.f32 %v844, 0.0
        %v853 = vmax.f32 %v845, 0.0
        %v854 = vmax.f32 %v846, 0.0
        %v855 = vmax.f32 %v847, 0.0
        %v856 = vmax.f32 %v848, 0.0
        %857 = vst [vmem:[%s252] sm:$0xff] %v849
        %858 = vst [vmem:[%s252 + $0x8] sm:$0xff] %v850
        %859 = vst [vmem:[%s252 + $0x10] sm:$0xff] %v851
        %860 = vst [vmem:[%s252 + $0x18] sm:$0xff] %v852
        %861 = vst [vmem:[%s252 + $0x20] sm:$0xff] %v853
        %862 = vst [vmem:[%s252 + $0x28] sm:$0xff] %v854
        %863 = vst [vmem:[%s252 + $0x30] sm:$0xff] %v855
        %864 = vst [vmem:[%s252 + $0x38] sm:$0xff] %v856
      $region47: #{pose_cnn_forward.9} parent=31 // pred_fallthru
        _
      %s865 = smul.u32 8, %s20
      %p866 = scmp.lt.s32.totalorder %s19, 1
      %s867 = scalar_select %p866, %s19, 1
      %p868 = scmp.lt.s32.totalorder %s865, 7
      %s869 = scalar_select %p868, %s865, 7
      %s870 = smul.addr %s867, 8
      %s871 = sadd.s32 %s869, %s870
      %s872 = smul.addr %s871, 8
      %s873 = scalar_lea.vmem %s3, %s872
      // Predicated region
      $region48: #{pose_cnn_forward.9} parent=31 // pred_check
        %p874 = pneg %p132
      $region49: #{pose_cnn_forward.9} parent=31 // pred_check_branch
        %876 = sbr.rel (%p874) target = $region51
      $region50: #{pose_cnn_forward.9} parent=31 // pred_region
        %s877 = smul.u32 8, %s20
      $region51: #{pose_cnn_forward.9} parent=31 // pred_fallthru
        _
    $region32: #{pose_cnn_forward.9} parent=5 // pred_fallthru
      _
    %p878 = scmp.le.s32.totalorder 2, %s9
    // Predicated region
    $region52: #{pose_cnn_forward.9} parent=5 // pred_check
      %p879 = pneg %p878
    $region53: #{pose_cnn_forward.9} parent=5 // pred_check_branch
      %881 = sbr.rel (%p879) target = $region55
    $region54: #{pose_cnn_forward.9} parent=5 // pred_region
      %s882 = ssub.s32 %s9, 2
      // Predicated region
      $region56: #{pose_cnn_forward.9} parent=54 // pred_check
        %p883 = pneg %p138
      $region57: #{pose_cnn_forward.9} parent=54 // pred_check_branch
        %885 = sbr.rel (%p883) target = $region59
      $region58: #{pose_cnn_forward.9} parent=54 // pred_region
        %s886 = smul.u32 8, %s23
        %p887 = scmp.lt.s32.totalorder %s22, 1
        %s888 = scalar_select %p887, %s22, 1
        %p889 = scmp.lt.s32.totalorder %s886, 7
        %s890 = scalar_select %p889, %s886, 7
        %s891 = smul.addr %s888, 8
        %s892 = sadd.s32 %s890, %s891
        %s893 = smul.addr %s892, 8
        %s894 = scalar_lea.vmem %s3, %s893
      $region59: #{pose_cnn_forward.9} parent=54 // pred_fallthru
        _
    $region55: #{pose_cnn_forward.9} parent=5 // pred_fallthru
      _
  $region6: #{pose_cnn_forward.9} parent=0 // loop_footer
    %s13 = sadd.s32 1, %s9
  $region7: #{pose_cnn_forward.9} parent=0 // loop_footer_branch
    %8 = sbr.rel target = $region3
  $region8: #{pose_cnn_forward.9} parent=0 // loop_exit
    _

// kernel: pose_cnn_forward.10
$region0: #{pose_cnn_forward.10}
  #allocation0 [shape = 'u32[]', space=smem, size = 0x4, offset = 0x4, fixed_abs, tag = 'smem constant byte address 0x4 - core index']
  #allocation1 [shape = 'u32[144,128]{1,0:T(1,128)}', space=vmem, size = 0x12000, scoped, tag = 'internal scratch']
  %s0 = inlined_call_operand.vmem [shape: bf16[6,4,5,256], index: 0, kind: input, shape index: {}]
  %s1 = inlined_call_operand.vmem [shape: bf16[3,2,256,128], index: 1, kind: input, shape index: {}]
  %s2 = inlined_call_operand.vmem [shape: f32[1,128], index: 2, kind: input, shape index: {}]
  %s3 = inlined_call_operand.vmem [shape: f32[2,4,4,128], index: 3, kind: output, shape index: {}]
  %s4 = sld [smem:[#allocation0]]
  $region60: #{pose_cnn_forward.10} parent=0
    _
  %s6 = ssub.s32 1, %s4
  %s7 = scalar_select 0, %s6, %s4
  loop: start=0, step=1, limit=8
  $region2: #{pose_cnn_forward.10} parent=0 // loop_pre_header
    _
  $region3: #{pose_cnn_forward.10} parent=0 // loop_header
    %s9 = sphi 0, %s13
    %p10 = scmp.ge.s32.totalorder %s9, 8
    %s16 = sphi 0, %s35
    %s17 = sphi 0, %s31
    %s18 = sphi 0, %s27
    %s19 = sphi 0, %s16
    %s20 = sphi 0, %s17
    %s21 = sphi 0, %s18
    %s22 = sphi 0, %s19
    %s23 = sphi 0, %s20
    %s24 = sphi 0, %s21
    %s44 = sphi 0, %s46
    %s47 = sphi 0, %s44
    %s48 = sphi 0, %s47
    %s64 = sphi 0, %s48
    %s70 = sphi 0, %s72
    %s73 = sphi 0, %s70
    %s74 = sphi 0, %s73
    %s90 = sphi 0, %s74
    %s94 = sphi 0, %s94
    %s96 = sphi 0, %s94
    %s97 = sphi 0, %s96
    %s111 = sphi 0, %s97
    %s119 = sphi 0, %s121
    %s122 = sphi 0, %s119
    %s123 = sphi 0, %s122
    %s139 = sphi 0, %s123
  $region4: #{pose_cnn_forward.10} parent=0 // loop_header_branch
    %12 = sbr.rel (%p10) target = $region8
  $region5: #{pose_cnn_forward.10} parent=0 // loop_body
    %s14 = ssub.s32 %s9, 1
    %s15 = ssub.s32 %s9, 2
    %s25 = sadd.s32 1, %s18
    %p26 = scmp.ge.s32.totalorder %s25, 3
    %s27 = scalar_select %p26, 0, %s25
    %s28 = sadd.s32 1, %s17
    %s29 = scalar_select %p26, %s28, %s17
    %p30 = scmp.ge.s32.totalorder %s29, 1
    %s31 = scalar_select %p30, 0, %s29
    %s32 = sadd.s32 1, %s16
    %s33 = scalar_select %p30, %s32, %s16
    %p34 = scmp.ge.s32.totalorder %s33, 2
    %s35 = scalar_select %p34, 0, %s33
    %s36 = smul.u32 %s18, 2
    %s37 = sadd.s32 %s36, %s16
    %s38 = smul.u32 %s27, 2
    %s39 = sadd.s32 %s38, %s35
    %s40 = ssub.s32 %s37, %s39
    %s41 = ssub.s32 %s17, %s31
    %s42 = sor.u32 %s40, %s41
    %p43 = scmp.eq.s32.totalorder %s42, 0
    %s45 = sadd.s32 %s44, 1
    %s46 = scalar_select %p43, %s44, %s45
    %p49 = pneg %p43
    %p50 = scmp.eq.s32.totalorder %s9, 5
    %p51 = por %p49, %p50
    %p52 = scmp.ne.s32.totalorder %s44, %s47
    %p53 = scmp.eq.s32.totalorder %s9, 0
    %p54 = por %p52, %p53
    %p55 = scmp.ne.s32.totalorder %s44, %s47
    %p56 = scmp.eq.s32.totalorder %s14, 5
    %p57 = por %p55, %p56
    %p58 = scmp.ne.s32.totalorder %s47, %s48
    %p59 = scmp.eq.s32.totalorder %s14, 0
    %p60 = por %p58, %p59
    %p61 = scmp.ne.s32.totalorder %s47, %s48
    %p62 = scmp.eq.s32.totalorder %s15, 5
    %p63 = por %p61, %p62
    %p65 = scmp.ne.s32.totalorder %s48, %s64
    %p66 = scmp.eq.s32.totalorder %s15, 0
    %p67 = por %p65, %p66
    %s68 = ssub.s32 %s18, %s27
    %p69 = scmp.eq.s32.totalorder %s68, 0
    %s71 = sadd.s32 %s70, 1
    %s72 = scalar_select %p69, %s70, %s71
    %p75 = pneg %p69
    %p76 = scmp.eq.s32.totalorder %s9, 5
    %p77 = por %p75, %p76
    %p78 = scmp.ne.s32.totalorder %s70, %s73
    %p79 = scmp.eq.s32.totalorder %s9, 0
    %p80 = por %p78, %p79
    %p81 = scmp.ne.s32.totalorder %s70, %s73
    %p82 = scmp.eq.s32.totalorder %s14, 5
    %p83 = por %p81, %p82
    %p84 = scmp.ne.s32.totalorder %s73, %s74
    %p85 = scmp.eq.s32.totalorder %s14, 0
    %p86 = por %p84, %p85
    %p87 = scmp.ne.s32.totalorder %s73, %s74
    %p88 = scmp.eq.s32.totalorder %s15, 5
    %p89 = por %p87, %p88
    %p91 = scmp.ne.s32.totalorder %s74, %s90
    %p92 = scmp.eq.s32.totalorder %s15, 0
    %p93 = por %p91, %p92
    %s95 = sadd.s32 %s94, 1
    %p98 = scmp.eq.s32.totalorder %s9, 5
    %p99 = scmp.ne.s32.totalorder %s94, %s96
    %p100 = scmp.eq.s32.totalorder %s9, 0
    %p101 = por %p99, %p100
    %p102 = scmp.ne.s32.totalorder %s94, %s96
    %p103 = scmp.eq.s32.totalorder %s14, 5
    %p104 = por %p102, %p103
    %p105 = scmp.ne.s32.totalorder %s96, %s97
    %p106 = scmp.eq.s32.totalorder %s14, 0
    %p107 = por %p105, %p106
    %p108 = scmp.ne.s32.totalorder %s96, %s97
    %p109 = scmp.eq.s32.totalorder %s15, 5
    %p110 = por %p108, %p109
    %p112 = scmp.ne.s32.totalorder %s97, %s111
    %p113 = scmp.eq.s32.totalorder %s15, 0
    %p114 = por %p112, %p113
    %s115 = ssub.s32 %s16, %s35
    %s116 = ssub.s32 %s17, %s31
    %s117 = sor.u32 %s115, %s116
    %p118 = scmp.eq.s32.totalorder %s117, 0
    %s120 = sadd.s32 %s119, 1
    %s121 = scalar_select %p118, %s119, %s120
    %p124 = pneg %p118
    %p125 = scmp.eq.s32.totalorder %s9, 5
    %p126 = por %p124, %p125
    %p127 = scmp.ne.s32.totalorder %s119, %s122
    %p128 = scmp.eq.s32.totalorder %s9, 0
    %p129 = por %p127, %p128
    %p130 = scmp.ne.s32.totalorder %s119, %s122
    %p131 = scmp.eq.s32.totalorder %s14, 5
    %p132 = por %p130, %p131
    %p133 = scmp.ne.s32.totalorder %s122, %s123
    %p134 = scmp.eq.s32.totalorder %s14, 0
    %p135 = por %p133, %p134
    %p136 = scmp.ne.s32.totalorder %s122, %s123
    %p137 = scmp.eq.s32.totalorder %s15, 5
    %p138 = por %p136, %p137
    %p140 = scmp.ne.s32.totalorder %s123, %s139
    %p141 = scmp.eq.s32.totalorder %s15, 0
    %p142 = por %p140, %p141
    %p143 = scmp.le.s32.totalorder 1, %s9
    %p144 = scmp.lt.s32.totalorder %s9, 7
    %p145 = pnand %p143, %p144
    %p146 = pneg %p145
    // Predicated region
    $region9: #{pose_cnn_forward.10} parent=5 // pred_check
      _
    $region10: #{pose_cnn_forward.10} parent=5 // pred_check_branch
      %148 = sbr.rel (%p145) target = $region12
    $region11: #{pose_cnn_forward.10} parent=5 // pred_region
      %s149 = ssub.s32 %s9, 1
      // Predicated region
      $region13: #{pose_cnn_forward.10} parent=11 // pred_check
        %p150 = pneg %p107
      $region14: #{pose_cnn_forward.10} parent=11 // pred_check_branch
        %152 = sbr.rel (%p150) target = $region16
      $region15: #{pose_cnn_forward.10} parent=11 // pred_region
        _
      $region16: #{pose_cnn_forward.10} parent=11 // pred_fallthru
        _
    $region12: #{pose_cnn_forward.10} parent=5 // pred_fallthru
      _
    %p153 = scmp.lt.s32.totalorder %s9, 6
    // Predicated region
    $region17: #{pose_cnn_forward.10} parent=5 // pred_check
      %p154 = pneg %p153
    $region18: #{pose_cnn_forward.10} parent=5 // pred_check_branch
      %156 = sbr.rel (%p154) target = $region20
    $region19: #{pose_cnn_forward.10} parent=5 // pred_region
      // Predicated region
      $region21: #{pose_cnn_forward.10} parent=19 // pred_check
        %p157 = pneg %p54
      $region22: #{pose_cnn_forward.10} parent=19 // pred_check_branch
        %159 = sbr.rel (%p157) target = $region24
      $region23: #{pose_cnn_forward.10} parent=19 // pred_region
        %s160 = smul.u32 %s18, 2
        %s161 = sadd.s32 %s160, %s16
        %s162 = smul.u32 4, %s17
        %p163 = scmp.lt.s32.totalorder %s161, 5
        %s164 = scalar_select %p163, %s161, 5
        %p165 = scmp.lt.s32.totalorder %s162, 3
        %s166 = scalar_select %p165, %s162, 3
        %s167 = smul.addr %s166, 2
        %s168 = smul.addr %s164, 8
        %s169 = sadd.s32 %s167, %s168
        %s170 = smul.addr %s169, 4
        %s171 = scalar_lea.vmem %s0, %s170
        %s172 = smul.u32 %s18, 2
        %s173 = sadd.s32 %s172, %s16
        %s174 = smul.u32 4, %s17
      $region24: #{pose_cnn_forward.10} parent=19 // pred_fallthru
        _
      // Predicated region
      $region25: #{pose_cnn_forward.10} parent=19 // pred_check
        %p175 = pneg %p80
      $region26: #{pose_cnn_forward.10} parent=19 // pred_check_branch
        %177 = sbr.rel (%p175) target = $region28
      $region27: #{pose_cnn_forward.10} parent=19 // pred_region
        %p178 = scmp.lt.s32.totalorder %s18, 2
        %s179 = scalar_select %p178, %s18, 2
        %s180 = smul.addr %s179, 64
        %s181 = smul.addr %s180, 4
        %s182 = scalar_lea.vmem %s1, %s181
      $region28: #{pose_cnn_forward.10} parent=19 // pred_fallthru
        _
    $region20: #{pose_cnn_forward.10} parent=5 // pred_fallthru
      _
    %p183 = scmp.le.s32.totalorder 1, %s9
    %p184 = scmp.lt.s32.totalorder %s9, 7
    %p185 = pnand %p183, %p184
    %p186 = pneg %p185
    // Predicated region
    $region29: #{pose_cnn_forward.10} parent=5 // pred_check
      _
    $region30: #{pose_cnn_forward.10} parent=5 // pred_check_branch
      %188 = sbr.rel (%p185) target = $region32
    $region31: #{pose_cnn_forward.10} parent=5 // pred_region
      %s189 = ssub.s32 %s9, 1
      %s190 = smul.u32 %s21, 2
      %s191 = sadd.s32 %s190, %s19
      %s192 = smul.u32 4, %s20
      %p193 = scmp.lt.s32.totalorder %s191, 5
      %s194 = scalar_select %p193, %s191, 5
      %p195 = scmp.lt.s32.totalorder %s192, 3
      %s196 = scalar_select %p195, %s192, 3
      %s197 = smul.addr %s196, 2
      %s198 = smul.addr %s194, 8
      %s199 = sadd.s32 %s197, %s198
      %s200 = smul.addr %s199, 4
      %s201 = scalar_lea.vmem %s0, %s200
      %p202 = pneg %p60
      %p203 = pneg %p57
      %p204 = scmp.lt.s32.totalorder %s21, 2
      %s205 = scalar_select %p204, %s21, 2
      %s206 = smul.addr %s205, 64
      %s207 = smul.addr %s206, 4
      %s208 = scalar_lea.vmem %s1, %s207
      %p209 = pneg %p86
      %p210 = pneg %p83
      %p211 = pneg %p107
      %p212 = pneg %p104
      %p213 = pneg %p135
      %p214 = pneg %p132
      %s215 = smul.u32 4, %s20
      %p216 = scmp.lt.s32.totalorder %s19, 1
      %s217 = scalar_select %p216, %s19, 1
      %p218 = scmp.lt.s32.totalorder %s215, 3
      %s219 = scalar_select %p218, %s215, 3
      %s220 = smul.addr %s217, 4
      %s221 = sadd.s32 %s219, %s220
      %s222 = smul.addr %s221, 4
      %s223 = scalar_lea.vmem %s3, %s222
      %s224 = smul.u32 %s21, 2
      %s225 = sadd.s32 %s224, %s19
      %s226 = smul.u32 4, %s20
      %p227 = scmp.lt.s32.totalorder %s225, 5
      %s228 = scalar_select %p227, %s225, 5
      %p229 = scmp.lt.s32.totalorder %s226, 3
      %s230 = scalar_select %p229, %s226, 3
      %s231 = smul.addr %s230, 2
      %s232 = smul.addr %s228, 8
      %s233 = sadd.s32 %s231, %s232
      %s234 = smul.addr %s233, 4
      %s235 = scalar_lea.vmem %s0, %s234
      %s236 = smul.u32 %s21, 2
      %s237 = sadd.s32 %s236, %s19
      %s238 = smul.u32 4, %s20
      %p239 = scmp.lt.s32.totalorder %s21, 2
      %s240 = scalar_select %p239, %s21, 2
      %s241 = smul.addr %s240, 64
      %s242 = smul.addr %s241, 4
      %s243 = scalar_lea.vmem %s1, %s242
      %s244 = smul.u32 4, %s20
      %p245 = scmp.lt.s32.totalorder %s19, 1
      %s246 = scalar_select %p245, %s19, 1
      %p247 = scmp.lt.s32.totalorder %s244, 3
      %s248 = scalar_select %p247, %s244, 3
      %s249 = smul.addr %s246, 4
      %s250 = sadd.s32 %s248, %s249
      %s251 = smul.addr %s250, 4
      %s252 = scalar_lea.vmem %s3, %s251
      %s253 = smul.u32 4, %s20
      %p255 = scmp.eq.s32.totalorder %s21, 0
      // Predicated region
      $region33: #{pose_cnn_forward.10} parent=31 // pred_check
        %p256 = pneg %p255
      $region34: #{pose_cnn_forward.10} parent=31 // pred_check_branch
        %258 = sbr.rel (%p256) target = $region36
      $region35: #{pose_cnn_forward.10} parent=31 // pred_region
        %259 = vst [vmem:[%s252] sm:$0xf] 0.0
        %260 = vst [vmem:[%s252 + $0x4] sm:$0xf] 0.0
        %261 = vst [vmem:[%s252 + $0x8] sm:$0xf] 0.0
        %262 = vst [vmem:[%s252 + $0xc] sm:$0xf] 0.0
      $region36: #{pose_cnn_forward.10} parent=31 // pred_fallthru
        _
      loop: start=0, step=1, limit=4
      $region37: #{pose_cnn_forward.10} parent=31 // loop_pre_header
        _
      $region38: #{pose_cnn_forward.10} parent=31 // loop_header
        %s264 = sphi 0, %s268
        %p265 = scmp.ge.s32.totalorder %s264, 4
      $region39: #{pose_cnn_forward.10} parent=31 // loop_header_branch
        %267 = sbr.rel (%p265) target = $region43
      $region40: #{pose_cnn_forward.10} parent=31 // loop_body
        %s269 = smul.u32 %s264, 2
        %s270 = smul.addr %s269, 4
        %s271 = scalar_lea.vmem %s235, %s270
        %v272 = vld [vmem:[%s271] sm:$0x77]
        %v273 = vld [vmem:[%s243] sm:$0xf]
        %v274 = vld [vmem:[%s243 + $0x4] sm:$0xf]
        %v275 = vld [vmem:[%s243 + $0x8] sm:$0xf]
        %v276 = vld [vmem:[%s243 + $0xc] sm:$0xf]
        %v277 = vld [vmem:[%s243 + $0x10] sm:$0xf]
        %v278 = vld [vmem:[%s243 + $0x14] sm:$0xf]
        %v279 = vld [vmem:[%s243 + $0x18] sm:$0xf]
        %v280 = vld [vmem:[%s243 + $0x1c] sm:$0xf]
        %v281 = vld [vmem:[%s243 + $0x20] sm:$0xf]
        %v282 = vld [vmem:[%s243 + $0x24] sm:$0xf]
        %v283 = vld [vmem:[%s243 + $0x28] sm:$0xf]
        %v284 = vld [vmem:[%s243 + $0x2c] sm:$0xf]
        %v285 = vld [vmem:[%s243 + $0x30] sm:$0xf]
        %v286 = vld [vmem:[%s243 + $0x34] sm:$0xf]
        %v287 = vld [vmem:[%s243 + $0x38] sm:$0xf]
        %v288 = vld [vmem:[%s243 + $0x3c] sm:$0xf]
        %v289 = vld [vmem:[%s243 + $0x40] sm:$0xf]
        %v290 = vld [vmem:[%s243 + $0x44] sm:$0xf]
        %v291 = vld [vmem:[%s243 + $0x48] sm:$0xf]
        %v292 = vld [vmem:[%s243 + $0x4c] sm:$0xf]
        %v293 = vld [vmem:[%s243 + $0x50] sm:$0xf]
        %v294 = vld [vmem:[%s243 + $0x54] sm:$0xf]
        %v295 = vld [vmem:[%s243 + $0x58] sm:$0xf]
        %v296 = vld [vmem:[%s243 + $0x5c] sm:$0xf]
        %v297 = vld [vmem:[%s243 + $0x60] sm:$0xf]
        %v298 = vld [vmem:[%s243 + $0x64] sm:$0xf]
        %v299 = vld [vmem:[%s243 + $0x68] sm:$0xf]
        %v300 = vld [vmem:[%s243 + $0x6c] sm:$0xf]
        %v301 = vld [vmem:[%s243 + $0x70] sm:$0xf]
        %v302 = vld [vmem:[%s243 + $0x74] sm:$0xf]
        %v303 = vld [vmem:[%s243 + $0x78] sm:$0xf]
        %v304 = vld [vmem:[%s243 + $0x7c] sm:$0xf]
        %s305 = scalar_lea.vmem %s243, 128
        %v306 = vld [vmem:[%s305] sm:$0xf]
        %v307 = vld [vmem:[%s305 + $0x4] sm:$0xf]
        %v308 = vld [vmem:[%s305 + $0x8] sm:$0xf]
        %v309 = vld [vmem:[%s305 + $0xc] sm:$0xf]
        %v310 = vld [vmem:[%s305 + $0x10] sm:$0xf]
        %v311 = vld [vmem:[%s305 + $0x14] sm:$0xf]
        %v312 = vld [vmem:[%s305 + $0x18] sm:$0xf]
        %v313 = vld [vmem:[%s305 + $0x1c] sm:$0xf]
        %v314 = vld [vmem:[%s305 + $0x20] sm:$0xf]
        %v315 = vld [vmem:[%s305 + $0x24] sm:$0xf]
        %v316 = vld [vmem:[%s305 + $0x28] sm:$0xf]
        %v317 = vld [vmem:[%s305 + $0x2c] sm:$0xf]
        %v318 = vld [vmem:[%s305 + $0x30] sm:$0xf]
        %v319 = vld [vmem:[%s305 + $0x34] sm:$0xf]
        %v320 = vld [vmem:[%s305 + $0x38] sm:$0xf]
        %v321 = vld [vmem:[%s305 + $0x3c] sm:$0xf]
        %v322 = vld [vmem:[%s305 + $0x40] sm:$0xf]
        %v323 = vld [vmem:[%s305 + $0x44] sm:$0xf]
        %v324 = vld [vmem:[%s305 + $0x48] sm:$0xf]
        %v325 = vld [vmem:[%s305 + $0x4c] sm:$0xf]
        %v326 = vld [vmem:[%s305 + $0x50] sm:$0xf]
        %v327 = vld [vmem:[%s305 + $0x54] sm:$0xf]
        %v328 = vld [vmem:[%s305 + $0x58] sm:$0xf]
        %v329 = vld [vmem:[%s305 + $0x5c] sm:$0xf]
        %v330 = vld [vmem:[%s305 + $0x60] sm:$0xf]
        %v331 = vld [vmem:[%s305 + $0x64] sm:$0xf]
        %v332 = vld [vmem:[%s305 + $0x68] sm:$0xf]
        %v333 = vld [vmem:[%s305 + $0x6c] sm:$0xf]
        %v334 = vld [vmem:[%s305 + $0x70] sm:$0xf]
        %v335 = vld [vmem:[%s305 + $0x74] sm:$0xf]
        %v336 = vld [vmem:[%s305 + $0x78] sm:$0xf]
        %v337 = vld [vmem:[%s305 + $0x7c] sm:$0xf]
        %v339 = vunpack.c.l.b16 %v272
        %v340 = vunpack.c.h.b16 %v272
        %v341 = vpack.c.b16 %v339, %v339
        %v342 = vpack.c.b16 %v340, %v340
        %v344 = vshrl.u32 %v341, 16
        %v346 = vshll.u32 %v341, 16
        %v348 = vrot.slane %v346, 1
        %v349 = vor.u32 %v344, %v348
        %v351 = vshrl.u32 %v342, 16
        %v353 = vshll.u32 %v342, 16
        %v355 = vrot.slane %v353, 1
        %v356 = vor.u32 %v351, %v355
        %v391 = vunpack.c.l.b16 %v306
        %v392 = vunpack.c.l.b16 %v307
        %v393 = vunpack.c.l.b16 %v308
        %v394 = vunpack.c.l.b16 %v309
        %v395 = vunpack.c.l.b16 %v310
        %v396 = vunpack.c.l.b16 %v311
        %v397 = vunpack.c.l.b16 %v312
        %v398 = vunpack.c.l.b16 %v313
        %v399 = vunpack.c.l.b16 %v314
        %v400 = vunpack.c.l.b16 %v315
        %v401 = vunpack.c.l.b16 %v316
        %v402 = vunpack.c.l.b16 %v317
        %v403 = vunpack.c.l.b16 %v318
        %v404 = vunpack.c.l.b16 %v319
        %v405 = vunpack.c.l.b16 %v320
        %v406 = vunpack.c.l.b16 %v321
        %v407 = vunpack.c.l.b16 %v322
        %v408 = vunpack.c.l.b16 %v323
        %v409 = vunpack.c.l.b16 %v324
        %v410 = vunpack.c.l.b16 %v325
        %v411 = vunpack.c.l.b16 %v326
        %v412 = vunpack.c.l.b16 %v327
        %v413 = vunpack.c.l.b16 %v328
        %v414 = vunpack.c.l.b16 %v329
        %v415 = vunpack.c.l.b16 %v330
        %v416 = vunpack.c.l.b16 %v331
        %v417 = vunpack.c.l.b16 %v332
        %v418 = vunpack.c.l.b16 %v333
        %v419 = vunpack.c.l.b16 %v334
        %v420 = vunpack.c.l.b16 %v335
        %v421 = vunpack.c.l.b16 %v336
        %v422 = vunpack.c.l.b16 %v337
        %v423 = vpack.c.b16 %v392, %v391
        %v424 = vpack.c.b16 %v394, %v393
        %v425 = vpack.c.b16 %v396, %v395
        %v426 = vpack.c.b16 %v398, %v397
        %v427 = vpack.c.b16 %v400, %v399
        %v428 = vpack.c.b16 %v402, %v401
        %v429 = vpack.c.b16 %v404, %v403
        %v430 = vpack.c.b16 %v406, %v405
        %v431 = vpack.c.b16 %v408, %v407
        %v432 = vpack.c.b16 %v410, %v409
        %v433 = vpack.c.b16 %v412, %v411
        %v434 = vpack.c.b16 %v414, %v413
        %v435 = vpack.c.b16 %v416, %v415
        %v436 = vpack.c.b16 %v418, %v417
        %v437 = vpack.c.b16 %v420, %v419
        %v438 = vpack.c.b16 %v422, %v421
        %455 = vmatprep.subr.bf16.mxu0 0
        %456 = vmatpush1.bf16.msra.mxu0 %v430
        %457 = vmatprep.subr.bf16.mxu0 0
        %458 = vmatpush1.bf16.msra.mxu0 %v429
        %459 = vmatprep.subr.bf16.mxu0 0
        %460 = vmatpush1.bf16.msra.mxu0 %v428
        %461 = vmatprep.subr.bf16.mxu0 0
        %462 = vmatpush1.bf16.msra.mxu0 %v427
        %463 = vmatprep.subr.bf16.mxu0 0
        %464 = vmatpush1.bf16.msra.mxu0 %v426
        %465 = vmatprep.subr.bf16.mxu0 0
        %466 = vmatpush1.bf16.msra.mxu0 %v425
        %467 = vmatprep.subr.bf16.mxu0 0
        %468 = vmatpush1.bf16.msra.mxu0 %v424
        %469 = vmatprep.subr.bf16.mxu0 0
        %470 = vmatpush1.bf16.msra.mxu0 %v423
        %471 = vmatprep.subr.bf16.mxu0 0
        %472 = vmatpush2.bf16.msra.mxu0 %v438
        %473 = vmatprep.subr.bf16.mxu0 0
        %474 = vmatpush2.bf16.msra.mxu0 %v437
        %475 = vmatprep.subr.bf16.mxu0 0
        %476 = vmatpush2.bf16.msra.mxu0 %v436
        %477 = vmatprep.subr.bf16.mxu0 0
        %478 = vmatpush2.bf16.msra.mxu0 %v435
        %479 = vmatprep.subr.bf16.mxu0 0
        %480 = vmatpush2.bf16.msra.mxu0 %v434
        %481 = vmatprep.subr.bf16.mxu0 0
        %482 = vmatpush2.bf16.msra.mxu0 %v433
        %483 = vmatprep.subr.bf16.mxu0 0
        %484 = vmatpush2.bf16.msra.mxu0 %v432
        %485 = vmatprep.subr.bf16.mxu0 0
        %486 = vmatpush2.bf16.msra.mxu0 %v431
        %487 = vmatprep.mubr.bf16.mxu0 %v356
        %488 = vmatmul.mubr.bf16.gmra.mxu0 %v349
        %v489 = vpop.f32.mrf.mxu0
        %v490 = vadd.f32 0.0, %v489
        %v491 = vpop.f32.mrf.mxu0
        %v492 = vpop.f32.mrf.mxu0
        %v493 = vpop.f32.mrf.mxu0
        %494 = vdwg.mxu0
        %v529 = vunpack.c.l.b16 %v273
        %v530 = vunpack.c.l.b16 %v274
        %v531 = vunpack.c.l.b16 %v275
        %v532 = vunpack.c.l.b16 %v276
        %v533 = vunpack.c.l.b16 %v277
        %v534 = vunpack.c.l.b16 %v278
        %v535 = vunpack.c.l.b16 %v279
        %v536 = vunpack.c.l.b16 %v280
        %v537 = vunpack.c.l.b16 %v281
        %v538 = vunpack.c.l.b16 %v282
        %v539 = vunpack.c.l.b16 %v283
        %v540 = vunpack.c.l.b16 %v284
        %v541 = vunpack.c.l.b16 %v285
        %v542 = vunpack.c.l.b16 %v286
        %v543 = vunpack.c.l.b16 %v287
        %v544 = vunpack.c.l.b16 %v288
        %v545 = vunpack.c.l.b16 %v289
        %v546 = vunpack.c.l.b16 %v290
        %v547 = vunpack.c.l.b16 %v291
        %v548 = vunpack.c.l.b16 %v292
        %v549 = vunpack.c.l.b16 %v293
        %v550 = vunpack.c.l.b16 %v294
        %v551 = vunpack.c.l.b16 %v295
        %v552 = vunpack.c.l.b16 %v296
        %v553 = vunpack.c.l.b16 %v297
        %v554 = vunpack.c.l.b16 %v298
        %v555 = vunpack.c.l.b16 %v299
        %v556 = vunpack.c.l.b16 %v300
        %v557 = vunpack.c.l.b16 %v301
        %v558 = vunpack.c.l.b16 %v302
        %v559 = vunpack.c.l.b16 %v303
        %v560 = vunpack.c.l.b16 %v304
        %v561 = vpack.c.b16 %v530, %v529
        %v562 = vpack.c.b16 %v532, %v531
        %v563 = vpack.c.b16 %v534, %v533
        %v564 = vpack.c.b16 %v536, %v535
        %v565 = vpack.c.b16 %v538, %v537
        %v566 = vpack.c.b16 %v540, %v539
        %v567 = vpack.c.b16 %v542, %v541
        %v568 = vpack.c.b16 %v544, %v543
        %v569 = vpack.c.b16 %v546, %v545
        %v570 = vpack.c.b16 %v548, %v547
        %v571 = vpack.c.b16 %v550, %v549
        %v572 = vpack.c.b16 %v552, %v551
        %v573 = vpack.c.b16 %v554, %v553
        %v574 = vpack.c.b16 %v556, %v555
        %v575 = vpack.c.b16 %v558, %v557
        %v576 = vpack.c.b16 %v560, %v559
        %593 = vmatprep.subr.bf16.mxu0 0
        %594 = vmatpush1.bf16.msra.mxu0 %v568
        %595 = vmatprep.subr.bf16.mxu0 0
        %596 = vmatpush1.bf16.msra.mxu0 %v567
        %597 = vmatprep.subr.bf16.mxu0 0
        %598 = vmatpush1.bf16.msra.mxu0 %v566
        %599 = vmatprep.subr.bf16.mxu0 0
        %600 = vmatpush1.bf16.msra.mxu0 %v565
        %601 = vmatprep.subr.bf16.mxu0 0
        %602 = vmatpush1.bf16.msra.mxu0 %v564
        %603 = vmatprep.subr.bf16.mxu0 0
        %604 = vmatpush1.bf16.msra.mxu0 %v563
        %605 = vmatprep.subr.bf16.mxu0 0
        %606 = vmatpush1.bf16.msra.mxu0 %v562
        %607 = vmatprep.subr.bf16.mxu0 0
        %608 = vmatpush1.bf16.msra.mxu0 %v561
        %609 = vmatprep.subr.bf16.mxu0 0
        %610 = vmatpush2.bf16.msra.mxu0 %v576
        %611 = vmatprep.subr.bf16.mxu0 0
        %612 = vmatpush2.bf16.msra.mxu0 %v575
        %613 = vmatprep.subr.bf16.mxu0 0
        %614 = vmatpush2.bf16.msra.mxu0 %v574
        %615 = vmatprep.subr.bf16.mxu0 0
        %616 = vmatpush2.bf16.msra.mxu0 %v573
        %617 = vmatprep.subr.bf16.mxu0 0
        %618 = vmatpush2.bf16.msra.mxu0 %v572
        %619 = vmatprep.subr.bf16.mxu0 0
        %620 = vmatpush2.bf16.msra.mxu0 %v571
        %621 = vmatprep.subr.bf16.mxu0 0
        %622 = vmatpush2.bf16.msra.mxu0 %v570
        %623 = vmatprep.subr.bf16.mxu0 0
        %624 = vmatpush2.bf16.msra.mxu0 %v569
        %625 = vmatprep.mubr.bf16.mxu0 %v342
        %626 = vmatmul.mubr.bf16.gmra.mxu0 %v341
        %v627 = vpop.f32.mrf.mxu0
        %v628 = vadd.f32 %v490, %v627
        %v629 = vpop.f32.mrf.mxu0
        %v630 = vpop.f32.mrf.mxu0
        %v631 = vpop.f32.mrf.mxu0
        %632 = vdwg.mxu0
        %s633 = smul.u32 %s264, 4
        %s634 = scalar_lea.vmem %s252, %s633
        %v635 = vld [vmem:[%s634] sm:$0xf]
        %v636 = vadd.f32 %v635, %v628
        %637 = vst [vmem:[%s634] sm:$0xf] %v636
      $region41: #{pose_cnn_forward.10} parent=31 // loop_footer
        %s268 = sadd.s32 1, %s264
      $region42: #{pose_cnn_forward.10} parent=31 // loop_footer_branch
        %263 = sbr.rel target = $region38
      $region43: #{pose_cnn_forward.10} parent=31 // loop_exit
        _
      %p638 = scmp.eq.s32.totalorder %s21, 2
      // Predicated region
      $region44: #{pose_cnn_forward.10} parent=31 // pred_check
        %p639 = pneg %p638
      $region45: #{pose_cnn_forward.10} parent=31 // pred_check_branch
        %641 = sbr.rel (%p639) target = $region47
      $region46: #{pose_cnn_forward.10} parent=31 // pred_region
        %v642 = vld [vmem:[%s252] sm:$0xf]
        %v643 = vld [vmem:[%s252 + $0x4] sm:$0xf]
        %v644 = vld [vmem:[%s252 + $0x8] sm:$0xf]
        %v645 = vld [vmem:[%s252 + $0xc] sm:$0xf]
        %v646 = vld [vmem:[%s2] sm:$0x1]
        %v648 = vlaneseq
        %v649 = vshrl.u32 %v648, 7
        %v650 = vsub.s32 0, %v649
        %v651 = vrot.slane %v646, %v650
        %v653 = vadd.f32 %v642, %v651
        %v654 = vadd.f32 %v643, %v651
        %v655 = vadd.f32 %v644, %v651
        %v656 = vadd.f32 %v645, %v651
        %v657 = vmax.f32 %v653, 0.0
        %v658 = vmax.f32 %v654, 0.0
        %v659 = vmax.f32 %v655, 0.0
        %v660 = vmax.f32 %v656, 0.0
        %661 = vst [vmem:[%s252] sm:$0xf] %v657
        %662 = vst [vmem:[%s252 + $0x4] sm:$0xf] %v658
        %663 = vst [vmem:[%s252 + $0x8] sm:$0xf] %v659
        %664 = vst [vmem:[%s252 + $0xc] sm:$0xf] %v660
      $region47: #{pose_cnn_forward.10} parent=31 // pred_fallthru
        _
      %s665 = smul.u32 4, %s20
      %p666 = scmp.lt.s32.totalorder %s19, 1
      %s667 = scalar_select %p666, %s19, 1
      %p668 = scmp.lt.s32.totalorder %s665, 3
      %s669 = scalar_select %p668, %s665, 3
      %s670 = smul.addr %s667, 4
      %s671 = sadd.s32 %s669, %s670
      %s672 = smul.addr %s671, 4
      %s673 = scalar_lea.vmem %s3, %s672
      // Predicated region
      $region48: #{pose_cnn_forward.10} parent=31 // pred_check
        %p674 = pneg %p132
      $region49: #{pose_cnn_forward.10} parent=31 // pred_check_branch
        %676 = sbr.rel (%p674) target = $region51
      $region50: #{pose_cnn_forward.10} parent=31 // pred_region
        %s677 = smul.u32 4, %s20
      $region51: #{pose_cnn_forward.10} parent=31 // pred_fallthru
        _
    $region32: #{pose_cnn_forward.10} parent=5 // pred_fallthru
      _
    %p678 = scmp.le.s32.totalorder 2, %s9
    // Predicated region
    $region52: #{pose_cnn_forward.10} parent=5 // pred_check
      %p679 = pneg %p678
    $region53: #{pose_cnn_forward.10} parent=5 // pred_check_branch
      %681 = sbr.rel (%p679) target = $region55
    $region54: #{pose_cnn_forward.10} parent=5 // pred_region
      %s682 = ssub.s32 %s9, 2
      // Predicated region
      $region56: #{pose_cnn_forward.10} parent=54 // pred_check
        %p683 = pneg %p138
      $region57: #{pose_cnn_forward.10} parent=54 // pred_check_branch
        %685 = sbr.rel (%p683) target = $region59
      $region58: #{pose_cnn_forward.10} parent=54 // pred_region
        %s686 = smul.u32 4, %s23
        %p687 = scmp.lt.s32.totalorder %s22, 1
        %s688 = scalar_select %p687, %s22, 1
        %p689 = scmp.lt.s32.totalorder %s686, 3
        %s690 = scalar_select %p689, %s686, 3
        %s691 = smul.addr %s688, 4
        %s692 = sadd.s32 %s690, %s691
        %s693 = smul.addr %s692, 4
        %s694 = scalar_lea.vmem %s3, %s693
      $region59: #{pose_cnn_forward.10} parent=54 // pred_fallthru
        _
    $region55: #{pose_cnn_forward.10} parent=5 // pred_fallthru
      _
  $region6: #{pose_cnn_forward.10} parent=0 // loop_footer
    %s13 = sadd.s32 1, %s9
  $region7: #{pose_cnn_forward.10} parent=0 // loop_footer_branch
    %8 = sbr.rel target = $region3
  $region8: #{pose_cnn_forward.10} parent=0 // loop_exit
    _

// kernel: pose_cnn_forward.12
$region0: #{pose_cnn_forward.12}
  #allocation0 [shape = 'u32[]', space=smem, size = 0x4, offset = 0x4, fixed_abs, tag = 'smem constant byte address 0x4 - core index']
  #allocation1 [shape = 'u32[144,128]{1,0:T(1,128)}', space=vmem, size = 0x12000, scoped, tag = 'internal scratch']
  %s0 = inlined_call_operand.vmem [shape: bf16[6,1,2,256], index: 0, kind: input, shape index: {}]
  %s1 = inlined_call_operand.vmem [shape: bf16[3,2,256,256], index: 1, kind: input, shape index: {}]
  %s2 = inlined_call_operand.vmem [shape: f32[1,256], index: 2, kind: input, shape index: {}]
  %s3 = inlined_call_operand.vmem [shape: f32[2,1,1,256], index: 3, kind: output, shape index: {}]
  %s4 = sld [smem:[#allocation0]]
  $region53: #{pose_cnn_forward.12} parent=0
    _
  %s6 = ssub.s32 1, %s4
  %s7 = scalar_select 0, %s6, %s4
  loop: start=0, step=1, limit=8
  $region2: #{pose_cnn_forward.12} parent=0 // loop_pre_header
    _
  $region3: #{pose_cnn_forward.12} parent=0 // loop_header
    %s9 = sphi 0, %s13
    %p10 = scmp.ge.s32.totalorder %s9, 8
    %s16 = sphi 0, %s35
    %s17 = sphi 0, %s31
    %s18 = sphi 0, %s27
    %s19 = sphi 0, %s16
    %s20 = sphi 0, %s17
    %s21 = sphi 0, %s18
    %s22 = sphi 0, %s19
    %s23 = sphi 0, %s20
    %s24 = sphi 0, %s21
    %s44 = sphi 0, %s46
    %s47 = sphi 0, %s44
    %s48 = sphi 0, %s47
    %s64 = sphi 0, %s48
    %s70 = sphi 0, %s72
    %s73 = sphi 0, %s70
    %s74 = sphi 0, %s73
    %s90 = sphi 0, %s74
    %s94 = sphi 0, %s94
    %s96 = sphi 0, %s94
    %s97 = sphi 0, %s96
    %s111 = sphi 0, %s97
    %s119 = sphi 0, %s121
    %s122 = sphi 0, %s119
    %s123 = sphi 0, %s122
    %s139 = sphi 0, %s123
  $region4: #{pose_cnn_forward.12} parent=0 // loop_header_branch
    %12 = sbr.rel (%p10) target = $region8
  $region5: #{pose_cnn_forward.12} parent=0 // loop_body
    %s14 = ssub.s32 %s9, 1
    %s15 = ssub.s32 %s9, 2
    %s25 = sadd.s32 1, %s18
    %p26 = scmp.ge.s32.totalorder %s25, 3
    %s27 = scalar_select %p26, 0, %s25
    %s28 = sadd.s32 1, %s17
    %s29 = scalar_select %p26, %s28, %s17
    %p30 = scmp.ge.s32.totalorder %s29, 1
    %s31 = scalar_select %p30, 0, %s29
    %s32 = sadd.s32 1, %s16
    %s33 = scalar_select %p30, %s32, %s16
    %p34 = scmp.ge.s32.totalorder %s33, 2
    %s35 = scalar_select %p34, 0, %s33
    %s36 = smul.u32 %s18, 2
    %s37 = sadd.s32 %s36, %s16
    %s38 = smul.u32 %s27, 2
    %s39 = sadd.s32 %s38, %s35
    %s40 = ssub.s32 %s37, %s39
    %s41 = ssub.s32 %s17, %s31
    %s42 = sor.u32 %s40, %s41
    %p43 = scmp.eq.s32.totalorder %s42, 0
    %s45 = sadd.s32 %s44, 1
    %s46 = scalar_select %p43, %s44, %s45
    %p49 = pneg %p43
    %p50 = scmp.eq.s32.totalorder %s9, 5
    %p51 = por %p49, %p50
    %p52 = scmp.ne.s32.totalorder %s44, %s47
    %p53 = scmp.eq.s32.totalorder %s9, 0
    %p54 = por %p52, %p53
    %p55 = scmp.ne.s32.totalorder %s44, %s47
    %p56 = scmp.eq.s32.totalorder %s14, 5
    %p57 = por %p55, %p56
    %p58 = scmp.ne.s32.totalorder %s47, %s48
    %p59 = scmp.eq.s32.totalorder %s14, 0
    %p60 = por %p58, %p59
    %p61 = scmp.ne.s32.totalorder %s47, %s48
    %p62 = scmp.eq.s32.totalorder %s15, 5
    %p63 = por %p61, %p62
    %p65 = scmp.ne.s32.totalorder %s48, %s64
    %p66 = scmp.eq.s32.totalorder %s15, 0
    %p67 = por %p65, %p66
    %s68 = ssub.s32 %s18, %s27
    %p69 = scmp.eq.s32.totalorder %s68, 0
    %s71 = sadd.s32 %s70, 1
    %s72 = scalar_select %p69, %s70, %s71
    %p75 = pneg %p69
    %p76 = scmp.eq.s32.totalorder %s9, 5
    %p77 = por %p75, %p76
    %p78 = scmp.ne.s32.totalorder %s70, %s73
    %p79 = scmp.eq.s32.totalorder %s9, 0
    %p80 = por %p78, %p79
    %p81 = scmp.ne.s32.totalorder %s70, %s73
    %p82 = scmp.eq.s32.totalorder %s14, 5
    %p83 = por %p81, %p82
    %p84 = scmp.ne.s32.totalorder %s73, %s74
    %p85 = scmp.eq.s32.totalorder %s14, 0
    %p86 = por %p84, %p85
    %p87 = scmp.ne.s32.totalorder %s73, %s74
    %p88 = scmp.eq.s32.totalorder %s15, 5
    %p89 = por %p87, %p88
    %p91 = scmp.ne.s32.totalorder %s74, %s90
    %p92 = scmp.eq.s32.totalorder %s15, 0
    %p93 = por %p91, %p92
    %s95 = sadd.s32 %s94, 1
    %p98 = scmp.eq.s32.totalorder %s9, 5
    %p99 = scmp.ne.s32.totalorder %s94, %s96
    %p100 = scmp.eq.s32.totalorder %s9, 0
    %p101 = por %p99, %p100
    %p102 = scmp.ne.s32.totalorder %s94, %s96
    %p103 = scmp.eq.s32.totalorder %s14, 5
    %p104 = por %p102, %p103
    %p105 = scmp.ne.s32.totalorder %s96, %s97
    %p106 = scmp.eq.s32.totalorder %s14, 0
    %p107 = por %p105, %p106
    %p108 = scmp.ne.s32.totalorder %s96, %s97
    %p109 = scmp.eq.s32.totalorder %s15, 5
    %p110 = por %p108, %p109
    %p112 = scmp.ne.s32.totalorder %s97, %s111
    %p113 = scmp.eq.s32.totalorder %s15, 0
    %p114 = por %p112, %p113
    %s115 = ssub.s32 %s16, %s35
    %s116 = ssub.s32 %s17, %s31
    %s117 = sor.u32 %s115, %s116
    %p118 = scmp.eq.s32.totalorder %s117, 0
    %s120 = sadd.s32 %s119, 1
    %s121 = scalar_select %p118, %s119, %s120
    %p124 = pneg %p118
    %p125 = scmp.eq.s32.totalorder %s9, 5
    %p126 = por %p124, %p125
    %p127 = scmp.ne.s32.totalorder %s119, %s122
    %p128 = scmp.eq.s32.totalorder %s9, 0
    %p129 = por %p127, %p128
    %p130 = scmp.ne.s32.totalorder %s119, %s122
    %p131 = scmp.eq.s32.totalorder %s14, 5
    %p132 = por %p130, %p131
    %p133 = scmp.ne.s32.totalorder %s122, %s123
    %p134 = scmp.eq.s32.totalorder %s14, 0
    %p135 = por %p133, %p134
    %p136 = scmp.ne.s32.totalorder %s122, %s123
    %p137 = scmp.eq.s32.totalorder %s15, 5
    %p138 = por %p136, %p137
    %p140 = scmp.ne.s32.totalorder %s123, %s139
    %p141 = scmp.eq.s32.totalorder %s15, 0
    %p142 = por %p140, %p141
    %p143 = scmp.le.s32.totalorder 1, %s9
    %p144 = scmp.lt.s32.totalorder %s9, 7
    %p145 = pnand %p143, %p144
    %p146 = pneg %p145
    // Predicated region
    $region9: #{pose_cnn_forward.12} parent=5 // pred_check
      _
    $region10: #{pose_cnn_forward.12} parent=5 // pred_check_branch
      %148 = sbr.rel (%p145) target = $region12
    $region11: #{pose_cnn_forward.12} parent=5 // pred_region
      %s149 = ssub.s32 %s9, 1
      // Predicated region
      $region13: #{pose_cnn_forward.12} parent=11 // pred_check
        %p150 = pneg %p107
      $region14: #{pose_cnn_forward.12} parent=11 // pred_check_branch
        %152 = sbr.rel (%p150) target = $region16
      $region15: #{pose_cnn_forward.12} parent=11 // pred_region
        _
      $region16: #{pose_cnn_forward.12} parent=11 // pred_fallthru
        _
    $region12: #{pose_cnn_forward.12} parent=5 // pred_fallthru
      _
    %p153 = scmp.lt.s32.totalorder %s9, 6
    // Predicated region
    $region17: #{pose_cnn_forward.12} parent=5 // pred_check
      %p154 = pneg %p153
    $region18: #{pose_cnn_forward.12} parent=5 // pred_check_branch
      %156 = sbr.rel (%p154) target = $region20
    $region19: #{pose_cnn_forward.12} parent=5 // pred_region
      // Predicated region
      $region21: #{pose_cnn_forward.12} parent=19 // pred_check
        %p157 = pneg %p54
      $region22: #{pose_cnn_forward.12} parent=19 // pred_check_branch
        %159 = sbr.rel (%p157) target = $region24
      $region23: #{pose_cnn_forward.12} parent=19 // pred_region
        %s160 = smul.u32 %s18, 2
        %s161 = sadd.s32 %s160, %s16
        %p162 = scmp.lt.s32.totalorder %s161, 5
        %s163 = scalar_select %p162, %s161, 5
        %p164 = scmp.lt.s32.totalorder %s17, 0
        %s165 = scalar_select %p164, %s17, 0
        %s166 = smul.addr %s165, 2
        %s167 = smul.addr %s163, 2
        %s168 = sadd.s32 %s166, %s167
        %s169 = scalar_lea.vmem %s0, %s168
        %s170 = smul.u32 %s18, 2
        %s171 = sadd.s32 %s170, %s16
      $region24: #{pose_cnn_forward.12} parent=19 // pred_fallthru
        _
      // Predicated region
      $region25: #{pose_cnn_forward.12} parent=19 // pred_check
        %p172 = pneg %p80
      $region26: #{pose_cnn_forward.12} parent=19 // pred_check_branch
        %174 = sbr.rel (%p172) target = $region28
      $region27: #{pose_cnn_forward.12} parent=19 // pred_region
        %p175 = scmp.lt.s32.totalorder %s18, 2
        %s176 = scalar_select %p175, %s18, 2
        %s177 = smul.addr %s176, 128
        %s178 = smul.addr %s177, 4
        %s179 = scalar_lea.vmem %s1, %s178
      $region28: #{pose_cnn_forward.12} parent=19 // pred_fallthru
        _
    $region20: #{pose_cnn_forward.12} parent=5 // pred_fallthru
      _
    %p180 = scmp.le.s32.totalorder 1, %s9
    %p181 = scmp.lt.s32.totalorder %s9, 7
    %p182 = pnand %p180, %p181
    %p183 = pneg %p182
    // Predicated region
    $region29: #{pose_cnn_forward.12} parent=5 // pred_check
      _
    $region30: #{pose_cnn_forward.12} parent=5 // pred_check_branch
      %185 = sbr.rel (%p182) target = $region32
    $region31: #{pose_cnn_forward.12} parent=5 // pred_region
      %s186 = ssub.s32 %s9, 1
      %s187 = smul.u32 %s21, 2
      %s188 = sadd.s32 %s187, %s19
      %p189 = scmp.lt.s32.totalorder %s188, 5
      %s190 = scalar_select %p189, %s188, 5
      %p191 = scmp.lt.s32.totalorder %s20, 0
      %s192 = scalar_select %p191, %s20, 0
      %s193 = smul.addr %s192, 2
      %s194 = smul.addr %s190, 2
      %s195 = sadd.s32 %s193, %s194
      %s196 = scalar_lea.vmem %s0, %s195
      %p197 = pneg %p60
      %p198 = pneg %p57
      %p199 = scmp.lt.s32.totalorder %s21, 2
      %s200 = scalar_select %p199, %s21, 2
      %s201 = smul.addr %s200, 128
      %s202 = smul.addr %s201, 4
      %s203 = scalar_lea.vmem %s1, %s202
      %p204 = pneg %p86
      %p205 = pneg %p83
      %p206 = pneg %p107
      %p207 = pneg %p104
      %p208 = pneg %p135
      %p209 = pneg %p132
      %p210 = scmp.lt.s32.totalorder %s19, 1
      %s211 = scalar_select %p210, %s19, 1
      %p212 = scmp.lt.s32.totalorder %s20, 0
      %s213 = scalar_select %p212, %s20, 0
      %s214 = smul.addr %s213, 2
      %s215 = smul.addr %s211, 2
      %s216 = sadd.s32 %s214, %s215
      %s217 = scalar_lea.vmem %s3, %s216
      %s218 = smul.u32 %s21, 2
      %s219 = sadd.s32 %s218, %s19
      %p220 = scmp.lt.s32.totalorder %s219, 5
      %s221 = scalar_select %p220, %s219, 5
      %p222 = scmp.lt.s32.totalorder %s20, 0
      %s223 = scalar_select %p222, %s20, 0
      %s224 = smul.addr %s223, 2
      %s225 = smul.addr %s221, 2
      %s226 = sadd.s32 %s224, %s225
      %s227 = scalar_lea.vmem %s0, %s226
      %s228 = smul.u32 %s21, 2
      %s229 = sadd.s32 %s228, %s19
      %p230 = scmp.lt.s32.totalorder %s21, 2
      %s231 = scalar_select %p230, %s21, 2
      %s232 = smul.addr %s231, 128
      %s233 = smul.addr %s232, 4
      %s234 = scalar_lea.vmem %s1, %s233
      %p235 = scmp.lt.s32.totalorder %s19, 1
      %s236 = scalar_select %p235, %s19, 1
      %p237 = scmp.lt.s32.totalorder %s20, 0
      %s238 = scalar_select %p237, %s20, 0
      %s239 = smul.addr %s238, 2
      %s240 = smul.addr %s236, 2
      %s241 = sadd.s32 %s239, %s240
      %s242 = scalar_lea.vmem %s3, %s241
      %p243 = scmp.eq.s32.totalorder %s21, 0
      // Predicated region
      $region33: #{pose_cnn_forward.12} parent=31 // pred_check
        %p244 = pneg %p243
      $region34: #{pose_cnn_forward.12} parent=31 // pred_check_branch
        %246 = sbr.rel (%p244) target = $region36
      $region35: #{pose_cnn_forward.12} parent=31 // pred_region
        %v247 = vlaneseq
        %vm248 = vcmp.ge.s32.totalorder %v247, 0
        %vm249 = vcmp.lt.s32.totalorder %v247, 256
        %vm250 = vmand %vm248, %vm249
        %251 = vst.msk [vmem:[%s242] sm:$0x3] %vm250, 0.0
      $region36: #{pose_cnn_forward.12} parent=31 // pred_fallthru
        _
      %v252 = vld [vmem:[%s227] sm:$0x3]
      %v253 = vld [vmem:[%s234] sm:$0xff]
      %v254 = vld [vmem:[%s234 + $0x8] sm:$0xff]
      %v255 = vld [vmem:[%s234 + $0x10] sm:$0xff]
      %v256 = vld [vmem:[%s234 + $0x18] sm:$0xff]
      %v257 = vld [vmem:[%s234 + $0x20] sm:$0xff]
      %v258 = vld [vmem:[%s234 + $0x28] sm:$0xff]
      %v259 = vld [vmem:[%s234 + $0x30] sm:$0xff]
      %v260 = vld [vmem:[%s234 + $0x38] sm:$0xff]
      %v261 = vld [vmem:[%s234 + $0x40] sm:$0xff]
      %v262 = vld [vmem:[%s234 + $0x48] sm:$0xff]
      %v263 = vld [vmem:[%s234 + $0x50] sm:$0xff]
      %v264 = vld [vmem:[%s234 + $0x58] sm:$0xff]
      %v265 = vld [vmem:[%s234 + $0x60] sm:$0xff]
      %v266 = vld [vmem:[%s234 + $0x68] sm:$0xff]
      %v267 = vld [vmem:[%s234 + $0x70] sm:$0xff]
      %v268 = vld [vmem:[%s234 + $0x78] sm:$0xff]
      %v269 = vld [vmem:[%s234 + $0x80] sm:$0xff]
      %v270 = vld [vmem:[%s234 + $0x88] sm:$0xff]
      %v271 = vld [vmem:[%s234 + $0x90] sm:$0xff]
      %v272 = vld [vmem:[%s234 + $0x98] sm:$0xff]
      %v273 = vld [vmem:[%s234 + $0xa0] sm:$0xff]
      %v274 = vld [vmem:[%s234 + $0xa8] sm:$0xff]
      %v275 = vld [vmem:[%s234 + $0xb0] sm:$0xff]
      %v276 = vld [vmem:[%s234 + $0xb8] sm:$0xff]
      %v277 = vld [vmem:[%s234 + $0xc0] sm:$0xff]
      %v278 = vld [vmem:[%s234 + $0xc8] sm:$0xff]
      %v279 = vld [vmem:[%s234 + $0xd0] sm:$0xff]
      %v280 = vld [vmem:[%s234 + $0xd8] sm:$0xff]
      %v281 = vld [vmem:[%s234 + $0xe0] sm:$0xff]
      %v282 = vld [vmem:[%s234 + $0xe8] sm:$0xff]
      %v283 = vld [vmem:[%s234 + $0xf0] sm:$0xff]
      %v284 = vld [vmem:[%s234 + $0xf8] sm:$0xff]
      %s285 = scalar_lea.vmem %s234, 256
      %v286 = vld [vmem:[%s285] sm:$0xff]
      %v287 = vld [vmem:[%s285 + $0x8] sm:$0xff]
      %v288 = vld [vmem:[%s285 + $0x10] sm:$0xff]
      %v289 = vld [vmem:[%s285 + $0x18] sm:$0xff]
      %v290 = vld [vmem:[%s285 + $0x20] sm:$0xff]
      %v291 = vld [vmem:[%s285 + $0x28] sm:$0xff]
      %v292 = vld [vmem:[%s285 + $0x30] sm:$0xff]
      %v293 = vld [vmem:[%s285 + $0x38] sm:$0xff]
      %v294 = vld [vmem:[%s285 + $0x40] sm:$0xff]
      %v295 = vld [vmem:[%s285 + $0x48] sm:$0xff]
      %v296 = vld [vmem:[%s285 + $0x50] sm:$0xff]
      %v297 = vld [vmem:[%s285 + $0x58] sm:$0xff]
      %v298 = vld [vmem:[%s285 + $0x60] sm:$0xff]
      %v299 = vld [vmem:[%s285 + $0x68] sm:$0xff]
      %v300 = vld [vmem:[%s285 + $0x70] sm:$0xff]
      %v301 = vld [vmem:[%s285 + $0x78] sm:$0xff]
      %v302 = vld [vmem:[%s285 + $0x80] sm:$0xff]
      %v303 = vld [vmem:[%s285 + $0x88] sm:$0xff]
      %v304 = vld [vmem:[%s285 + $0x90] sm:$0xff]
      %v305 = vld [vmem:[%s285 + $0x98] sm:$0xff]
      %v306 = vld [vmem:[%s285 + $0xa0] sm:$0xff]
      %v307 = vld [vmem:[%s285 + $0xa8] sm:$0xff]
      %v308 = vld [vmem:[%s285 + $0xb0] sm:$0xff]
      %v309 = vld [vmem:[%s285 + $0xb8] sm:$0xff]
      %v310 = vld [vmem:[%s285 + $0xc0] sm:$0xff]
      %v311 = vld [vmem:[%s285 + $0xc8] sm:$0xff]
      %v312 = vld [vmem:[%s285 + $0xd0] sm:$0xff]
      %v313 = vld [vmem:[%s285 + $0xd8] sm:$0xff]
      %v314 = vld [vmem:[%s285 + $0xe0] sm:$0xff]
      %v315 = vld [vmem:[%s285 + $0xe8] sm:$0xff]
      %v316 = vld [vmem:[%s285 + $0xf0] sm:$0xff]
      %v317 = vld [vmem:[%s285 + $0xf8] sm:$0xff]
      %v320 = vunpack.c.l.s4 1966171168
      %v321 = vunpack.c.0.s8 %v320
      %v322 = vlaneseq
      %v323 = vshrl.u32 %v322, 7
      %v324 = vsub.s32 %v321, %v323
      %v325 = vrot.slane %v252, %v324
      %v326 = vcombine.high %v325, %v325
      %v328 = vunpack.c.l.s4 1966171168
      %v329 = vunpack.c.0.s8 %v328
      %v330 = vlaneseq
      %v331 = vshrl.u32 %v330, 7
      %v332 = vsub.s32 %v329, %v331
      %v333 = vrot.slane %v325, %v332
      %v335 = vunpack.c.l.s4 1966171168
      %v336 = vunpack.c.0.s8 %v335
      %v337 = vlaneseq
      %v338 = vshrl.u32 %v337, 7
      %v339 = vsub.s32 %v336, %v338
      %v340 = vrot.slane %v326, %v339
      %v342 = vshrl.u32 %v333, 16
      %v345 = vshrl.u32 %v340, 16
      %v381 = vunpack.c.l.b16 %v286
      %v382 = vunpack.c.h.b16 %v286
      %v383 = vunpack.c.l.b16 %v287
      %v384 = vunpack.c.h.b16 %v287
      %v385 = vunpack.c.l.b16 %v288
      %v386 = vunpack.c.h.b16 %v288
      %v387 = vunpack.c.l.b16 %v289
      %v388 = vunpack.c.h.b16 %v289
      %v389 = vunpack.c.l.b16 %v290
      %v390 = vunpack.c.h.b16 %v290
      %v391 = vunpack.c.l.b16 %v291
      %v392 = vunpack.c.h.b16 %v291
      %v393 = vunpack.c.l.b16 %v292
      %v394 = vunpack.c.h.b16 %v292
      %v395 = vunpack.c.l.b16 %v293
      %v396 = vunpack.c.h.b16 %v293
      %v397 = vunpack.c.l.b16 %v294
      %v398 = vunpack.c.h.b16 %v294
      %v399 = vunpack.c.l.b16 %v295
      %v400 = vunpack.c.h.b16 %v295
      %v401 = vunpack.c.l.b16 %v296
      %v402 = vunpack.c.h.b16 %v296
      %v403 = vunpack.c.l.b16 %v297
      %v404 = vunpack.c.h.b16 %v297
      %v405 = vunpack.c.l.b16 %v298
      %v406 = vunpack.c.h.b16 %v298
      %v407 = vunpack.c.l.b16 %v299
      %v408 = vunpack.c.h.b16 %v299
      %v409 = vunpack.c.l.b16 %v300
      %v410 = vunpack.c.h.b16 %v300
      %v411 = vunpack.c.l.b16 %v301
      %v412 = vunpack.c.h.b16 %v301
      %v413 = vunpack.c.l.b16 %v302
      %v414 = vunpack.c.h.b16 %v302
      %v415 = vunpack.c.l.b16 %v303
      %v416 = vunpack.c.h.b16 %v303
      %v417 = vunpack.c.l.b16 %v304
      %v418 = vunpack.c.h.b16 %v304
      %v419 = vunpack.c.l.b16 %v305
      %v420 = vunpack.c.h.b16 %v305
      %v421 = vunpack.c.l.b16 %v306
      %v422 = vunpack.c.h.b16 %v306
      %v423 = vunpack.c.l.b16 %v307
      %v424 = vunpack.c.h.b16 %v307
      %v425 = vunpack.c.l.b16 %v308
      %v426 = vunpack.c.h.b16 %v308
      %v427 = vunpack.c.l.b16 %v309
      %v428 = vunpack.c.h.b16 %v309
      %v429 = vunpack.c.l.b16 %v310
      %v430 = vunpack.c.h.b16 %v310
      %v431 = vunpack.c.l.b16 %v311
      %v432 = vunpack.c.h.b16 %v311
      %v433 = vunpack.c.l.b16 %v312
      %v434 = vunpack.c.h.b16 %v312
      %v435 = vunpack.c.l.b16 %v313
      %v436 = vunpack.c.h.b16 %v313
      %v437 = vunpack.c.l.b16 %v314
      %v438 = vunpack.c.h.b16 %v314
      %v439 = vunpack.c.l.b16 %v315
      %v440 = vunpack.c.h.b16 %v315
      %v441 = vunpack.c.l.b16 %v316
      %v442 = vunpack.c.h.b16 %v316
      %v443 = vunpack.c.l.b16 %v317
      %v444 = vunpack.c.h.b16 %v317
      %v445 = vpack.c.b16 %v383, %v381
      %v446 = vpack.c.b16 %v384, %v382
      %v447 = vpack.c.b16 %v387, %v385
      %v448 = vpack.c.b16 %v388, %v386
      %v449 = vpack.c.b16 %v391, %v389
      %v450 = vpack.c.b16 %v392, %v390
      %v451 = vpack.c.b16 %v395, %v393
      %v452 = vpack.c.b16 %v396, %v394
      %v453 = vpack.c.b16 %v399, %v397
      %v454 = vpack.c.b16 %v400, %v398
      %v455 = vpack.c.b16 %v403, %v401
      %v456 = vpack.c.b16 %v404, %v402
      %v457 = vpack.c.b16 %v407, %v405
      %v458 = vpack.c.b16 %v408, %v406
      %v459 = vpack.c.b16 %v411, %v409
      %v460 = vpack.c.b16 %v412, %v410
      %v461 = vpack.c.b16 %v415, %v413
      %v462 = vpack.c.b16 %v416, %v414
      %v463 = vpack.c.b16 %v419, %v417
      %v464 = vpack.c.b16 %v420, %v418
      %v465 = vpack.c.b16 %v423, %v421
      %v466 = vpack.c.b16 %v424, %v422
      %v467 = vpack.c.b16 %v427, %v425
      %v468 = vpack.c.b16 %v428, %v426
      %v469 = vpack.c.b16 %v431, %v429
      %v470 = vpack.c.b16 %v432, %v430
      %v471 = vpack.c.b16 %v435, %v433
      %v472 = vpack.c.b16 %v436, %v434
      %v473 = vpack.c.b16 %v439, %v437
      %v474 = vpack.c.b16 %v440, %v438
      %v475 = vpack.c.b16 %v443, %v441
      %v476 = vpack.c.b16 %v444, %v442
      %509 = vmatprep.subr.bf16.mxu0 %v460
      %510 = vmatpush1.bf16.msra.mxu0 %v459
      %511 = vmatprep.subr.bf16.mxu0 %v458
      %512 = vmatpush1.bf16.msra.mxu0 %v457
      %513 = vmatprep.subr.bf16.mxu0 %v456
      %514 = vmatpush1.bf16.msra.mxu0 %v455
      %515 = vmatprep.subr.bf16.mxu0 %v454
      %516 = vmatpush1.bf16.msra.mxu0 %v453
      %517 = vmatprep.subr.bf16.mxu0 %v452
      %518 = vmatpush1.bf16.msra.mxu0 %v451
      %519 = vmatprep.subr.bf16.mxu0 %v450
      %520 = vmatpush1.bf16.msra.mxu0 %v449
      %521 = vmatprep.subr.bf16.mxu0 %v448
      %522 = vmatpush1.bf16.msra.mxu0 %v447
      %523 = vmatprep.subr.bf16.mxu0 %v446
      %524 = vmatpush1.bf16.msra.mxu0 %v445
      %525 = vmatprep.subr.bf16.mxu0 %v476
      %526 = vmatpush2.bf16.msra.mxu0 %v475
      %527 = vmatprep.subr.bf16.mxu0 %v474
      %528 = vmatpush2.bf16.msra.mxu0 %v473
      %529 = vmatprep.subr.bf16.mxu0 %v472
      %530 = vmatpush2.bf16.msra.mxu0 %v471
      %531 = vmatprep.subr.bf16.mxu0 %v470
      %532 = vmatpush2.bf16.msra.mxu0 %v469
      %533 = vmatprep.subr.bf16.mxu0 %v468
      %534 = vmatpush2.bf16.msra.mxu0 %v467
      %535 = vmatprep.subr.bf16.mxu0 %v466
      %536 = vmatpush2.bf16.msra.mxu0 %v465
      %537 = vmatprep.subr.bf16.mxu0 %v464
      %538 = vmatpush2.bf16.msra.mxu0 %v463
      %539 = vmatprep.subr.bf16.mxu0 %v462
      %540 = vmatpush2.bf16.msra.mxu0 %v461
      %541 = vmatprep.mubr.bf16.mxu0 %v345
      %542 = vmatmul.mubr.bf16.gmra.mxu0 %v342
      %v543 = vpop.f32.mrf.mxu0
      %v544 = vadd.f32 0.0, %v543
      %v545 = vpop.f32.mrf.mxu0
      %v546 = vadd.f32 0.0, %v545
      %v547 = vpop.f32.mrf.mxu0
      %v548 = vpop.f32.mrf.mxu0
      %549 = vdwg.mxu0
      %v584 = vunpack.c.l.b16 %v253
      %v585 = vunpack.c.h.b16 %v253
      %v586 = vunpack.c.l.b16 %v254
      %v587 = vunpack.c.h.b16 %v254
      %v588 = vunpack.c.l.b16 %v255
      %v589 = vunpack.c.h.b16 %v255
      %v590 = vunpack.c.l.b16 %v256
      %v591 = vunpack.c.h.b16 %v256
      %v592 = vunpack.c.l.b16 %v257
      %v593 = vunpack.c.h.b16 %v257
      %v594 = vunpack.c.l.b16 %v258
      %v595 = vunpack.c.h.b16 %v258
      %v596 = vunpack.c.l.b16 %v259
      %v597 = vunpack.c.h.b16 %v259
      %v598 = vunpack.c.l.b16 %v260
      %v599 = vunpack.c.h.b16 %v260
      %v600 = vunpack.c.l.b16 %v261
      %v601 = vunpack.c.h.b16 %v261
      %v602 = vunpack.c.l.b16 %v262
      %v603 = vunpack.c.h.b16 %v262
      %v604 = vunpack.c.l.b16 %v263
      %v605 = vunpack.c.h.b16 %v263
      %v606 = vunpack.c.l.b16 %v264
      %v607 = vunpack.c.h.b16 %v264
      %v608 = vunpack.c.l.b16 %v265
      %v609 = vunpack.c.h.b16 %v265
      %v610 = vunpack.c.l.b16 %v266
      %v611 = vunpack.c.h.b16 %v266
      %v612 = vunpack.c.l.b16 %v267
      %v613 = vunpack.c.h.b16 %v267
      %v614 = vunpack.c.l.b16 %v268
      %v615 = vunpack.c.h.b16 %v268
      %v616 = vunpack.c.l.b16 %v269
      %v617 = vunpack.c.h.b16 %v269
      %v618 = vunpack.c.l.b16 %v270
      %v619 = vunpack.c.h.b16 %v270
      %v620 = vunpack.c.l.b16 %v271
      %v621 = vunpack.c.h.b16 %v271
      %v622 = vunpack.c.l.b16 %v272
      %v623 = vunpack.c.h.b16 %v272
      %v624 = vunpack.c.l.b16 %v273
      %v625 = vunpack.c.h.b16 %v273
      %v626 = vunpack.c.l.b16 %v274
      %v627 = vunpack.c.h.b16 %v274
      %v628 = vunpack.c.l.b16 %v275
      %v629 = vunpack.c.h.b16 %v275
      %v630 = vunpack.c.l.b16 %v276
      %v631 = vunpack.c.h.b16 %v276
      %v632 = vunpack.c.l.b16 %v277
      %v633 = vunpack.c.h.b16 %v277
      %v634 = vunpack.c.l.b16 %v278
      %v635 = vunpack.c.h.b16 %v278
      %v636 = vunpack.c.l.b16 %v279
      %v637 = vunpack.c.h.b16 %v279
      %v638 = vunpack.c.l.b16 %v280
      %v639 = vunpack.c.h.b16 %v280
      %v640 = vunpack.c.l.b16 %v281
      %v641 = vunpack.c.h.b16 %v281
      %v642 = vunpack.c.l.b16 %v282
      %v643 = vunpack.c.h.b16 %v282
      %v644 = vunpack.c.l.b16 %v283
      %v645 = vunpack.c.h.b16 %v283
      %v646 = vunpack.c.l.b16 %v284
      %v647 = vunpack.c.h.b16 %v284
      %v648 = vpack.c.b16 %v586, %v584
      %v649 = vpack.c.b16 %v587, %v585
      %v650 = vpack.c.b16 %v590, %v588
      %v651 = vpack.c.b16 %v591, %v589
      %v652 = vpack.c.b16 %v594, %v592
      %v653 = vpack.c.b16 %v595, %v593
      %v654 = vpack.c.b16 %v598, %v596
      %v655 = vpack.c.b16 %v599, %v597
      %v656 = vpack.c.b16 %v602, %v600
      %v657 = vpack.c.b16 %v603, %v601
      %v658 = vpack.c.b16 %v606, %v604
      %v659 = vpack.c.b16 %v607, %v605
      %v660 = vpack.c.b16 %v610, %v608
      %v661 = vpack.c.b16 %v611, %v609
      %v662 = vpack.c.b16 %v614, %v612
      %v663 = vpack.c.b16 %v615, %v613
      %v664 = vpack.c.b16 %v618, %v616
      %v665 = vpack.c.b16 %v619, %v617
      %v666 = vpack.c.b16 %v622, %v620
      %v667 = vpack.c.b16 %v623, %v621
      %v668 = vpack.c.b16 %v626, %v624
      %v669 = vpack.c.b16 %v627, %v625
      %v670 = vpack.c.b16 %v630, %v628
      %v671 = vpack.c.b16 %v631, %v629
      %v672 = vpack.c.b16 %v634, %v632
      %v673 = vpack.c.b16 %v635, %v633
      %v674 = vpack.c.b16 %v638, %v636
      %v675 = vpack.c.b16 %v639, %v637
      %v676 = vpack.c.b16 %v642, %v640
      %v677 = vpack.c.b16 %v643, %v641
      %v678 = vpack.c.b16 %v646, %v644
      %v679 = vpack.c.b16 %v647, %v645
      %712 = vmatprep.subr.bf16.mxu0 %v663
      %713 = vmatpush1.bf16.msra.mxu0 %v662
      %714 = vmatprep.subr.bf16.mxu0 %v661
      %715 = vmatpush1.bf16.msra.mxu0 %v660
      %716 = vmatprep.subr.bf16.mxu0 %v659
      %717 = vmatpush1.bf16.msra.mxu0 %v658
      %718 = vmatprep.subr.bf16.mxu0 %v657
      %719 = vmatpush1.bf16.msra.mxu0 %v656
      %720 = vmatprep.subr.bf16.mxu0 %v655
      %721 = vmatpush1.bf16.msra.mxu0 %v654
      %722 = vmatprep.subr.bf16.mxu0 %v653
      %723 = vmatpush1.bf16.msra.mxu0 %v652
      %724 = vmatprep.subr.bf16.mxu0 %v651
      %725 = vmatpush1.bf16.msra.mxu0 %v650
      %726 = vmatprep.subr.bf16.mxu0 %v649
      %727 = vmatpush1.bf16.msra.mxu0 %v648
      %728 = vmatprep.subr.bf16.mxu0 %v679
      %729 = vmatpush2.bf16.msra.mxu0 %v678
      %730 = vmatprep.subr.bf16.mxu0 %v677
      %731 = vmatpush2.bf16.msra.mxu0 %v676
      %732 = vmatprep.subr.bf16.mxu0 %v675
      %733 = vmatpush2.bf16.msra.mxu0 %v674
      %734 = vmatprep.subr.bf16.mxu0 %v673
      %735 = vmatpush2.bf16.msra.mxu0 %v672
      %736 = vmatprep.subr.bf16.mxu0 %v671
      %737 = vmatpush2.bf16.msra.mxu0 %v670
      %738 = vmatprep.subr.bf16.mxu0 %v669
      %739 = vmatpush2.bf16.msra.mxu0 %v668
      %740 = vmatprep.subr.bf16.mxu0 %v667
      %741 = vmatpush2.bf16.msra.mxu0 %v666
      %742 = vmatprep.subr.bf16.mxu0 %v665
      %743 = vmatpush2.bf16.msra.mxu0 %v664
      %744 = vmatprep.mubr.bf16.mxu0 %v340
      %745 = vmatmul.mubr.bf16.gmra.mxu0 %v333
      %v746 = vpop.f32.mrf.mxu0
      %v747 = vadd.f32 %v544, %v746
      %v748 = vpop.f32.mrf.mxu0
      %v749 = vadd.f32 %v546, %v748
      %v750 = vpop.f32.mrf.mxu0
      %v751 = vpop.f32.mrf.mxu0
      %752 = vdwg.mxu0
      %v753 = vld [vmem:[%s242] sm:$0x3]
      %v756 = vcombine.low %v747, %v749
      %v758 = vunpack.c.l.s4 1966171168
      %v759 = vunpack.c.0.s8 %v758
      %v760 = vlaneseq
      %v761 = vshrl.u32 %v760, 7
      %v762 = vsub.s32 %v759, %v761
      %v763 = vrot.slane %v756, %v762
      %v765 = vunpack.c.l.s4 1966171168
      %v766 = vunpack.c.0.s8 %v765
      %v767 = vlaneseq
      %v768 = vshrl.u32 %v767, 7
      %v769 = vsub.s32 %v766, %v768
      %v770 = vrot.slane %v763, %v769
      %v772 = vadd.f32 %v753, %v770
      %v773 = vlaneseq
      %vm774 = vcmp.ge.s32.totalorder %v773, 0
      %vm775 = vcmp.lt.s32.totalorder %v773, 256
      %vm776 = vmand %vm774, %vm775
      %777 = vst.msk [vmem:[%s242] sm:$0x3] %vm776, %v772
      %p778 = scmp.eq.s32.totalorder %s21, 2
      // Predicated region
      $region37: #{pose_cnn_forward.12} parent=31 // pred_check
        %p779 = pneg %p778
      $region38: #{pose_cnn_forward.12} parent=31 // pred_check_branch
        %781 = sbr.rel (%p779) target = $region40
      $region39: #{pose_cnn_forward.12} parent=31 // pred_region
        %v782 = vld [vmem:[%s242] sm:$0x3]
        %v783 = vld [vmem:[%s2] sm:$0x3]
        %v784 = vadd.f32 %v782, %v783
        %v785 = vmax.f32 %v784, 0.0
        %786 = vst.msk [vmem:[%s242] sm:$0x3] %vm776, %v785
      $region40: #{pose_cnn_forward.12} parent=31 // pred_fallthru
        _
      %p787 = scmp.lt.s32.totalorder %s19, 1
      %s788 = scalar_select %p787, %s19, 1
      %p789 = scmp.lt.s32.totalorder %s20, 0
      %s790 = scalar_select %p789, %s20, 0
      %s791 = smul.addr %s790, 2
      %s792 = smul.addr %s788, 2
      %s793 = sadd.s32 %s791, %s792
      %s794 = scalar_lea.vmem %s3, %s793
      // Predicated region
      $region41: #{pose_cnn_forward.12} parent=31 // pred_check
        %p795 = pneg %p132
      $region42: #{pose_cnn_forward.12} parent=31 // pred_check_branch
        %797 = sbr.rel (%p795) target = $region44
      $region43: #{pose_cnn_forward.12} parent=31 // pred_region
        _
      $region44: #{pose_cnn_forward.12} parent=31 // pred_fallthru
        _
    $region32: #{pose_cnn_forward.12} parent=5 // pred_fallthru
      _
    %p798 = scmp.le.s32.totalorder 2, %s9
    // Predicated region
    $region45: #{pose_cnn_forward.12} parent=5 // pred_check
      %p799 = pneg %p798
    $region46: #{pose_cnn_forward.12} parent=5 // pred_check_branch
      %801 = sbr.rel (%p799) target = $region48
    $region47: #{pose_cnn_forward.12} parent=5 // pred_region
      %s802 = ssub.s32 %s9, 2
      // Predicated region
      $region49: #{pose_cnn_forward.12} parent=47 // pred_check
        %p803 = pneg %p138
      $region50: #{pose_cnn_forward.12} parent=47 // pred_check_branch
        %805 = sbr.rel (%p803) target = $region52
      $region51: #{pose_cnn_forward.12} parent=47 // pred_region
        %p806 = scmp.lt.s32.totalorder %s22, 1
        %s807 = scalar_select %p806, %s22, 1
        %p808 = scmp.lt.s32.totalorder %s23, 0
        %s809 = scalar_select %p808, %s23, 0
        %s810 = smul.addr %s809, 2
        %s811 = smul.addr %s807, 2
        %s812 = sadd.s32 %s810, %s811
        %s813 = scalar_lea.vmem %s3, %s812
      $region52: #{pose_cnn_forward.12} parent=47 // pred_fallthru
        _
    $region48: #{pose_cnn_forward.12} parent=5 // pred_fallthru
      _
  $region6: #{pose_cnn_forward.12} parent=0 // loop_footer
    %s13 = sadd.s32 1, %s9
  $region7: #{pose_cnn_forward.12} parent=0 // loop_footer_branch
    %8 = sbr.rel target = $region3
  $region8: #{pose_cnn_forward.12} parent=0 // loop_exit
    _

// kernel: pose_cnn_forward.11
$region0: #{pose_cnn_forward.11}
  #allocation0 [shape = 'u32[]', space=smem, size = 0x4, offset = 0x4, fixed_abs, tag = 'smem constant byte address 0x4 - core index']
  #allocation1 [shape = 'u32[144,128]{1,0:T(1,128)}', space=vmem, size = 0x12000, scoped, tag = 'internal scratch']
  %s0 = inlined_call_operand.vmem [shape: bf16[6,2,3,256], index: 0, kind: input, shape index: {}]
  %s1 = inlined_call_operand.vmem [shape: bf16[3,2,256,128], index: 1, kind: input, shape index: {}]
  %s2 = inlined_call_operand.vmem [shape: f32[1,128], index: 2, kind: input, shape index: {}]
  %s3 = inlined_call_operand.vmem [shape: f32[2,2,2,128], index: 3, kind: output, shape index: {}]
  %s4 = sld [smem:[#allocation0]]
  $region60: #{pose_cnn_forward.11} parent=0
    _
  %s6 = ssub.s32 1, %s4
  %s7 = scalar_select 0, %s6, %s4
  loop: start=0, step=1, limit=8
  $region2: #{pose_cnn_forward.11} parent=0 // loop_pre_header
    _
  $region3: #{pose_cnn_forward.11} parent=0 // loop_header
    %s9 = sphi 0, %s13
    %p10 = scmp.ge.s32.totalorder %s9, 8
    %s16 = sphi 0, %s35
    %s17 = sphi 0, %s31
    %s18 = sphi 0, %s27
    %s19 = sphi 0, %s16
    %s20 = sphi 0, %s17
    %s21 = sphi 0, %s18
    %s22 = sphi 0, %s19
    %s23 = sphi 0, %s20
    %s24 = sphi 0, %s21
    %s44 = sphi 0, %s46
    %s47 = sphi 0, %s44
    %s48 = sphi 0, %s47
    %s64 = sphi 0, %s48
    %s70 = sphi 0, %s72
    %s73 = sphi 0, %s70
    %s74 = sphi 0, %s73
    %s90 = sphi 0, %s74
    %s94 = sphi 0, %s94
    %s96 = sphi 0, %s94
    %s97 = sphi 0, %s96
    %s111 = sphi 0, %s97
    %s119 = sphi 0, %s121
    %s122 = sphi 0, %s119
    %s123 = sphi 0, %s122
    %s139 = sphi 0, %s123
  $region4: #{pose_cnn_forward.11} parent=0 // loop_header_branch
    %12 = sbr.rel (%p10) target = $region8
  $region5: #{pose_cnn_forward.11} parent=0 // loop_body
    %s14 = ssub.s32 %s9, 1
    %s15 = ssub.s32 %s9, 2
    %s25 = sadd.s32 1, %s18
    %p26 = scmp.ge.s32.totalorder %s25, 3
    %s27 = scalar_select %p26, 0, %s25
    %s28 = sadd.s32 1, %s17
    %s29 = scalar_select %p26, %s28, %s17
    %p30 = scmp.ge.s32.totalorder %s29, 1
    %s31 = scalar_select %p30, 0, %s29
    %s32 = sadd.s32 1, %s16
    %s33 = scalar_select %p30, %s32, %s16
    %p34 = scmp.ge.s32.totalorder %s33, 2
    %s35 = scalar_select %p34, 0, %s33
    %s36 = smul.u32 %s18, 2
    %s37 = sadd.s32 %s36, %s16
    %s38 = smul.u32 %s27, 2
    %s39 = sadd.s32 %s38, %s35
    %s40 = ssub.s32 %s37, %s39
    %s41 = ssub.s32 %s17, %s31
    %s42 = sor.u32 %s40, %s41
    %p43 = scmp.eq.s32.totalorder %s42, 0
    %s45 = sadd.s32 %s44, 1
    %s46 = scalar_select %p43, %s44, %s45
    %p49 = pneg %p43
    %p50 = scmp.eq.s32.totalorder %s9, 5
    %p51 = por %p49, %p50
    %p52 = scmp.ne.s32.totalorder %s44, %s47
    %p53 = scmp.eq.s32.totalorder %s9, 0
    %p54 = por %p52, %p53
    %p55 = scmp.ne.s32.totalorder %s44, %s47
    %p56 = scmp.eq.s32.totalorder %s14, 5
    %p57 = por %p55, %p56
    %p58 = scmp.ne.s32.totalorder %s47, %s48
    %p59 = scmp.eq.s32.totalorder %s14, 0
    %p60 = por %p58, %p59
    %p61 = scmp.ne.s32.totalorder %s47, %s48
    %p62 = scmp.eq.s32.totalorder %s15, 5
    %p63 = por %p61, %p62
    %p65 = scmp.ne.s32.totalorder %s48, %s64
    %p66 = scmp.eq.s32.totalorder %s15, 0
    %p67 = por %p65, %p66
    %s68 = ssub.s32 %s18, %s27
    %p69 = scmp.eq.s32.totalorder %s68, 0
    %s71 = sadd.s32 %s70, 1
    %s72 = scalar_select %p69, %s70, %s71
    %p75 = pneg %p69
    %p76 = scmp.eq.s32.totalorder %s9, 5
    %p77 = por %p75, %p76
    %p78 = scmp.ne.s32.totalorder %s70, %s73
    %p79 = scmp.eq.s32.totalorder %s9, 0
    %p80 = por %p78, %p79
    %p81 = scmp.ne.s32.totalorder %s70, %s73
    %p82 = scmp.eq.s32.totalorder %s14, 5
    %p83 = por %p81, %p82
    %p84 = scmp.ne.s32.totalorder %s73, %s74
    %p85 = scmp.eq.s32.totalorder %s14, 0
    %p86 = por %p84, %p85
    %p87 = scmp.ne.s32.totalorder %s73, %s74
    %p88 = scmp.eq.s32.totalorder %s15, 5
    %p89 = por %p87, %p88
    %p91 = scmp.ne.s32.totalorder %s74, %s90
    %p92 = scmp.eq.s32.totalorder %s15, 0
    %p93 = por %p91, %p92
    %s95 = sadd.s32 %s94, 1
    %p98 = scmp.eq.s32.totalorder %s9, 5
    %p99 = scmp.ne.s32.totalorder %s94, %s96
    %p100 = scmp.eq.s32.totalorder %s9, 0
    %p101 = por %p99, %p100
    %p102 = scmp.ne.s32.totalorder %s94, %s96
    %p103 = scmp.eq.s32.totalorder %s14, 5
    %p104 = por %p102, %p103
    %p105 = scmp.ne.s32.totalorder %s96, %s97
    %p106 = scmp.eq.s32.totalorder %s14, 0
    %p107 = por %p105, %p106
    %p108 = scmp.ne.s32.totalorder %s96, %s97
    %p109 = scmp.eq.s32.totalorder %s15, 5
    %p110 = por %p108, %p109
    %p112 = scmp.ne.s32.totalorder %s97, %s111
    %p113 = scmp.eq.s32.totalorder %s15, 0
    %p114 = por %p112, %p113
    %s115 = ssub.s32 %s16, %s35
    %s116 = ssub.s32 %s17, %s31
    %s117 = sor.u32 %s115, %s116
    %p118 = scmp.eq.s32.totalorder %s117, 0
    %s120 = sadd.s32 %s119, 1
    %s121 = scalar_select %p118, %s119, %s120
    %p124 = pneg %p118
    %p125 = scmp.eq.s32.totalorder %s9, 5
    %p126 = por %p124, %p125
    %p127 = scmp.ne.s32.totalorder %s119, %s122
    %p128 = scmp.eq.s32.totalorder %s9, 0
    %p129 = por %p127, %p128
    %p130 = scmp.ne.s32.totalorder %s119, %s122
    %p131 = scmp.eq.s32.totalorder %s14, 5
    %p132 = por %p130, %p131
    %p133 = scmp.ne.s32.totalorder %s122, %s123
    %p134 = scmp.eq.s32.totalorder %s14, 0
    %p135 = por %p133, %p134
    %p136 = scmp.ne.s32.totalorder %s122, %s123
    %p137 = scmp.eq.s32.totalorder %s15, 5
    %p138 = por %p136, %p137
    %p140 = scmp.ne.s32.totalorder %s123, %s139
    %p141 = scmp.eq.s32.totalorder %s15, 0
    %p142 = por %p140, %p141
    %p143 = scmp.le.s32.totalorder 1, %s9
    %p144 = scmp.lt.s32.totalorder %s9, 7
    %p145 = pnand %p143, %p144
    %p146 = pneg %p145
    // Predicated region
    $region9: #{pose_cnn_forward.11} parent=5 // pred_check
      _
    $region10: #{pose_cnn_forward.11} parent=5 // pred_check_branch
      %148 = sbr.rel (%p145) target = $region12
    $region11: #{pose_cnn_forward.11} parent=5 // pred_region
      %s149 = ssub.s32 %s9, 1
      // Predicated region
      $region13: #{pose_cnn_forward.11} parent=11 // pred_check
        %p150 = pneg %p107
      $region14: #{pose_cnn_forward.11} parent=11 // pred_check_branch
        %152 = sbr.rel (%p150) target = $region16
      $region15: #{pose_cnn_forward.11} parent=11 // pred_region
        _
      $region16: #{pose_cnn_forward.11} parent=11 // pred_fallthru
        _
    $region12: #{pose_cnn_forward.11} parent=5 // pred_fallthru
      _
    %p153 = scmp.lt.s32.totalorder %s9, 6
    // Predicated region
    $region17: #{pose_cnn_forward.11} parent=5 // pred_check
      %p154 = pneg %p153
    $region18: #{pose_cnn_forward.11} parent=5 // pred_check_branch
      %156 = sbr.rel (%p154) target = $region20
    $region19: #{pose_cnn_forward.11} parent=5 // pred_region
      // Predicated region
      $region21: #{pose_cnn_forward.11} parent=19 // pred_check
        %p157 = pneg %p54
      $region22: #{pose_cnn_forward.11} parent=19 // pred_check_branch
        %159 = sbr.rel (%p157) target = $region24
      $region23: #{pose_cnn_forward.11} parent=19 // pred_region
        %s160 = smul.u32 %s18, 2
        %s161 = sadd.s32 %s160, %s16
        %s162 = smul.u32 2, %s17
        %p163 = scmp.lt.s32.totalorder %s161, 5
        %s164 = scalar_select %p163, %s161, 5
        %p165 = scmp.lt.s32.totalorder %s162, 1
        %s166 = scalar_select %p165, %s162, 1
        %s167 = smul.addr %s166, 2
        %s168 = smul.addr %s164, 4
        %s169 = sadd.s32 %s167, %s168
        %s170 = smul.addr %s169, 2
        %s171 = scalar_lea.vmem %s0, %s170
        %s172 = smul.u32 %s18, 2
        %s173 = sadd.s32 %s172, %s16
        %s174 = smul.u32 2, %s17
      $region24: #{pose_cnn_forward.11} parent=19 // pred_fallthru
        _
      // Predicated region
      $region25: #{pose_cnn_forward.11} parent=19 // pred_check
        %p175 = pneg %p80
      $region26: #{pose_cnn_forward.11} parent=19 // pred_check_branch
        %177 = sbr.rel (%p175) target = $region28
      $region27: #{pose_cnn_forward.11} parent=19 // pred_region
        %p178 = scmp.lt.s32.totalorder %s18, 2
        %s179 = scalar_select %p178, %s18, 2
        %s180 = smul.addr %s179, 64
        %s181 = smul.addr %s180, 4
        %s182 = scalar_lea.vmem %s1, %s181
      $region28: #{pose_cnn_forward.11} parent=19 // pred_fallthru
        _
    $region20: #{pose_cnn_forward.11} parent=5 // pred_fallthru
      _
    %p183 = scmp.le.s32.totalorder 1, %s9
    %p184 = scmp.lt.s32.totalorder %s9, 7
    %p185 = pnand %p183, %p184
    %p186 = pneg %p185
    // Predicated region
    $region29: #{pose_cnn_forward.11} parent=5 // pred_check
      _
    $region30: #{pose_cnn_forward.11} parent=5 // pred_check_branch
      %188 = sbr.rel (%p185) target = $region32
    $region31: #{pose_cnn_forward.11} parent=5 // pred_region
      %s189 = ssub.s32 %s9, 1
      %s190 = smul.u32 %s21, 2
      %s191 = sadd.s32 %s190, %s19
      %s192 = smul.u32 2, %s20
      %p193 = scmp.lt.s32.totalorder %s191, 5
      %s194 = scalar_select %p193, %s191, 5
      %p195 = scmp.lt.s32.totalorder %s192, 1
      %s196 = scalar_select %p195, %s192, 1
      %s197 = smul.addr %s196, 2
      %s198 = smul.addr %s194, 4
      %s199 = sadd.s32 %s197, %s198
      %s200 = smul.addr %s199, 2
      %s201 = scalar_lea.vmem %s0, %s200
      %p202 = pneg %p60
      %p203 = pneg %p57
      %p204 = scmp.lt.s32.totalorder %s21, 2
      %s205 = scalar_select %p204, %s21, 2
      %s206 = smul.addr %s205, 64
      %s207 = smul.addr %s206, 4
      %s208 = scalar_lea.vmem %s1, %s207
      %p209 = pneg %p86
      %p210 = pneg %p83
      %p211 = pneg %p107
      %p212 = pneg %p104
      %p213 = pneg %p135
      %p214 = pneg %p132
      %s215 = smul.u32 2, %s20
      %p216 = scmp.lt.s32.totalorder %s19, 1
      %s217 = scalar_select %p216, %s19, 1
      %p218 = scmp.lt.s32.totalorder %s215, 1
      %s219 = scalar_select %p218, %s215, 1
      %s220 = smul.addr %s217, 2
      %s221 = sadd.s32 %s219, %s220
      %s222 = smul.addr %s221, 2
      %s223 = scalar_lea.vmem %s3, %s222
      %s224 = smul.u32 %s21, 2
      %s225 = sadd.s32 %s224, %s19
      %s226 = smul.u32 2, %s20
      %p227 = scmp.lt.s32.totalorder %s225, 5
      %s228 = scalar_select %p227, %s225, 5
      %p229 = scmp.lt.s32.totalorder %s226, 1
      %s230 = scalar_select %p229, %s226, 1
      %s231 = smul.addr %s230, 2
      %s232 = smul.addr %s228, 4
      %s233 = sadd.s32 %s231, %s232
      %s234 = smul.addr %s233, 2
      %s235 = scalar_lea.vmem %s0, %s234
      %s236 = smul.u32 %s21, 2
      %s237 = sadd.s32 %s236, %s19
      %s238 = smul.u32 2, %s20
      %p239 = scmp.lt.s32.totalorder %s21, 2
      %s240 = scalar_select %p239, %s21, 2
      %s241 = smul.addr %s240, 64
      %s242 = smul.addr %s241, 4
      %s243 = scalar_lea.vmem %s1, %s242
      %s244 = smul.u32 2, %s20
      %p245 = scmp.lt.s32.totalorder %s19, 1
      %s246 = scalar_select %p245, %s19, 1
      %p247 = scmp.lt.s32.totalorder %s244, 1
      %s248 = scalar_select %p247, %s244, 1
      %s249 = smul.addr %s246, 2
      %s250 = sadd.s32 %s248, %s249
      %s251 = smul.addr %s250, 2
      %s252 = scalar_lea.vmem %s3, %s251
      %s253 = smul.u32 2, %s20
      %p255 = scmp.eq.s32.totalorder %s21, 0
      // Predicated region
      $region33: #{pose_cnn_forward.11} parent=31 // pred_check
        %p256 = pneg %p255
      $region34: #{pose_cnn_forward.11} parent=31 // pred_check_branch
        %258 = sbr.rel (%p256) target = $region36
      $region35: #{pose_cnn_forward.11} parent=31 // pred_region
        %259 = vst [vmem:[%s252] sm:$0x3] 0.0
        %260 = vst [vmem:[%s252 + $0x2] sm:$0x3] 0.0
      $region36: #{pose_cnn_forward.11} parent=31 // pred_fallthru
        _
      loop: start=0, step=1, limit=2
      $region37: #{pose_cnn_forward.11} parent=31 // loop_pre_header
        _
      $region38: #{pose_cnn_forward.11} parent=31 // loop_header
        %s262 = sphi 0, %s266
        %p263 = scmp.ge.s32.totalorder %s262, 2
      $region39: #{pose_cnn_forward.11} parent=31 // loop_header_branch
        %265 = sbr.rel (%p263) target = $region43
      $region40: #{pose_cnn_forward.11} parent=31 // loop_body
        %s267 = smul.u32 %s262, 2
        %s268 = smul.addr %s267, 2
        %s269 = scalar_lea.vmem %s235, %s268
        %v270 = vld [vmem:[%s269] sm:$0xf]
        %v271 = vld [vmem:[%s243] sm:$0xf]
        %v272 = vld [vmem:[%s243 + $0x4] sm:$0xf]
        %v273 = vld [vmem:[%s243 + $0x8] sm:$0xf]
        %v274 = vld [vmem:[%s243 + $0xc] sm:$0xf]
        %v275 = vld [vmem:[%s243 + $0x10] sm:$0xf]
        %v276 = vld [vmem:[%s243 + $0x14] sm:$0xf]
        %v277 = vld [vmem:[%s243 + $0x18] sm:$0xf]
        %v278 = vld [vmem:[%s243 + $0x1c] sm:$0xf]
        %v279 = vld [vmem:[%s243 + $0x20] sm:$0xf]
        %v280 = vld [vmem:[%s243 + $0x24] sm:$0xf]
        %v281 = vld [vmem:[%s243 + $0x28] sm:$0xf]
        %v282 = vld [vmem:[%s243 + $0x2c] sm:$0xf]
        %v283 = vld [vmem:[%s243 + $0x30] sm:$0xf]
        %v284 = vld [vmem:[%s243 + $0x34] sm:$0xf]
        %v285 = vld [vmem:[%s243 + $0x38] sm:$0xf]
        %v286 = vld [vmem:[%s243 + $0x3c] sm:$0xf]
        %v287 = vld [vmem:[%s243 + $0x40] sm:$0xf]
        %v288 = vld [vmem:[%s243 + $0x44] sm:$0xf]
        %v289 = vld [vmem:[%s243 + $0x48] sm:$0xf]
        %v290 = vld [vmem:[%s243 + $0x4c] sm:$0xf]
        %v291 = vld [vmem:[%s243 + $0x50] sm:$0xf]
        %v292 = vld [vmem:[%s243 + $0x54] sm:$0xf]
        %v293 = vld [vmem:[%s243 + $0x58] sm:$0xf]
        %v294 = vld [vmem:[%s243 + $0x5c] sm:$0xf]
        %v295 = vld [vmem:[%s243 + $0x60] sm:$0xf]
        %v296 = vld [vmem:[%s243 + $0x64] sm:$0xf]
        %v297 = vld [vmem:[%s243 + $0x68] sm:$0xf]
        %v298 = vld [vmem:[%s243 + $0x6c] sm:$0xf]
        %v299 = vld [vmem:[%s243 + $0x70] sm:$0xf]
        %v300 = vld [vmem:[%s243 + $0x74] sm:$0xf]
        %v301 = vld [vmem:[%s243 + $0x78] sm:$0xf]
        %v302 = vld [vmem:[%s243 + $0x7c] sm:$0xf]
        %s303 = scalar_lea.vmem %s243, 128
        %v304 = vld [vmem:[%s303] sm:$0xf]
        %v305 = vld [vmem:[%s303 + $0x4] sm:$0xf]
        %v306 = vld [vmem:[%s303 + $0x8] sm:$0xf]
        %v307 = vld [vmem:[%s303 + $0xc] sm:$0xf]
        %v308 = vld [vmem:[%s303 + $0x10] sm:$0xf]
        %v309 = vld [vmem:[%s303 + $0x14] sm:$0xf]
        %v310 = vld [vmem:[%s303 + $0x18] sm:$0xf]
        %v311 = vld [vmem:[%s303 + $0x1c] sm:$0xf]
        %v312 = vld [vmem:[%s303 + $0x20] sm:$0xf]
        %v313 = vld [vmem:[%s303 + $0x24] sm:$0xf]
        %v314 = vld [vmem:[%s303 + $0x28] sm:$0xf]
        %v315 = vld [vmem:[%s303 + $0x2c] sm:$0xf]
        %v316 = vld [vmem:[%s303 + $0x30] sm:$0xf]
        %v317 = vld [vmem:[%s303 + $0x34] sm:$0xf]
        %v318 = vld [vmem:[%s303 + $0x38] sm:$0xf]
        %v319 = vld [vmem:[%s303 + $0x3c] sm:$0xf]
        %v320 = vld [vmem:[%s303 + $0x40] sm:$0xf]
        %v321 = vld [vmem:[%s303 + $0x44] sm:$0xf]
        %v322 = vld [vmem:[%s303 + $0x48] sm:$0xf]
        %v323 = vld [vmem:[%s303 + $0x4c] sm:$0xf]
        %v324 = vld [vmem:[%s303 + $0x50] sm:$0xf]
        %v325 = vld [vmem:[%s303 + $0x54] sm:$0xf]
        %v326 = vld [vmem:[%s303 + $0x58] sm:$0xf]
        %v327 = vld [vmem:[%s303 + $0x5c] sm:$0xf]
        %v328 = vld [vmem:[%s303 + $0x60] sm:$0xf]
        %v329 = vld [vmem:[%s303 + $0x64] sm:$0xf]
        %v330 = vld [vmem:[%s303 + $0x68] sm:$0xf]
        %v331 = vld [vmem:[%s303 + $0x6c] sm:$0xf]
        %v332 = vld [vmem:[%s303 + $0x70] sm:$0xf]
        %v333 = vld [vmem:[%s303 + $0x74] sm:$0xf]
        %v334 = vld [vmem:[%s303 + $0x78] sm:$0xf]
        %v335 = vld [vmem:[%s303 + $0x7c] sm:$0xf]
        %v338 = vunpack.c.l.s4 1983009808
        %v339 = vunpack.c.0.s8 %v338
        %v340 = vlaneseq
        %v341 = vshrl.u32 %v340, 7
        %v342 = vsub.s32 %v339, %v341
        %v343 = vrot.slane %v270, %v342
        %v344 = vcombine.high %v343, %v343
        %v346 = vshrl.u32 %v343, 16
        %v348 = vshll.u32 %v343, 16
        %v350 = vrot.slane %v348, 1
        %v351 = vor.u32 %v346, %v350
        %v353 = vshrl.u32 %v344, 16
        %v355 = vshll.u32 %v344, 16
        %v357 = vrot.slane %v355, 1
        %v358 = vor.u32 %v353, %v357
        %v393 = vunpack.c.l.b16 %v304
        %v394 = vunpack.c.l.b16 %v305
        %v395 = vunpack.c.l.b16 %v306
        %v396 = vunpack.c.l.b16 %v307
        %v397 = vunpack.c.l.b16 %v308
        %v398 = vunpack.c.l.b16 %v309
        %v399 = vunpack.c.l.b16 %v310
        %v400 = vunpack.c.l.b16 %v311
        %v401 = vunpack.c.l.b16 %v312
        %v402 = vunpack.c.l.b16 %v313
        %v403 = vunpack.c.l.b16 %v314
        %v404 = vunpack.c.l.b16 %v315
        %v405 = vunpack.c.l.b16 %v316
        %v406 = vunpack.c.l.b16 %v317
        %v407 = vunpack.c.l.b16 %v318
        %v408 = vunpack.c.l.b16 %v319
        %v409 = vunpack.c.l.b16 %v320
        %v410 = vunpack.c.l.b16 %v321
        %v411 = vunpack.c.l.b16 %v322
        %v412 = vunpack.c.l.b16 %v323
        %v413 = vunpack.c.l.b16 %v324
        %v414 = vunpack.c.l.b16 %v325
        %v415 = vunpack.c.l.b16 %v326
        %v416 = vunpack.c.l.b16 %v327
        %v417 = vunpack.c.l.b16 %v328
        %v418 = vunpack.c.l.b16 %v329
        %v419 = vunpack.c.l.b16 %v330
        %v420 = vunpack.c.l.b16 %v331
        %v421 = vunpack.c.l.b16 %v332
        %v422 = vunpack.c.l.b16 %v333
        %v423 = vunpack.c.l.b16 %v334
        %v424 = vunpack.c.l.b16 %v335
        %v425 = vpack.c.b16 %v394, %v393
        %v426 = vpack.c.b16 %v396, %v395
        %v427 = vpack.c.b16 %v398, %v397
        %v428 = vpack.c.b16 %v400, %v399
        %v429 = vpack.c.b16 %v402, %v401
        %v430 = vpack.c.b16 %v404, %v403
        %v431 = vpack.c.b16 %v406, %v405
        %v432 = vpack.c.b16 %v408, %v407
        %v433 = vpack.c.b16 %v410, %v409
        %v434 = vpack.c.b16 %v412, %v411
        %v435 = vpack.c.b16 %v414, %v413
        %v436 = vpack.c.b16 %v416, %v415
        %v437 = vpack.c.b16 %v418, %v417
        %v438 = vpack.c.b16 %v420, %v419
        %v439 = vpack.c.b16 %v422, %v421
        %v440 = vpack.c.b16 %v424, %v423
        %457 = vmatprep.subr.bf16.mxu0 0
        %458 = vmatpush1.bf16.msra.mxu0 %v432
        %459 = vmatprep.subr.bf16.mxu0 0
        %460 = vmatpush1.bf16.msra.mxu0 %v431
        %461 = vmatprep.subr.bf16.mxu0 0
        %462 = vmatpush1.bf16.msra.mxu0 %v430
        %463 = vmatprep.subr.bf16.mxu0 0
        %464 = vmatpush1.bf16.msra.mxu0 %v429
        %465 = vmatprep.subr.bf16.mxu0 0
        %466 = vmatpush1.bf16.msra.mxu0 %v428
        %467 = vmatprep.subr.bf16.mxu0 0
        %468 = vmatpush1.bf16.msra.mxu0 %v427
        %469 = vmatprep.subr.bf16.mxu0 0
        %470 = vmatpush1.bf16.msra.mxu0 %v426
        %471 = vmatprep.subr.bf16.mxu0 0
        %472 = vmatpush1.bf16.msra.mxu0 %v425
        %473 = vmatprep.subr.bf16.mxu0 0
        %474 = vmatpush2.bf16.msra.mxu0 %v440
        %475 = vmatprep.subr.bf16.mxu0 0
        %476 = vmatpush2.bf16.msra.mxu0 %v439
        %477 = vmatprep.subr.bf16.mxu0 0
        %478 = vmatpush2.bf16.msra.mxu0 %v438
        %479 = vmatprep.subr.bf16.mxu0 0
        %480 = vmatpush2.bf16.msra.mxu0 %v437
        %481 = vmatprep.subr.bf16.mxu0 0
        %482 = vmatpush2.bf16.msra.mxu0 %v436
        %483 = vmatprep.subr.bf16.mxu0 0
        %484 = vmatpush2.bf16.msra.mxu0 %v435
        %485 = vmatprep.subr.bf16.mxu0 0
        %486 = vmatpush2.bf16.msra.mxu0 %v434
        %487 = vmatprep.subr.bf16.mxu0 0
        %488 = vmatpush2.bf16.msra.mxu0 %v433
        %489 = vmatprep.mubr.bf16.mxu0 %v358
        %490 = vmatmul.mubr.bf16.gmra.mxu0 %v351
        %v491 = vpop.f32.mrf.mxu0
        %v492 = vadd.f32 0.0, %v491
        %v493 = vpop.f32.mrf.mxu0
        %v494 = vpop.f32.mrf.mxu0
        %v495 = vpop.f32.mrf.mxu0
        %496 = vdwg.mxu0
        %v531 = vunpack.c.l.b16 %v271
        %v532 = vunpack.c.l.b16 %v272
        %v533 = vunpack.c.l.b16 %v273
        %v534 = vunpack.c.l.b16 %v274
        %v535 = vunpack.c.l.b16 %v275
        %v536 = vunpack.c.l.b16 %v276
        %v537 = vunpack.c.l.b16 %v277
        %v538 = vunpack.c.l.b16 %v278
        %v539 = vunpack.c.l.b16 %v279
        %v540 = vunpack.c.l.b16 %v280
        %v541 = vunpack.c.l.b16 %v281
        %v542 = vunpack.c.l.b16 %v282
        %v543 = vunpack.c.l.b16 %v283
        %v544 = vunpack.c.l.b16 %v284
        %v545 = vunpack.c.l.b16 %v285
        %v546 = vunpack.c.l.b16 %v286
        %v547 = vunpack.c.l.b16 %v287
        %v548 = vunpack.c.l.b16 %v288
        %v549 = vunpack.c.l.b16 %v289
        %v550 = vunpack.c.l.b16 %v290
        %v551 = vunpack.c.l.b16 %v291
        %v552 = vunpack.c.l.b16 %v292
        %v553 = vunpack.c.l.b16 %v293
        %v554 = vunpack.c.l.b16 %v294
        %v555 = vunpack.c.l.b16 %v295
        %v556 = vunpack.c.l.b16 %v296
        %v557 = vunpack.c.l.b16 %v297
        %v558 = vunpack.c.l.b16 %v298
        %v559 = vunpack.c.l.b16 %v299
        %v560 = vunpack.c.l.b16 %v300
        %v561 = vunpack.c.l.b16 %v301
        %v562 = vunpack.c.l.b16 %v302
        %v563 = vpack.c.b16 %v532, %v531
        %v564 = vpack.c.b16 %v534, %v533
        %v565 = vpack.c.b16 %v536, %v535
        %v566 = vpack.c.b16 %v538, %v537
        %v567 = vpack.c.b16 %v540, %v539
        %v568 = vpack.c.b16 %v542, %v541
        %v569 = vpack.c.b16 %v544, %v543
        %v570 = vpack.c.b16 %v546, %v545
        %v571 = vpack.c.b16 %v548, %v547
        %v572 = vpack.c.b16 %v550, %v549
        %v573 = vpack.c.b16 %v552, %v551
        %v574 = vpack.c.b16 %v554, %v553
        %v575 = vpack.c.b16 %v556, %v555
        %v576 = vpack.c.b16 %v558, %v557
        %v577 = vpack.c.b16 %v560, %v559
        %v578 = vpack.c.b16 %v562, %v561
        %595 = vmatprep.subr.bf16.mxu0 0
        %596 = vmatpush1.bf16.msra.mxu0 %v570
        %597 = vmatprep.subr.bf16.mxu0 0
        %598 = vmatpush1.bf16.msra.mxu0 %v569
        %599 = vmatprep.subr.bf16.mxu0 0
        %600 = vmatpush1.bf16.msra.mxu0 %v568
        %601 = vmatprep.subr.bf16.mxu0 0
        %602 = vmatpush1.bf16.msra.mxu0 %v567
        %603 = vmatprep.subr.bf16.mxu0 0
        %604 = vmatpush1.bf16.msra.mxu0 %v566
        %605 = vmatprep.subr.bf16.mxu0 0
        %606 = vmatpush1.bf16.msra.mxu0 %v565
        %607 = vmatprep.subr.bf16.mxu0 0
        %608 = vmatpush1.bf16.msra.mxu0 %v564
        %609 = vmatprep.subr.bf16.mxu0 0
        %610 = vmatpush1.bf16.msra.mxu0 %v563
        %611 = vmatprep.subr.bf16.mxu0 0
        %612 = vmatpush2.bf16.msra.mxu0 %v578
        %613 = vmatprep.subr.bf16.mxu0 0
        %614 = vmatpush2.bf16.msra.mxu0 %v577
        %615 = vmatprep.subr.bf16.mxu0 0
        %616 = vmatpush2.bf16.msra.mxu0 %v576
        %617 = vmatprep.subr.bf16.mxu0 0
        %618 = vmatpush2.bf16.msra.mxu0 %v575
        %619 = vmatprep.subr.bf16.mxu0 0
        %620 = vmatpush2.bf16.msra.mxu0 %v574
        %621 = vmatprep.subr.bf16.mxu0 0
        %622 = vmatpush2.bf16.msra.mxu0 %v573
        %623 = vmatprep.subr.bf16.mxu0 0
        %624 = vmatpush2.bf16.msra.mxu0 %v572
        %625 = vmatprep.subr.bf16.mxu0 0
        %626 = vmatpush2.bf16.msra.mxu0 %v571
        %627 = vmatprep.mubr.bf16.mxu0 %v344
        %628 = vmatmul.mubr.bf16.gmra.mxu0 %v343
        %v629 = vpop.f32.mrf.mxu0
        %v630 = vadd.f32 %v492, %v629
        %v631 = vpop.f32.mrf.mxu0
        %v632 = vpop.f32.mrf.mxu0
        %v633 = vpop.f32.mrf.mxu0
        %634 = vdwg.mxu0
        %s635 = scalar_lea.vmem %s252, %s267
        %v636 = vld [vmem:[%s635] sm:$0x3]
        %v637 = vadd.f32 %v636, %v630
        %638 = vst [vmem:[%s635] sm:$0x3] %v637
      $region41: #{pose_cnn_forward.11} parent=31 // loop_footer
        %s266 = sadd.s32 1, %s262
      $region42: #{pose_cnn_forward.11} parent=31 // loop_footer_branch
        %261 = sbr.rel target = $region38
      $region43: #{pose_cnn_forward.11} parent=31 // loop_exit
        _
      %p639 = scmp.eq.s32.totalorder %s21, 2
      // Predicated region
      $region44: #{pose_cnn_forward.11} parent=31 // pred_check
        %p640 = pneg %p639
      $region45: #{pose_cnn_forward.11} parent=31 // pred_check_branch
        %642 = sbr.rel (%p640) target = $region47
      $region46: #{pose_cnn_forward.11} parent=31 // pred_region
        %v643 = vld [vmem:[%s252] sm:$0x3]
        %v644 = vld [vmem:[%s252 + $0x2] sm:$0x3]
        %v645 = vld [vmem:[%s2] sm:$0x1]
        %v647 = vlaneseq
        %v648 = vshrl.u32 %v647, 7
        %v649 = vsub.s32 0, %v648
        %v650 = vrot.slane %v645, %v649
        %v652 = vadd.f32 %v643, %v650
        %v653 = vadd.f32 %v644, %v650
        %v654 = vmax.f32 %v652, 0.0
        %v655 = vmax.f32 %v653, 0.0
        %656 = vst [vmem:[%s252] sm:$0x3] %v654
        %657 = vst [vmem:[%s252 + $0x2] sm:$0x3] %v655
      $region47: #{pose_cnn_forward.11} parent=31 // pred_fallthru
        _
      %s658 = smul.u32 2, %s20
      %p659 = scmp.lt.s32.totalorder %s19, 1
      %s660 = scalar_select %p659, %s19, 1
      %p661 = scmp.lt.s32.totalorder %s658, 1
      %s662 = scalar_select %p661, %s658, 1
      %s663 = smul.addr %s660, 2
      %s664 = sadd.s32 %s662, %s663
      %s665 = smul.addr %s664, 2
      %s666 = scalar_lea.vmem %s3, %s665
      // Predicated region
      $region48: #{pose_cnn_forward.11} parent=31 // pred_check
        %p667 = pneg %p132
      $region49: #{pose_cnn_forward.11} parent=31 // pred_check_branch
        %669 = sbr.rel (%p667) target = $region51
      $region50: #{pose_cnn_forward.11} parent=31 // pred_region
        %s670 = smul.u32 2, %s20
      $region51: #{pose_cnn_forward.11} parent=31 // pred_fallthru
        _
    $region32: #{pose_cnn_forward.11} parent=5 // pred_fallthru
      _
    %p671 = scmp.le.s32.totalorder 2, %s9
    // Predicated region
    $region52: #{pose_cnn_forward.11} parent=5 // pred_check
      %p672 = pneg %p671
    $region53: #{pose_cnn_forward.11} parent=5 // pred_check_branch
      %674 = sbr.rel (%p672) target = $region55
    $region54: #{pose_cnn_forward.11} parent=5 // pred_region
      %s675 = ssub.s32 %s9, 2
      // Predicated region
      $region56: #{pose_cnn_forward.11} parent=54 // pred_check
        %p676 = pneg %p138
      $region57: #{pose_cnn_forward.11} parent=54 // pred_check_branch
        %678 = sbr.rel (%p676) target = $region59
      $region58: #{pose_cnn_forward.11} parent=54 // pred_region
        %s679 = smul.u32 2, %s23
        %p680 = scmp.lt.s32.totalorder %s22, 1
        %s681 = scalar_select %p680, %s22, 1
        %p682 = scmp.lt.s32.totalorder %s679, 1
        %s683 = scalar_select %p682, %s679, 1
        %s684 = smul.addr %s681, 2
        %s685 = sadd.s32 %s683, %s684
        %s686 = smul.addr %s685, 2
        %s687 = scalar_lea.vmem %s3, %s686
      $region59: #{pose_cnn_forward.11} parent=54 // pred_fallthru
        _
    $region55: #{pose_cnn_forward.11} parent=5 // pred_fallthru
      _
  $region6: #{pose_cnn_forward.11} parent=0 // loop_footer
    %s13 = sadd.s32 1, %s9
  $region7: #{pose_cnn_forward.11} parent=0 // loop_footer_branch
    %8 = sbr.rel target = $region3
  $region8: #{pose_cnn_forward.11} parent=0 // loop_exit
    _

// kernel: pose_cnn_forward.15
$region0: #{pose_cnn_forward.15}
  #allocation0 [shape = 'u32[]', space=smem, size = 0x4, offset = 0x4, fixed_abs, tag = 'smem constant byte address 0x4 - core index']
  #allocation1 [shape = 'u32[144,128]{1,0:T(1,128)}', space=vmem, size = 0x12000, scoped, tag = 'internal scratch']
  %s0 = inlined_call_operand.vmem [shape: f32[1,2,256], index: 0, kind: input, shape index: {}]
  %s1 = inlined_call_operand.vmem [shape: f32[256,6], index: 1, kind: input, shape index: {}]
  %s2 = inlined_call_operand.vmem [shape: f32[1,6], index: 2, kind: input, shape index: {}]
  %s3 = inlined_call_operand.hbm [shape: f32[2,6], index: 3, kind: output, shape index: {}]
  %s4 = sld [smem:[#allocation0]]
  $region22: #{pose_cnn_forward.15} parent=0
    _
  %s6 = ssub.s32 1, %s4
  %s7 = scalar_select 0, %s6, %s4
  $region1: #{pose_cnn_forward.15} parent=0
    #allocation2 [shape = 'u8[1024]{0}', space=vmem, size = 0x400, scoped, tag = 'output window, operand 0, single buffered']
    #allocation3 [shape = 's32[1]{0}', space=sflag, size = 0x4, scoped, tag = 'scoped memory for pose_cnn_forward.15']
    %8 = vsyncpa [#allocation3], 0
    // Predicated region
    $region2: #{pose_cnn_forward.15} parent=1 // pred_check
      _
    $region3: #{pose_cnn_forward.15} parent=1 // pred_check_branch
      %10 = sbr.rel (0) target = $region5
    $region4: #{pose_cnn_forward.15} parent=1 // pred_region
      _
    $region5: #{pose_cnn_forward.15} parent=1 // pred_fallthru
      _
    // Predicated region
    $region6: #{pose_cnn_forward.15} parent=1 // pred_check
      _
    $region7: #{pose_cnn_forward.15} parent=1 // pred_check_branch
      %12 = sbr.rel (0) target = $region9
    $region8: #{pose_cnn_forward.15} parent=1 // pred_region
      _
    $region9: #{pose_cnn_forward.15} parent=1 // pred_fallthru
      _
    // Predicated region
    $region10: #{pose_cnn_forward.15} parent=1 // pred_check
      _
    $region11: #{pose_cnn_forward.15} parent=1 // pred_check_branch
      %14 = sbr.rel (0) target = $region13
    $region12: #{pose_cnn_forward.15} parent=1 // pred_region
      _
    $region13: #{pose_cnn_forward.15} parent=1 // pred_fallthru
      _
    %v15 = vld [vmem:[%s0] sm:$0xf]
    %v16 = vadd.f32 %v15, 0.0
    %v17 = vld [vmem:[%s1] sm:$0xff]
    %v18 = vld [vmem:[%s1 + $0x8] sm:$0xff]
    %v19 = vld [vmem:[%s1 + $0x10] sm:$0xff]
    %v20 = vld [vmem:[%s1 + $0x18] sm:$0xff]
    %v21 = vld [vmem:[%s1 + $0x20] sm:$0xff]
    %v22 = vld [vmem:[%s1 + $0x28] sm:$0xff]
    %v23 = vld [vmem:[%s1 + $0x30] sm:$0xff]
    %v24 = vld [vmem:[%s1 + $0x38] sm:$0xff]
    %v25 = vld [vmem:[%s1 + $0x40] sm:$0xff]
    %v26 = vld [vmem:[%s1 + $0x48] sm:$0xff]
    %v27 = vld [vmem:[%s1 + $0x50] sm:$0xff]
    %v28 = vld [vmem:[%s1 + $0x58] sm:$0xff]
    %v29 = vld [vmem:[%s1 + $0x60] sm:$0xff]
    %v30 = vld [vmem:[%s1 + $0x68] sm:$0xff]
    %v31 = vld [vmem:[%s1 + $0x70] sm:$0xff]
    %v32 = vld [vmem:[%s1 + $0x78] sm:$0xff]
    %v33 = vld [vmem:[%s1 + $0x80] sm:$0xff]
    %v34 = vld [vmem:[%s1 + $0x88] sm:$0xff]
    %v35 = vld [vmem:[%s1 + $0x90] sm:$0xff]
    %v36 = vld [vmem:[%s1 + $0x98] sm:$0xff]
    %v37 = vld [vmem:[%s1 + $0xa0] sm:$0xff]
    %v38 = vld [vmem:[%s1 + $0xa8] sm:$0xff]
    %v39 = vld [vmem:[%s1 + $0xb0] sm:$0xff]
    %v40 = vld [vmem:[%s1 + $0xb8] sm:$0xff]
    %v41 = vld [vmem:[%s1 + $0xc0] sm:$0xff]
    %v42 = vld [vmem:[%s1 + $0xc8] sm:$0xff]
    %v43 = vld [vmem:[%s1 + $0xd0] sm:$0xff]
    %v44 = vld [vmem:[%s1 + $0xd8] sm:$0xff]
    %v45 = vld [vmem:[%s1 + $0xe0] sm:$0xff]
    %v46 = vld [vmem:[%s1 + $0xe8] sm:$0xff]
    %v47 = vld [vmem:[%s1 + $0xf0] sm:$0xff]
    %v48 = vld [vmem:[%s1 + $0xf8] sm:$0xff]
    %v49 = vld [vmem:[%s2] sm:$0x1]
    %v51 = vlaneseq
    %v52 = vshrl.u32 %v51, 7
    %v53 = vsub.s32 0, %v52
    %v54 = vrot.slane %v49, %v53
    %v58 = vunpack.c.l.s4 1983009808
    %v59 = vunpack.c.0.s8 %v58
    %v60 = vlaneseq
    %v61 = vshrl.u32 %v60, 7
    %v62 = vsub.s32 %v59, %v61
    %v63 = vrot.slane %v16, %v62
    %v64 = vcombine.high %v63, %v63
    %67 = vmatprep.subr.mxu0 0.0
    %68 = vmatpush1.msra.mxu0 %v32
    %69 = vmatprep.subr.mxu0 0.0
    %70 = vmatpush1.msra.mxu0 %v31
    %71 = vmatprep.subr.mxu0 0.0
    %72 = vmatpush1.msra.mxu0 %v30
    %73 = vmatprep.subr.mxu0 0.0
    %74 = vmatpush1.msra.mxu0 %v29
    %75 = vmatprep.subr.mxu0 0.0
    %76 = vmatpush1.msra.mxu0 %v28
    %77 = vmatprep.subr.mxu0 0.0
    %78 = vmatpush1.msra.mxu0 %v27
    %79 = vmatprep.subr.mxu0 0.0
    %80 = vmatpush1.msra.mxu0 %v26
    %81 = vmatprep.subr.mxu0 0.0
    %82 = vmatpush1.msra.mxu0 %v25
    %83 = vmatprep.subr.mxu0 0.0
    %84 = vmatpush1.msra.mxu0 %v24
    %85 = vmatprep.subr.mxu0 0.0
    %86 = vmatpush1.msra.mxu0 %v23
    %87 = vmatprep.subr.mxu0 0.0
    %88 = vmatpush1.msra.mxu0 %v22
    %89 = vmatprep.subr.mxu0 0.0
    %90 = vmatpush1.msra.mxu0 %v21
    %91 = vmatprep.subr.mxu0 0.0
    %92 = vmatpush1.msra.mxu0 %v20
    %93 = vmatprep.subr.mxu0 0.0
    %94 = vmatpush1.msra.mxu0 %v19
    %95 = vmatprep.subr.mxu0 0.0
    %96 = vmatpush1.msra.mxu0 %v18
    %97 = vmatprep.subr.mxu0 0.0
    %98 = vmatpush1.msra.mxu0 %v17
    %99 = vmatprep.subr.mxu0 0.0
    %100 = vmatpush2.msra.mxu0 %v48
    %101 = vmatprep.subr.mxu0 0.0
    %102 = vmatpush2.msra.mxu0 %v47
    %103 = vmatprep.subr.mxu0 0.0
    %104 = vmatpush2.msra.mxu0 %v46
    %105 = vmatprep.subr.mxu0 0.0
    %106 = vmatpush2.msra.mxu0 %v45
    %107 = vmatprep.subr.mxu0 0.0
    %108 = vmatpush2.msra.mxu0 %v44
    %109 = vmatprep.subr.mxu0 0.0
    %110 = vmatpush2.msra.mxu0 %v43
    %111 = vmatprep.subr.mxu0 0.0
    %112 = vmatpush2.msra.mxu0 %v42
    %113 = vmatprep.subr.mxu0 0.0
    %114 = vmatpush2.msra.mxu0 %v41
    %115 = vmatprep.subr.mxu0 0.0
    %116 = vmatpush2.msra.mxu0 %v40
    %117 = vmatprep.subr.mxu0 0.0
    %118 = vmatpush2.msra.mxu0 %v39
    %119 = vmatprep.subr.mxu0 0.0
    %120 = vmatpush2.msra.mxu0 %v38
    %121 = vmatprep.subr.mxu0 0.0
    %122 = vmatpush2.msra.mxu0 %v37
    %123 = vmatprep.subr.mxu0 0.0
    %124 = vmatpush2.msra.mxu0 %v36
    %125 = vmatprep.subr.mxu0 0.0
    %126 = vmatpush2.msra.mxu0 %v35
    %127 = vmatprep.subr.mxu0 0.0
    %128 = vmatpush2.msra.mxu0 %v34
    %129 = vmatprep.subr.mxu0 0.0
    %130 = vmatpush2.msra.mxu0 %v33
    %131 = vmatprep.mubr.f32.mxu0 %v64
    %132 = vmatmul.mubr.f32.gmra.mxu0 %v63
    %v133 = vpop.f32.mrf.mxu0
    %v134 = vadd.f32 %v54, %v133
    %v135 = vpop.f32.mrf.mxu0
    %136 = vdwg.mxu0
    %vm137 = vcmask 41984
    %138 = vst.msk [vmem:[#allocation2] sm:$0x3] %vm137, %v134
    // Predicated region
    $region14: #{pose_cnn_forward.15} parent=1 // pred_check
      _
    $region15: #{pose_cnn_forward.15} parent=1 // pred_check_branch
      %140 = sbr.rel (0) target = $region17
    $region16: #{pose_cnn_forward.15} parent=1 // pred_region
      %s142 = ssub.s32 32, 32
      %143 = vsyncadd [#allocation3], %s142
      %s145 = sshll.u32 [#allocation2], 4
      %s146 = int_to_ptr.vmem [resolvable:$true] %s145
      %148 = dma.vmem_to_hbm [thread:$0]  %s146, 32, %s3, [#allocation3]
    $region17: #{pose_cnn_forward.15} parent=1 // pred_fallthru
      _
    // Predicated region
    $region18: #{pose_cnn_forward.15} parent=1 // pred_check
      _
    $region19: #{pose_cnn_forward.15} parent=1 // pred_check_branch
      %150 = sbr.rel (0) target = $region21
    $region20: #{pose_cnn_forward.15} parent=1 // pred_region
      %151 = dma.done [#allocation3], 32
    $region21: #{pose_cnn_forward.15} parent=1 // pred_fallthru
      _
    %152 = vsyncpa [#allocation3], 1

// kernel: pose_cnn_forward.13
$region0: #{pose_cnn_forward.13}
  #allocation0 [shape = 'u32[]', space=smem, size = 0x4, offset = 0x4, fixed_abs, tag = 'smem constant byte address 0x4 - core index']
  #allocation1 [shape = 'u32[144,128]{1,0:T(1,128)}', space=vmem, size = 0x12000, scoped, tag = 'internal scratch']
  %s0 = inlined_call_operand.vmem [shape: bf16[6,1,2,512], index: 0, kind: input, shape index: {}]
  %s1 = inlined_call_operand.vmem [shape: bf16[3,2,512,256], index: 1, kind: input, shape index: {}]
  %s2 = inlined_call_operand.vmem [shape: f32[1,256], index: 2, kind: input, shape index: {}]
  %s3 = inlined_call_operand.vmem [shape: f32[2,1,1,256], index: 3, kind: output, shape index: {}]
  %s4 = sld [smem:[#allocation0]]
  $region53: #{pose_cnn_forward.13} parent=0
    _
  %s6 = ssub.s32 1, %s4
  %s7 = scalar_select 0, %s6, %s4
  loop: start=0, step=1, limit=8
  $region2: #{pose_cnn_forward.13} parent=0 // loop_pre_header
    _
  $region3: #{pose_cnn_forward.13} parent=0 // loop_header
    %s9 = sphi 0, %s13
    %p10 = scmp.ge.s32.totalorder %s9, 8
    %s16 = sphi 0, %s35
    %s17 = sphi 0, %s31
    %s18 = sphi 0, %s27
    %s19 = sphi 0, %s16
    %s20 = sphi 0, %s17
    %s21 = sphi 0, %s18
    %s22 = sphi 0, %s19
    %s23 = sphi 0, %s20
    %s24 = sphi 0, %s21
    %s44 = sphi 0, %s46
    %s47 = sphi 0, %s44
    %s48 = sphi 0, %s47
    %s64 = sphi 0, %s48
    %s70 = sphi 0, %s72
    %s73 = sphi 0, %s70
    %s74 = sphi 0, %s73
    %s90 = sphi 0, %s74
    %s94 = sphi 0, %s94
    %s96 = sphi 0, %s94
    %s97 = sphi 0, %s96
    %s111 = sphi 0, %s97
    %s119 = sphi 0, %s121
    %s122 = sphi 0, %s119
    %s123 = sphi 0, %s122
    %s139 = sphi 0, %s123
  $region4: #{pose_cnn_forward.13} parent=0 // loop_header_branch
    %12 = sbr.rel (%p10) target = $region8
  $region5: #{pose_cnn_forward.13} parent=0 // loop_body
    %s14 = ssub.s32 %s9, 1
    %s15 = ssub.s32 %s9, 2
    %s25 = sadd.s32 1, %s18
    %p26 = scmp.ge.s32.totalorder %s25, 3
    %s27 = scalar_select %p26, 0, %s25
    %s28 = sadd.s32 1, %s17
    %s29 = scalar_select %p26, %s28, %s17
    %p30 = scmp.ge.s32.totalorder %s29, 1
    %s31 = scalar_select %p30, 0, %s29
    %s32 = sadd.s32 1, %s16
    %s33 = scalar_select %p30, %s32, %s16
    %p34 = scmp.ge.s32.totalorder %s33, 2
    %s35 = scalar_select %p34, 0, %s33
    %s36 = smul.u32 %s18, 2
    %s37 = sadd.s32 %s36, %s16
    %s38 = smul.u32 %s27, 2
    %s39 = sadd.s32 %s38, %s35
    %s40 = ssub.s32 %s37, %s39
    %s41 = ssub.s32 %s17, %s31
    %s42 = sor.u32 %s40, %s41
    %p43 = scmp.eq.s32.totalorder %s42, 0
    %s45 = sadd.s32 %s44, 1
    %s46 = scalar_select %p43, %s44, %s45
    %p49 = pneg %p43
    %p50 = scmp.eq.s32.totalorder %s9, 5
    %p51 = por %p49, %p50
    %p52 = scmp.ne.s32.totalorder %s44, %s47
    %p53 = scmp.eq.s32.totalorder %s9, 0
    %p54 = por %p52, %p53
    %p55 = scmp.ne.s32.totalorder %s44, %s47
    %p56 = scmp.eq.s32.totalorder %s14, 5
    %p57 = por %p55, %p56
    %p58 = scmp.ne.s32.totalorder %s47, %s48
    %p59 = scmp.eq.s32.totalorder %s14, 0
    %p60 = por %p58, %p59
    %p61 = scmp.ne.s32.totalorder %s47, %s48
    %p62 = scmp.eq.s32.totalorder %s15, 5
    %p63 = por %p61, %p62
    %p65 = scmp.ne.s32.totalorder %s48, %s64
    %p66 = scmp.eq.s32.totalorder %s15, 0
    %p67 = por %p65, %p66
    %s68 = ssub.s32 %s18, %s27
    %p69 = scmp.eq.s32.totalorder %s68, 0
    %s71 = sadd.s32 %s70, 1
    %s72 = scalar_select %p69, %s70, %s71
    %p75 = pneg %p69
    %p76 = scmp.eq.s32.totalorder %s9, 5
    %p77 = por %p75, %p76
    %p78 = scmp.ne.s32.totalorder %s70, %s73
    %p79 = scmp.eq.s32.totalorder %s9, 0
    %p80 = por %p78, %p79
    %p81 = scmp.ne.s32.totalorder %s70, %s73
    %p82 = scmp.eq.s32.totalorder %s14, 5
    %p83 = por %p81, %p82
    %p84 = scmp.ne.s32.totalorder %s73, %s74
    %p85 = scmp.eq.s32.totalorder %s14, 0
    %p86 = por %p84, %p85
    %p87 = scmp.ne.s32.totalorder %s73, %s74
    %p88 = scmp.eq.s32.totalorder %s15, 5
    %p89 = por %p87, %p88
    %p91 = scmp.ne.s32.totalorder %s74, %s90
    %p92 = scmp.eq.s32.totalorder %s15, 0
    %p93 = por %p91, %p92
    %s95 = sadd.s32 %s94, 1
    %p98 = scmp.eq.s32.totalorder %s9, 5
    %p99 = scmp.ne.s32.totalorder %s94, %s96
    %p100 = scmp.eq.s32.totalorder %s9, 0
    %p101 = por %p99, %p100
    %p102 = scmp.ne.s32.totalorder %s94, %s96
    %p103 = scmp.eq.s32.totalorder %s14, 5
    %p104 = por %p102, %p103
    %p105 = scmp.ne.s32.totalorder %s96, %s97
    %p106 = scmp.eq.s32.totalorder %s14, 0
    %p107 = por %p105, %p106
    %p108 = scmp.ne.s32.totalorder %s96, %s97
    %p109 = scmp.eq.s32.totalorder %s15, 5
    %p110 = por %p108, %p109
    %p112 = scmp.ne.s32.totalorder %s97, %s111
    %p113 = scmp.eq.s32.totalorder %s15, 0
    %p114 = por %p112, %p113
    %s115 = ssub.s32 %s16, %s35
    %s116 = ssub.s32 %s17, %s31
    %s117 = sor.u32 %s115, %s116
    %p118 = scmp.eq.s32.totalorder %s117, 0
    %s120 = sadd.s32 %s119, 1
    %s121 = scalar_select %p118, %s119, %s120
    %p124 = pneg %p118
    %p125 = scmp.eq.s32.totalorder %s9, 5
    %p126 = por %p124, %p125
    %p127 = scmp.ne.s32.totalorder %s119, %s122
    %p128 = scmp.eq.s32.totalorder %s9, 0
    %p129 = por %p127, %p128
    %p130 = scmp.ne.s32.totalorder %s119, %s122
    %p131 = scmp.eq.s32.totalorder %s14, 5
    %p132 = por %p130, %p131
    %p133 = scmp.ne.s32.totalorder %s122, %s123
    %p134 = scmp.eq.s32.totalorder %s14, 0
    %p135 = por %p133, %p134
    %p136 = scmp.ne.s32.totalorder %s122, %s123
    %p137 = scmp.eq.s32.totalorder %s15, 5
    %p138 = por %p136, %p137
    %p140 = scmp.ne.s32.totalorder %s123, %s139
    %p141 = scmp.eq.s32.totalorder %s15, 0
    %p142 = por %p140, %p141
    %p143 = scmp.le.s32.totalorder 1, %s9
    %p144 = scmp.lt.s32.totalorder %s9, 7
    %p145 = pnand %p143, %p144
    %p146 = pneg %p145
    // Predicated region
    $region9: #{pose_cnn_forward.13} parent=5 // pred_check
      _
    $region10: #{pose_cnn_forward.13} parent=5 // pred_check_branch
      %148 = sbr.rel (%p145) target = $region12
    $region11: #{pose_cnn_forward.13} parent=5 // pred_region
      %s149 = ssub.s32 %s9, 1
      // Predicated region
      $region13: #{pose_cnn_forward.13} parent=11 // pred_check
        %p150 = pneg %p107
      $region14: #{pose_cnn_forward.13} parent=11 // pred_check_branch
        %152 = sbr.rel (%p150) target = $region16
      $region15: #{pose_cnn_forward.13} parent=11 // pred_region
        _
      $region16: #{pose_cnn_forward.13} parent=11 // pred_fallthru
        _
    $region12: #{pose_cnn_forward.13} parent=5 // pred_fallthru
      _
    %p153 = scmp.lt.s32.totalorder %s9, 6
    // Predicated region
    $region17: #{pose_cnn_forward.13} parent=5 // pred_check
      %p154 = pneg %p153
    $region18: #{pose_cnn_forward.13} parent=5 // pred_check_branch
      %156 = sbr.rel (%p154) target = $region20
    $region19: #{pose_cnn_forward.13} parent=5 // pred_region
      // Predicated region
      $region21: #{pose_cnn_forward.13} parent=19 // pred_check
        %p157 = pneg %p54
      $region22: #{pose_cnn_forward.13} parent=19 // pred_check_branch
        %159 = sbr.rel (%p157) target = $region24
      $region23: #{pose_cnn_forward.13} parent=19 // pred_region
        %s160 = smul.u32 %s18, 2
        %s161 = sadd.s32 %s160, %s16
        %p162 = scmp.lt.s32.totalorder %s161, 5
        %s163 = scalar_select %p162, %s161, 5
        %p164 = scmp.lt.s32.totalorder %s17, 0
        %s165 = scalar_select %p164, %s17, 0
        %s166 = smul.addr %s165, 4
        %s167 = smul.addr %s163, 4
        %s168 = sadd.s32 %s166, %s167
        %s169 = scalar_lea.vmem %s0, %s168
        %s170 = smul.u32 %s18, 2
        %s171 = sadd.s32 %s170, %s16
      $region24: #{pose_cnn_forward.13} parent=19 // pred_fallthru
        _
      // Predicated region
      $region25: #{pose_cnn_forward.13} parent=19 // pred_check
        %p172 = pneg %p80
      $region26: #{pose_cnn_forward.13} parent=19 // pred_check_branch
        %174 = sbr.rel (%p172) target = $region28
      $region27: #{pose_cnn_forward.13} parent=19 // pred_region
        %p175 = scmp.lt.s32.totalorder %s18, 2
        %s176 = scalar_select %p175, %s18, 2
        %s177 = smul.addr %s176, 256
        %s178 = smul.addr %s177, 4
        %s179 = scalar_lea.vmem %s1, %s178
      $region28: #{pose_cnn_forward.13} parent=19 // pred_fallthru
        _
    $region20: #{pose_cnn_forward.13} parent=5 // pred_fallthru
      _
    %p180 = scmp.le.s32.totalorder 1, %s9
    %p181 = scmp.lt.s32.totalorder %s9, 7
    %p182 = pnand %p180, %p181
    %p183 = pneg %p182
    // Predicated region
    $region29: #{pose_cnn_forward.13} parent=5 // pred_check
      _
    $region30: #{pose_cnn_forward.13} parent=5 // pred_check_branch
      %185 = sbr.rel (%p182) target = $region32
    $region31: #{pose_cnn_forward.13} parent=5 // pred_region
      %s186 = ssub.s32 %s9, 1
      %s187 = smul.u32 %s21, 2
      %s188 = sadd.s32 %s187, %s19
      %p189 = scmp.lt.s32.totalorder %s188, 5
      %s190 = scalar_select %p189, %s188, 5
      %p191 = scmp.lt.s32.totalorder %s20, 0
      %s192 = scalar_select %p191, %s20, 0
      %s193 = smul.addr %s192, 4
      %s194 = smul.addr %s190, 4
      %s195 = sadd.s32 %s193, %s194
      %s196 = scalar_lea.vmem %s0, %s195
      %p197 = pneg %p60
      %p198 = pneg %p57
      %p199 = scmp.lt.s32.totalorder %s21, 2
      %s200 = scalar_select %p199, %s21, 2
      %s201 = smul.addr %s200, 256
      %s202 = smul.addr %s201, 4
      %s203 = scalar_lea.vmem %s1, %s202
      %p204 = pneg %p86
      %p205 = pneg %p83
      %p206 = pneg %p107
      %p207 = pneg %p104
      %p208 = pneg %p135
      %p209 = pneg %p132
      %p210 = scmp.lt.s32.totalorder %s19, 1
      %s211 = scalar_select %p210, %s19, 1
      %p212 = scmp.lt.s32.totalorder %s20, 0
      %s213 = scalar_select %p212, %s20, 0
      %s214 = smul.addr %s213, 2
      %s215 = smul.addr %s211, 2
      %s216 = sadd.s32 %s214, %s215
      %s217 = scalar_lea.vmem %s3, %s216
      %s218 = smul.u32 %s21, 2
      %s219 = sadd.s32 %s218, %s19
      %p220 = scmp.lt.s32.totalorder %s219, 5
      %s221 = scalar_select %p220, %s219, 5
      %p222 = scmp.lt.s32.totalorder %s20, 0
      %s223 = scalar_select %p222, %s20, 0
      %s224 = smul.addr %s223, 4
      %s225 = smul.addr %s221, 4
      %s226 = sadd.s32 %s224, %s225
      %s227 = scalar_lea.vmem %s0, %s226
      %s228 = smul.u32 %s21, 2
      %s229 = sadd.s32 %s228, %s19
      %p230 = scmp.lt.s32.totalorder %s21, 2
      %s231 = scalar_select %p230, %s21, 2
      %s232 = smul.addr %s231, 256
      %s233 = smul.addr %s232, 4
      %s234 = scalar_lea.vmem %s1, %s233
      %p235 = scmp.lt.s32.totalorder %s19, 1
      %s236 = scalar_select %p235, %s19, 1
      %p237 = scmp.lt.s32.totalorder %s20, 0
      %s238 = scalar_select %p237, %s20, 0
      %s239 = smul.addr %s238, 2
      %s240 = smul.addr %s236, 2
      %s241 = sadd.s32 %s239, %s240
      %s242 = scalar_lea.vmem %s3, %s241
      %p243 = scmp.eq.s32.totalorder %s21, 0
      // Predicated region
      $region33: #{pose_cnn_forward.13} parent=31 // pred_check
        %p244 = pneg %p243
      $region34: #{pose_cnn_forward.13} parent=31 // pred_check_branch
        %246 = sbr.rel (%p244) target = $region36
      $region35: #{pose_cnn_forward.13} parent=31 // pred_region
        %v247 = vlaneseq
        %vm248 = vcmp.ge.s32.totalorder %v247, 0
        %vm249 = vcmp.lt.s32.totalorder %v247, 256
        %vm250 = vmand %vm248, %vm249
        %251 = vst.msk [vmem:[%s242] sm:$0x3] %vm250, 0.0
      $region36: #{pose_cnn_forward.13} parent=31 // pred_fallthru
        _
      %v252 = vld [vmem:[%s227] sm:$0xf]
      %v253 = vld [vmem:[%s234] sm:$0xff]
      %v254 = vld [vmem:[%s234 + $0x8] sm:$0xff]
      %v255 = vld [vmem:[%s234 + $0x10] sm:$0xff]
      %v256 = vld [vmem:[%s234 + $0x18] sm:$0xff]
      %v257 = vld [vmem:[%s234 + $0x20] sm:$0xff]
      %v258 = vld [vmem:[%s234 + $0x28] sm:$0xff]
      %v259 = vld [vmem:[%s234 + $0x30] sm:$0xff]
      %v260 = vld [vmem:[%s234 + $0x38] sm:$0xff]
      %v261 = vld [vmem:[%s234 + $0x40] sm:$0xff]
      %v262 = vld [vmem:[%s234 + $0x48] sm:$0xff]
      %v263 = vld [vmem:[%s234 + $0x50] sm:$0xff]
      %v264 = vld [vmem:[%s234 + $0x58] sm:$0xff]
      %v265 = vld [vmem:[%s234 + $0x60] sm:$0xff]
      %v266 = vld [vmem:[%s234 + $0x68] sm:$0xff]
      %v267 = vld [vmem:[%s234 + $0x70] sm:$0xff]
      %v268 = vld [vmem:[%s234 + $0x78] sm:$0xff]
      %v269 = vld [vmem:[%s234 + $0x80] sm:$0xff]
      %v270 = vld [vmem:[%s234 + $0x88] sm:$0xff]
      %v271 = vld [vmem:[%s234 + $0x90] sm:$0xff]
      %v272 = vld [vmem:[%s234 + $0x98] sm:$0xff]
      %v273 = vld [vmem:[%s234 + $0xa0] sm:$0xff]
      %v274 = vld [vmem:[%s234 + $0xa8] sm:$0xff]
      %v275 = vld [vmem:[%s234 + $0xb0] sm:$0xff]
      %v276 = vld [vmem:[%s234 + $0xb8] sm:$0xff]
      %v277 = vld [vmem:[%s234 + $0xc0] sm:$0xff]
      %v278 = vld [vmem:[%s234 + $0xc8] sm:$0xff]
      %v279 = vld [vmem:[%s234 + $0xd0] sm:$0xff]
      %v280 = vld [vmem:[%s234 + $0xd8] sm:$0xff]
      %v281 = vld [vmem:[%s234 + $0xe0] sm:$0xff]
      %v282 = vld [vmem:[%s234 + $0xe8] sm:$0xff]
      %v283 = vld [vmem:[%s234 + $0xf0] sm:$0xff]
      %v284 = vld [vmem:[%s234 + $0xf8] sm:$0xff]
      %v285 = vld [vmem:[%s234 + $0x100] sm:$0xff]
      %v286 = vld [vmem:[%s234 + $0x108] sm:$0xff]
      %v287 = vld [vmem:[%s234 + $0x110] sm:$0xff]
      %v288 = vld [vmem:[%s234 + $0x118] sm:$0xff]
      %v289 = vld [vmem:[%s234 + $0x120] sm:$0xff]
      %v290 = vld [vmem:[%s234 + $0x128] sm:$0xff]
      %v291 = vld [vmem:[%s234 + $0x130] sm:$0xff]
      %v292 = vld [vmem:[%s234 + $0x138] sm:$0xff]
      %v293 = vld [vmem:[%s234 + $0x140] sm:$0xff]
      %v294 = vld [vmem:[%s234 + $0x148] sm:$0xff]
      %v295 = vld [vmem:[%s234 + $0x150] sm:$0xff]
      %v296 = vld [vmem:[%s234 + $0x158] sm:$0xff]
      %v297 = vld [vmem:[%s234 + $0x160] sm:$0xff]
      %v298 = vld [vmem:[%s234 + $0x168] sm:$0xff]
      %v299 = vld [vmem:[%s234 + $0x170] sm:$0xff]
      %v300 = vld [vmem:[%s234 + $0x178] sm:$0xff]
      %v301 = vld [vmem:[%s234 + $0x180] sm:$0xff]
      %v302 = vld [vmem:[%s234 + $0x188] sm:$0xff]
      %v303 = vld [vmem:[%s234 + $0x190] sm:$0xff]
      %v304 = vld [vmem:[%s234 + $0x198] sm:$0xff]
      %v305 = vld [vmem:[%s234 + $0x1a0] sm:$0xff]
      %v306 = vld [vmem:[%s234 + $0x1a8] sm:$0xff]
      %v307 = vld [vmem:[%s234 + $0x1b0] sm:$0xff]
      %v308 = vld [vmem:[%s234 + $0x1b8] sm:$0xff]
      %v309 = vld [vmem:[%s234 + $0x1c0] sm:$0xff]
      %v310 = vld [vmem:[%s234 + $0x1c8] sm:$0xff]
      %v311 = vld [vmem:[%s234 + $0x1d0] sm:$0xff]
      %v312 = vld [vmem:[%s234 + $0x1d8] sm:$0xff]
      %v313 = vld [vmem:[%s234 + $0x1e0] sm:$0xff]
      %v314 = vld [vmem:[%s234 + $0x1e8] sm:$0xff]
      %v315 = vld [vmem:[%s234 + $0x1f0] sm:$0xff]
      %v316 = vld [vmem:[%s234 + $0x1f8] sm:$0xff]
      %s317 = scalar_lea.vmem %s234, 512
      %v318 = vld [vmem:[%s317] sm:$0xff]
      %v319 = vld [vmem:[%s317 + $0x8] sm:$0xff]
      %v320 = vld [vmem:[%s317 + $0x10] sm:$0xff]
      %v321 = vld [vmem:[%s317 + $0x18] sm:$0xff]
      %v322 = vld [vmem:[%s317 + $0x20] sm:$0xff]
      %v323 = vld [vmem:[%s317 + $0x28] sm:$0xff]
      %v324 = vld [vmem:[%s317 + $0x30] sm:$0xff]
      %v325 = vld [vmem:[%s317 + $0x38] sm:$0xff]
      %v326 = vld [vmem:[%s317 + $0x40] sm:$0xff]
      %v327 = vld [vmem:[%s317 + $0x48] sm:$0xff]
      %v328 = vld [vmem:[%s317 + $0x50] sm:$0xff]
      %v329 = vld [vmem:[%s317 + $0x58] sm:$0xff]
      %v330 = vld [vmem:[%s317 + $0x60] sm:$0xff]
      %v331 = vld [vmem:[%s317 + $0x68] sm:$0xff]
      %v332 = vld [vmem:[%s317 + $0x70] sm:$0xff]
      %v333 = vld [vmem:[%s317 + $0x78] sm:$0xff]
      %v334 = vld [vmem:[%s317 + $0x80] sm:$0xff]
      %v335 = vld [vmem:[%s317 + $0x88] sm:$0xff]
      %v336 = vld [vmem:[%s317 + $0x90] sm:$0xff]
      %v337 = vld [vmem:[%s317 + $0x98] sm:$0xff]
      %v338 = vld [vmem:[%s317 + $0xa0] sm:$0xff]
      %v339 = vld [vmem:[%s317 + $0xa8] sm:$0xff]
      %v340 = vld [vmem:[%s317 + $0xb0] sm:$0xff]
      %v341 = vld [vmem:[%s317 + $0xb8] sm:$0xff]
      %v342 = vld [vmem:[%s317 + $0xc0] sm:$0xff]
      %v343 = vld [vmem:[%s317 + $0xc8] sm:$0xff]
      %v344 = vld [vmem:[%s317 + $0xd0] sm:$0xff]
      %v345 = vld [vmem:[%s317 + $0xd8] sm:$0xff]
      %v346 = vld [vmem:[%s317 + $0xe0] sm:$0xff]
      %v347 = vld [vmem:[%s317 + $0xe8] sm:$0xff]
      %v348 = vld [vmem:[%s317 + $0xf0] sm:$0xff]
      %v349 = vld [vmem:[%s317 + $0xf8] sm:$0xff]
      %v350 = vld [vmem:[%s317 + $0x100] sm:$0xff]
      %v351 = vld [vmem:[%s317 + $0x108] sm:$0xff]
      %v352 = vld [vmem:[%s317 + $0x110] sm:$0xff]
      %v353 = vld [vmem:[%s317 + $0x118] sm:$0xff]
      %v354 = vld [vmem:[%s317 + $0x120] sm:$0xff]
      %v355 = vld [vmem:[%s317 + $0x128] sm:$0xff]
      %v356 = vld [vmem:[%s317 + $0x130] sm:$0xff]
      %v357 = vld [vmem:[%s317 + $0x138] sm:$0xff]
      %v358 = vld [vmem:[%s317 + $0x140] sm:$0xff]
      %v359 = vld [vmem:[%s317 + $0x148] sm:$0xff]
      %v360 = vld [vmem:[%s317 + $0x150] sm:$0xff]
      %v361 = vld [vmem:[%s317 + $0x158] sm:$0xff]
      %v362 = vld [vmem:[%s317 + $0x160] sm:$0xff]
      %v363 = vld [vmem:[%s317 + $0x168] sm:$0xff]
      %v364 = vld [vmem:[%s317 + $0x170] sm:$0xff]
      %v365 = vld [vmem:[%s317 + $0x178] sm:$0xff]
      %v366 = vld [vmem:[%s317 + $0x180] sm:$0xff]
      %v367 = vld [vmem:[%s317 + $0x188] sm:$0xff]
      %v368 = vld [vmem:[%s317 + $0x190] sm:$0xff]
      %v369 = vld [vmem:[%s317 + $0x198] sm:$0xff]
      %v370 = vld [vmem:[%s317 + $0x1a0] sm:$0xff]
      %v371 = vld [vmem:[%s317 + $0x1a8] sm:$0xff]
      %v372 = vld [vmem:[%s317 + $0x1b0] sm:$0xff]
      %v373 = vld [vmem:[%s317 + $0x1b8] sm:$0xff]
      %v374 = vld [vmem:[%s317 + $0x1c0] sm:$0xff]
      %v375 = vld [vmem:[%s317 + $0x1c8] sm:$0xff]
      %v376 = vld [vmem:[%s317 + $0x1d0] sm:$0xff]
      %v377 = vld [vmem:[%s317 + $0x1d8] sm:$0xff]
      %v378 = vld [vmem:[%s317 + $0x1e0] sm:$0xff]
      %v379 = vld [vmem:[%s317 + $0x1e8] sm:$0xff]
      %v380 = vld [vmem:[%s317 + $0x1f0] sm:$0xff]
      %v381 = vld [vmem:[%s317 + $0x1f8] sm:$0xff]
      %v384 = vunpack.c.l.s4 1966171168
      %v385 = vunpack.c.0.s8 %v384
      %v386 = vlaneseq
      %v387 = vshrl.u32 %v386, 7
      %v388 = vsub.s32 %v385, %v387
      %v389 = vrot.slane %v252, %v388
      %v390 = vcombine.high %v389, %v389
      %v392 = vunpack.c.l.s4 1966171168
      %v393 = vunpack.c.0.s8 %v392
      %v394 = vlaneseq
      %v395 = vshrl.u32 %v394, 7
      %v396 = vsub.s32 %v393, %v395
      %v397 = vrot.slane %v389, %v396
      %v399 = vunpack.c.l.s4 1966171168
      %v400 = vunpack.c.0.s8 %v399
      %v401 = vlaneseq
      %v402 = vshrl.u32 %v401, 7
      %v403 = vsub.s32 %v400, %v402
      %v404 = vrot.slane %v390, %v403
      %v405 = vcombine.high %v397, %v397
      %v406 = vcombine.high %v404, %v404
      %v408 = vshrl.u32 %v397, 16
      %v411 = vshrl.u32 %v404, 16
      %v414 = vshrl.u32 %v405, 16
      %v417 = vshrl.u32 %v406, 16
      %v487 = vunpack.c.l.b16 %v318
      %v488 = vunpack.c.h.b16 %v318
      %v489 = vunpack.c.l.b16 %v319
      %v490 = vunpack.c.h.b16 %v319
      %v491 = vunpack.c.l.b16 %v320
      %v492 = vunpack.c.h.b16 %v320
      %v493 = vunpack.c.l.b16 %v321
      %v494 = vunpack.c.h.b16 %v321
      %v495 = vunpack.c.l.b16 %v322
      %v496 = vunpack.c.h.b16 %v322
      %v497 = vunpack.c.l.b16 %v323
      %v498 = vunpack.c.h.b16 %v323
      %v499 = vunpack.c.l.b16 %v324
      %v500 = vunpack.c.h.b16 %v324
      %v501 = vunpack.c.l.b16 %v325
      %v502 = vunpack.c.h.b16 %v325
      %v503 = vunpack.c.l.b16 %v326
      %v504 = vunpack.c.h.b16 %v326
      %v505 = vunpack.c.l.b16 %v327
      %v506 = vunpack.c.h.b16 %v327
      %v507 = vunpack.c.l.b16 %v328
      %v508 = vunpack.c.h.b16 %v328
      %v509 = vunpack.c.l.b16 %v329
      %v510 = vunpack.c.h.b16 %v329
      %v511 = vunpack.c.l.b16 %v330
      %v512 = vunpack.c.h.b16 %v330
      %v513 = vunpack.c.l.b16 %v331
      %v514 = vunpack.c.h.b16 %v331
      %v515 = vunpack.c.l.b16 %v332
      %v516 = vunpack.c.h.b16 %v332
      %v517 = vunpack.c.l.b16 %v333
      %v518 = vunpack.c.h.b16 %v333
      %v519 = vunpack.c.l.b16 %v334
      %v520 = vunpack.c.h.b16 %v334
      %v521 = vunpack.c.l.b16 %v335
      %v522 = vunpack.c.h.b16 %v335
      %v523 = vunpack.c.l.b16 %v336
      %v524 = vunpack.c.h.b16 %v336
      %v525 = vunpack.c.l.b16 %v337
      %v526 = vunpack.c.h.b16 %v337
      %v527 = vunpack.c.l.b16 %v338
      %v528 = vunpack.c.h.b16 %v338
      %v529 = vunpack.c.l.b16 %v339
      %v530 = vunpack.c.h.b16 %v339
      %v531 = vunpack.c.l.b16 %v340
      %v532 = vunpack.c.h.b16 %v340
      %v533 = vunpack.c.l.b16 %v341
      %v534 = vunpack.c.h.b16 %v341
      %v535 = vunpack.c.l.b16 %v342
      %v536 = vunpack.c.h.b16 %v342
      %v537 = vunpack.c.l.b16 %v343
      %v538 = vunpack.c.h.b16 %v343
      %v539 = vunpack.c.l.b16 %v344
      %v540 = vunpack.c.h.b16 %v344
      %v541 = vunpack.c.l.b16 %v345
      %v542 = vunpack.c.h.b16 %v345
      %v543 = vunpack.c.l.b16 %v346
      %v544 = vunpack.c.h.b16 %v346
      %v545 = vunpack.c.l.b16 %v347
      %v546 = vunpack.c.h.b16 %v347
      %v547 = vunpack.c.l.b16 %v348
      %v548 = vunpack.c.h.b16 %v348
      %v549 = vunpack.c.l.b16 %v349
      %v550 = vunpack.c.h.b16 %v349
      %v551 = vunpack.c.l.b16 %v350
      %v552 = vunpack.c.h.b16 %v350
      %v553 = vunpack.c.l.b16 %v351
      %v554 = vunpack.c.h.b16 %v351
      %v555 = vunpack.c.l.b16 %v352
      %v556 = vunpack.c.h.b16 %v352
      %v557 = vunpack.c.l.b16 %v353
      %v558 = vunpack.c.h.b16 %v353
      %v559 = vunpack.c.l.b16 %v354
      %v560 = vunpack.c.h.b16 %v354
      %v561 = vunpack.c.l.b16 %v355
      %v562 = vunpack.c.h.b16 %v355
      %v563 = vunpack.c.l.b16 %v356
      %v564 = vunpack.c.h.b16 %v356
      %v565 = vunpack.c.l.b16 %v357
      %v566 = vunpack.c.h.b16 %v357
      %v567 = vunpack.c.l.b16 %v358
      %v568 = vunpack.c.h.b16 %v358
      %v569 = vunpack.c.l.b16 %v359
      %v570 = vunpack.c.h.b16 %v359
      %v571 = vunpack.c.l.b16 %v360
      %v572 = vunpack.c.h.b16 %v360
      %v573 = vunpack.c.l.b16 %v361
      %v574 = vunpack.c.h.b16 %v361
      %v575 = vunpack.c.l.b16 %v362
      %v576 = vunpack.c.h.b16 %v362
      %v577 = vunpack.c.l.b16 %v363
      %v578 = vunpack.c.h.b16 %v363
      %v579 = vunpack.c.l.b16 %v364
      %v580 = vunpack.c.h.b16 %v364
      %v581 = vunpack.c.l.b16 %v365
      %v582 = vunpack.c.h.b16 %v365
      %v583 = vunpack.c.l.b16 %v366
      %v584 = vunpack.c.h.b16 %v366
      %v585 = vunpack.c.l.b16 %v367
      %v586 = vunpack.c.h.b16 %v367
      %v587 = vunpack.c.l.b16 %v368
      %v588 = vunpack.c.h.b16 %v368
      %v589 = vunpack.c.l.b16 %v369
      %v590 = vunpack.c.h.b16 %v369
      %v591 = vunpack.c.l.b16 %v370
      %v592 = vunpack.c.h.b16 %v370
      %v593 = vunpack.c.l.b16 %v371
      %v594 = vunpack.c.h.b16 %v371
      %v595 = vunpack.c.l.b16 %v372
      %v596 = vunpack.c.h.b16 %v372
      %v597 = vunpack.c.l.b16 %v373
      %v598 = vunpack.c.h.b16 %v373
      %v599 = vunpack.c.l.b16 %v374
      %v600 = vunpack.c.h.b16 %v374
      %v601 = vunpack.c.l.b16 %v375
      %v602 = vunpack.c.h.b16 %v375
      %v603 = vunpack.c.l.b16 %v376
      %v604 = vunpack.c.h.b16 %v376
      %v605 = vunpack.c.l.b16 %v377
      %v606 = vunpack.c.h.b16 %v377
      %v607 = vunpack.c.l.b16 %v378
      %v608 = vunpack.c.h.b16 %v378
      %v609 = vunpack.c.l.b16 %v379
      %v610 = vunpack.c.h.b16 %v379
      %v611 = vunpack.c.l.b16 %v380
      %v612 = vunpack.c.h.b16 %v380
      %v613 = vunpack.c.l.b16 %v381
      %v614 = vunpack.c.h.b16 %v381
      %v615 = vpack.c.b16 %v489, %v487
      %v616 = vpack.c.b16 %v490, %v488
      %v617 = vpack.c.b16 %v493, %v491
      %v618 = vpack.c.b16 %v494, %v492
      %v619 = vpack.c.b16 %v497, %v495
      %v620 = vpack.c.b16 %v498, %v496
      %v621 = vpack.c.b16 %v501, %v499
      %v622 = vpack.c.b16 %v502, %v500
      %v623 = vpack.c.b16 %v505, %v503
      %v624 = vpack.c.b16 %v506, %v504
      %v625 = vpack.c.b16 %v509, %v507
      %v626 = vpack.c.b16 %v510, %v508
      %v627 = vpack.c.b16 %v513, %v511
      %v628 = vpack.c.b16 %v514, %v512
      %v629 = vpack.c.b16 %v517, %v515
      %v630 = vpack.c.b16 %v518, %v516
      %v631 = vpack.c.b16 %v521, %v519
      %v632 = vpack.c.b16 %v522, %v520
      %v633 = vpack.c.b16 %v525, %v523
      %v634 = vpack.c.b16 %v526, %v524
      %v635 = vpack.c.b16 %v529, %v527
      %v636 = vpack.c.b16 %v530, %v528
      %v637 = vpack.c.b16 %v533, %v531
      %v638 = vpack.c.b16 %v534, %v532
      %v639 = vpack.c.b16 %v537, %v535
      %v640 = vpack.c.b16 %v538, %v536
      %v641 = vpack.c.b16 %v541, %v539
      %v642 = vpack.c.b16 %v542, %v540
      %v643 = vpack.c.b16 %v545, %v543
      %v644 = vpack.c.b16 %v546, %v544
      %v645 = vpack.c.b16 %v549, %v547
      %v646 = vpack.c.b16 %v550, %v548
      %v647 = vpack.c.b16 %v553, %v551
      %v648 = vpack.c.b16 %v554, %v552
      %v649 = vpack.c.b16 %v557, %v555
      %v650 = vpack.c.b16 %v558, %v556
      %v651 = vpack.c.b16 %v561, %v559
      %v652 = vpack.c.b16 %v562, %v560
      %v653 = vpack.c.b16 %v565, %v563
      %v654 = vpack.c.b16 %v566, %v564
      %v655 = vpack.c.b16 %v569, %v567
      %v656 = vpack.c.b16 %v570, %v568
      %v657 = vpack.c.b16 %v573, %v571
      %v658 = vpack.c.b16 %v574, %v572
      %v659 = vpack.c.b16 %v577, %v575
      %v660 = vpack.c.b16 %v578, %v576
      %v661 = vpack.c.b16 %v581, %v579
      %v662 = vpack.c.b16 %v582, %v580
      %v663 = vpack.c.b16 %v585, %v583
      %v664 = vpack.c.b16 %v586, %v584
      %v665 = vpack.c.b16 %v589, %v587
      %v666 = vpack.c.b16 %v590, %v588
      %v667 = vpack.c.b16 %v593, %v591
      %v668 = vpack.c.b16 %v594, %v592
      %v669 = vpack.c.b16 %v597, %v595
      %v670 = vpack.c.b16 %v598, %v596
      %v671 = vpack.c.b16 %v601, %v599
      %v672 = vpack.c.b16 %v602, %v600
      %v673 = vpack.c.b16 %v605, %v603
      %v674 = vpack.c.b16 %v606, %v604
      %v675 = vpack.c.b16 %v609, %v607
      %v676 = vpack.c.b16 %v610, %v608
      %v677 = vpack.c.b16 %v613, %v611
      %v678 = vpack.c.b16 %v614, %v612
      %743 = vmatprep.subr.bf16.mxu0 %v630
      %744 = vmatpush1.bf16.msra.mxu0 %v629
      %745 = vmatprep.subr.bf16.mxu0 %v628
      %746 = vmatpush1.bf16.msra.mxu0 %v627
      %747 = vmatprep.subr.bf16.mxu0 %v626
      %748 = vmatpush1.bf16.msra.mxu0 %v625
      %749 = vmatprep.subr.bf16.mxu0 %v624
      %750 = vmatpush1.bf16.msra.mxu0 %v623
      %751 = vmatprep.subr.bf16.mxu0 %v622
      %752 = vmatpush1.bf16.msra.mxu0 %v621
      %753 = vmatprep.subr.bf16.mxu0 %v620
      %754 = vmatpush1.bf16.msra.mxu0 %v619
      %755 = vmatprep.subr.bf16.mxu0 %v618
      %756 = vmatpush1.bf16.msra.mxu0 %v617
      %757 = vmatprep.subr.bf16.mxu0 %v616
      %758 = vmatpush1.bf16.msra.mxu0 %v615
      %759 = vmatprep.subr.bf16.mxu0 %v646
      %760 = vmatpush2.bf16.msra.mxu0 %v645
      %761 = vmatprep.subr.bf16.mxu0 %v644
      %762 = vmatpush2.bf16.msra.mxu0 %v643
      %763 = vmatprep.subr.bf16.mxu0 %v642
      %764 = vmatpush2.bf16.msra.mxu0 %v641
      %765 = vmatprep.subr.bf16.mxu0 %v640
      %766 = vmatpush2.bf16.msra.mxu0 %v639
      %767 = vmatprep.subr.bf16.mxu0 %v638
      %768 = vmatpush2.bf16.msra.mxu0 %v637
      %769 = vmatprep.subr.bf16.mxu0 %v636
      %770 = vmatpush2.bf16.msra.mxu0 %v635
      %771 = vmatprep.subr.bf16.mxu0 %v634
      %772 = vmatpush2.bf16.msra.mxu0 %v633
      %773 = vmatprep.subr.bf16.mxu0 %v632
      %774 = vmatpush2.bf16.msra.mxu0 %v631
      %775 = vmatprep.mubr.bf16.mxu0 %v411
      %776 = vmatmul.mubr.bf16.gmra.mxu0 %v408
      %v777 = vpop.f32.mrf.mxu0
      %v778 = vadd.f32 0.0, %v777
      %v779 = vpop.f32.mrf.mxu0
      %v780 = vadd.f32 0.0, %v779
      %v781 = vpop.f32.mrf.mxu0
      %v782 = vpop.f32.mrf.mxu0
      %783 = vdwg.mxu0
      %784 = vmatprep.subr.bf16.mxu0 %v662
      %785 = vmatpush1.bf16.msra.mxu0 %v661
      %786 = vmatprep.subr.bf16.mxu0 %v660
      %787 = vmatpush1.bf16.msra.mxu0 %v659
      %788 = vmatprep.subr.bf16.mxu0 %v658
      %789 = vmatpush1.bf16.msra.mxu0 %v657
      %790 = vmatprep.subr.bf16.mxu0 %v656
      %791 = vmatpush1.bf16.msra.mxu0 %v655
      %792 = vmatprep.subr.bf16.mxu0 %v654
      %793 = vmatpush1.bf16.msra.mxu0 %v653
      %794 = vmatprep.subr.bf16.mxu0 %v652
      %795 = vmatpush1.bf16.msra.mxu0 %v651
      %796 = vmatprep.subr.bf16.mxu0 %v650
      %797 = vmatpush1.bf16.msra.mxu0 %v649
      %798 = vmatprep.subr.bf16.mxu0 %v648
      %799 = vmatpush1.bf16.msra.mxu0 %v647
      %800 = vmatprep.subr.bf16.mxu0 %v678
      %801 = vmatpush2.bf16.msra.mxu0 %v677
      %802 = vmatprep.subr.bf16.mxu0 %v676
      %803 = vmatpush2.bf16.msra.mxu0 %v675
      %804 = vmatprep.subr.bf16.mxu0 %v674
      %805 = vmatpush2.bf16.msra.mxu0 %v673
      %806 = vmatprep.subr.bf16.mxu0 %v672
      %807 = vmatpush2.bf16.msra.mxu0 %v671
      %808 = vmatprep.subr.bf16.mxu0 %v670
      %809 = vmatpush2.bf16.msra.mxu0 %v669
      %810 = vmatprep.subr.bf16.mxu0 %v668
      %811 = vmatpush2.bf16.msra.mxu0 %v667
      %812 = vmatprep.subr.bf16.mxu0 %v666
      %813 = vmatpush2.bf16.msra.mxu0 %v665
      %814 = vmatprep.subr.bf16.mxu0 %v664
      %815 = vmatpush2.bf16.msra.mxu0 %v663
      %816 = vmatprep.mubr.bf16.mxu0 %v417
      %817 = vmatmul.mubr.bf16.gmra.mxu0 %v414
      %v818 = vpop.f32.mrf.mxu0
      %v819 = vadd.f32 %v778, %v818
      %v820 = vpop.f32.mrf.mxu0
      %v821 = vadd.f32 %v780, %v820
      %v822 = vpop.f32.mrf.mxu0
      %v823 = vpop.f32.mrf.mxu0
      %824 = vdwg.mxu0
      %v893 = vunpack.c.l.b16 %v253
      %v894 = vunpack.c.h.b16 %v253
      %v895 = vunpack.c.l.b16 %v254
      %v896 = vunpack.c.h.b16 %v254
      %v897 = vunpack.c.l.b16 %v255
      %v898 = vunpack.c.h.b16 %v255
      %v899 = vunpack.c.l.b16 %v256
      %v900 = vunpack.c.h.b16 %v256
      %v901 = vunpack.c.l.b16 %v257
      %v902 = vunpack.c.h.b16 %v257
      %v903 = vunpack.c.l.b16 %v258
      %v904 = vunpack.c.h.b16 %v258
      %v905 = vunpack.c.l.b16 %v259
      %v906 = vunpack.c.h.b16 %v259
      %v907 = vunpack.c.l.b16 %v260
      %v908 = vunpack.c.h.b16 %v260
      %v909 = vunpack.c.l.b16 %v261
      %v910 = vunpack.c.h.b16 %v261
      %v911 = vunpack.c.l.b16 %v262
      %v912 = vunpack.c.h.b16 %v262
      %v913 = vunpack.c.l.b16 %v263
      %v914 = vunpack.c.h.b16 %v263
      %v915 = vunpack.c.l.b16 %v264
      %v916 = vunpack.c.h.b16 %v264
      %v917 = vunpack.c.l.b16 %v265
      %v918 = vunpack.c.h.b16 %v265
      %v919 = vunpack.c.l.b16 %v266
      %v920 = vunpack.c.h.b16 %v266
      %v921 = vunpack.c.l.b16 %v267
      %v922 = vunpack.c.h.b16 %v267
      %v923 = vunpack.c.l.b16 %v268
      %v924 = vunpack.c.h.b16 %v268
      %v925 = vunpack.c.l.b16 %v269
      %v926 = vunpack.c.h.b16 %v269
      %v927 = vunpack.c.l.b16 %v270
      %v928 = vunpack.c.h.b16 %v270
      %v929 = vunpack.c.l.b16 %v271
      %v930 = vunpack.c.h.b16 %v271
      %v931 = vunpack.c.l.b16 %v272
      %v932 = vunpack.c.h.b16 %v272
      %v933 = vunpack.c.l.b16 %v273
      %v934 = vunpack.c.h.b16 %v273
      %v935 = vunpack.c.l.b16 %v274
      %v936 = vunpack.c.h.b16 %v274
      %v937 = vunpack.c.l.b16 %v275
      %v938 = vunpack.c.h.b16 %v275
      %v939 = vunpack.c.l.b16 %v276
      %v940 = vunpack.c.h.b16 %v276
      %v941 = vunpack.c.l.b16 %v277
      %v942 = vunpack.c.h.b16 %v277
      %v943 = vunpack.c.l.b16 %v278
      %v944 = vunpack.c.h.b16 %v278
      %v945 = vunpack.c.l.b16 %v279
      %v946 = vunpack.c.h.b16 %v279
      %v947 = vunpack.c.l.b16 %v280
      %v948 = vunpack.c.h.b16 %v280
      %v949 = vunpack.c.l.b16 %v281
      %v950 = vunpack.c.h.b16 %v281
      %v951 = vunpack.c.l.b16 %v282
      %v952 = vunpack.c.h.b16 %v282
      %v953 = vunpack.c.l.b16 %v283
      %v954 = vunpack.c.h.b16 %v283
      %v955 = vunpack.c.l.b16 %v284
      %v956 = vunpack.c.h.b16 %v284
      %v957 = vunpack.c.l.b16 %v285
      %v958 = vunpack.c.h.b16 %v285
      %v959 = vunpack.c.l.b16 %v286
      %v960 = vunpack.c.h.b16 %v286
      %v961 = vunpack.c.l.b16 %v287
      %v962 = vunpack.c.h.b16 %v287
      %v963 = vunpack.c.l.b16 %v288
      %v964 = vunpack.c.h.b16 %v288
      %v965 = vunpack.c.l.b16 %v289
      %v966 = vunpack.c.h.b16 %v289
      %v967 = vunpack.c.l.b16 %v290
      %v968 = vunpack.c.h.b16 %v290
      %v969 = vunpack.c.l.b16 %v291
      %v970 = vunpack.c.h.b16 %v291
      %v971 = vunpack.c.l.b16 %v292
      %v972 = vunpack.c.h.b16 %v292
      %v973 = vunpack.c.l.b16 %v293
      %v974 = vunpack.c.h.b16 %v293
      %v975 = vunpack.c.l.b16 %v294
      %v976 = vunpack.c.h.b16 %v294
      %v977 = vunpack.c.l.b16 %v295
      %v978 = vunpack.c.h.b16 %v295
      %v979 = vunpack.c.l.b16 %v296
      %v980 = vunpack.c.h.b16 %v296
      %v981 = vunpack.c.l.b16 %v297
      %v982 = vunpack.c.h.b16 %v297
      %v983 = vunpack.c.l.b16 %v298
      %v984 = vunpack.c.h.b16 %v298
      %v985 = vunpack.c.l.b16 %v299
      %v986 = vunpack.c.h.b16 %v299
      %v987 = vunpack.c.l.b16 %v300
      %v988 = vunpack.c.h.b16 %v300
      %v989 = vunpack.c.l.b16 %v301
      %v990 = vunpack.c.h.b16 %v301
      %v991 = vunpack.c.l.b16 %v302
      %v992 = vunpack.c.h.b16 %v302
      %v993 = vunpack.c.l.b16 %v303
      %v994 = vunpack.c.h.b16 %v303
      %v995 = vunpack.c.l.b16 %v304
      %v996 = vunpack.c.h.b16 %v304
      %v997 = vunpack.c.l.b16 %v305
      %v998 = vunpack.c.h.b16 %v305
      %v999 = vunpack.c.l.b16 %v306
      %v1000 = vunpack.c.h.b16 %v306
      %v1001 = vunpack.c.l.b16 %v307
      %v1002 = vunpack.c.h.b16 %v307
      %v1003 = vunpack.c.l.b16 %v308
      %v1004 = vunpack.c.h.b16 %v308
      %v1005 = vunpack.c.l.b16 %v309
      %v1006 = vunpack.c.h.b16 %v309
      %v1007 = vunpack.c.l.b16 %v310
      %v1008 = vunpack.c.h.b16 %v310
      %v1009 = vunpack.c.l.b16 %v311
      %v1010 = vunpack.c.h.b16 %v311
      %v1011 = vunpack.c.l.b16 %v312
      %v1012 = vunpack.c.h.b16 %v312
      %v1013 = vunpack.c.l.b16 %v313
      %v1014 = vunpack.c.h.b16 %v313
      %v1015 = vunpack.c.l.b16 %v314
      %v1016 = vunpack.c.h.b16 %v314
      %v1017 = vunpack.c.l.b16 %v315
      %v1018 = vunpack.c.h.b16 %v315
      %v1019 = vunpack.c.l.b16 %v316
      %v1020 = vunpack.c.h.b16 %v316
      %v1021 = vpack.c.b16 %v895, %v893
      %v1022 = vpack.c.b16 %v896, %v894
      %v1023 = vpack.c.b16 %v899, %v897
      %v1024 = vpack.c.b16 %v900, %v898
      %v1025 = vpack.c.b16 %v903, %v901
      %v1026 = vpack.c.b16 %v904, %v902
      %v1027 = vpack.c.b16 %v907, %v905
      %v1028 = vpack.c.b16 %v908, %v906
      %v1029 = vpack.c.b16 %v911, %v909
      %v1030 = vpack.c.b16 %v912, %v910
      %v1031 = vpack.c.b16 %v915, %v913
      %v1032 = vpack.c.b16 %v916, %v914
      %v1033 = vpack.c.b16 %v919, %v917
      %v1034 = vpack.c.b16 %v920, %v918
      %v1035 = vpack.c.b16 %v923, %v921
      %v1036 = vpack.c.b16 %v924, %v922
      %v1037 = vpack.c.b16 %v927, %v925
      %v1038 = vpack.c.b16 %v928, %v926
      %v1039 = vpack.c.b16 %v931, %v929
      %v1040 = vpack.c.b16 %v932, %v930
      %v1041 = vpack.c.b16 %v935, %v933
      %v1042 = vpack.c.b16 %v936, %v934
      %v1043 = vpack.c.b16 %v939, %v937
      %v1044 = vpack.c.b16 %v940, %v938
      %v1045 = vpack.c.b16 %v943, %v941
      %v1046 = vpack.c.b16 %v944, %v942
      %v1047 = vpack.c.b16 %v947, %v945
      %v1048 = vpack.c.b16 %v948, %v946
      %v1049 = vpack.c.b16 %v951, %v949
      %v1050 = vpack.c.b16 %v952, %v950
      %v1051 = vpack.c.b16 %v955, %v953
      %v1052 = vpack.c.b16 %v956, %v954
      %v1053 = vpack.c.b16 %v959, %v957
      %v1054 = vpack.c.b16 %v960, %v958
      %v1055 = vpack.c.b16 %v963, %v961
      %v1056 = vpack.c.b16 %v964, %v962
      %v1057 = vpack.c.b16 %v967, %v965
      %v1058 = vpack.c.b16 %v968, %v966
      %v1059 = vpack.c.b16 %v971, %v969
      %v1060 = vpack.c.b16 %v972, %v970
      %v1061 = vpack.c.b16 %v975, %v973
      %v1062 = vpack.c.b16 %v976, %v974
      %v1063 = vpack.c.b16 %v979, %v977
      %v1064 = vpack.c.b16 %v980, %v978
      %v1065 = vpack.c.b16 %v983, %v981
      %v1066 = vpack.c.b16 %v984, %v982
      %v1067 = vpack.c.b16 %v987, %v985
      %v1068 = vpack.c.b16 %v988, %v986
      %v1069 = vpack.c.b16 %v991, %v989
      %v1070 = vpack.c.b16 %v992, %v990
      %v1071 = vpack.c.b16 %v995, %v993
      %v1072 = vpack.c.b16 %v996, %v994
      %v1073 = vpack.c.b16 %v999, %v997
      %v1074 = vpack.c.b16 %v1000, %v998
      %v1075 = vpack.c.b16 %v1003, %v1001
      %v1076 = vpack.c.b16 %v1004, %v1002
      %v1077 = vpack.c.b16 %v1007, %v1005
      %v1078 = vpack.c.b16 %v1008, %v1006
      %v1079 = vpack.c.b16 %v1011, %v1009
      %v1080 = vpack.c.b16 %v1012, %v1010
      %v1081 = vpack.c.b16 %v1015, %v1013
      %v1082 = vpack.c.b16 %v1016, %v1014
      %v1083 = vpack.c.b16 %v1019, %v1017
      %v1084 = vpack.c.b16 %v1020, %v1018
      %1149 = vmatprep.subr.bf16.mxu0 %v1036
      %1150 = vmatpush1.bf16.msra.mxu0 %v1035
      %1151 = vmatprep.subr.bf16.mxu0 %v1034
      %1152 = vmatpush1.bf16.msra.mxu0 %v1033
      %1153 = vmatprep.subr.bf16.mxu0 %v1032
      %1154 = vmatpush1.bf16.msra.mxu0 %v1031
      %1155 = vmatprep.subr.bf16.mxu0 %v1030
      %1156 = vmatpush1.bf16.msra.mxu0 %v1029
      %1157 = vmatprep.subr.bf16.mxu0 %v1028
      %1158 = vmatpush1.bf16.msra.mxu0 %v1027
      %1159 = vmatprep.subr.bf16.mxu0 %v1026
      %1160 = vmatpush1.bf16.msra.mxu0 %v1025
      %1161 = vmatprep.subr.bf16.mxu0 %v1024
      %1162 = vmatpush1.bf16.msra.mxu0 %v1023
      %1163 = vmatprep.subr.bf16.mxu0 %v1022
      %1164 = vmatpush1.bf16.msra.mxu0 %v1021
      %1165 = vmatprep.subr.bf16.mxu0 %v1052
      %1166 = vmatpush2.bf16.msra.mxu0 %v1051
      %1167 = vmatprep.subr.bf16.mxu0 %v1050
      %1168 = vmatpush2.bf16.msra.mxu0 %v1049
      %1169 = vmatprep.subr.bf16.mxu0 %v1048
      %1170 = vmatpush2.bf16.msra.mxu0 %v1047
      %1171 = vmatprep.subr.bf16.mxu0 %v1046
      %1172 = vmatpush2.bf16.msra.mxu0 %v1045
      %1173 = vmatprep.subr.bf16.mxu0 %v1044
      %1174 = vmatpush2.bf16.msra.mxu0 %v1043
      %1175 = vmatprep.subr.bf16.mxu0 %v1042
      %1176 = vmatpush2.bf16.msra.mxu0 %v1041
      %1177 = vmatprep.subr.bf16.mxu0 %v1040
      %1178 = vmatpush2.bf16.msra.mxu0 %v1039
      %1179 = vmatprep.subr.bf16.mxu0 %v1038
      %1180 = vmatpush2.bf16.msra.mxu0 %v1037
      %1181 = vmatprep.mubr.bf16.mxu0 %v404
      %1182 = vmatmul.mubr.bf16.gmra.mxu0 %v397
      %v1183 = vpop.f32.mrf.mxu0
      %v1184 = vadd.f32 %v819, %v1183
      %v1185 = vpop.f32.mrf.mxu0
      %v1186 = vadd.f32 %v821, %v1185
      %v1187 = vpop.f32.mrf.mxu0
      %v1188 = vpop.f32.mrf.mxu0
      %1189 = vdwg.mxu0
      %1190 = vmatprep.subr.bf16.mxu0 %v1068
      %1191 = vmatpush1.bf16.msra.mxu0 %v1067
      %1192 = vmatprep.subr.bf16.mxu0 %v1066
      %1193 = vmatpush1.bf16.msra.mxu0 %v1065
      %1194 = vmatprep.subr.bf16.mxu0 %v1064
      %1195 = vmatpush1.bf16.msra.mxu0 %v1063
      %1196 = vmatprep.subr.bf16.mxu0 %v1062
      %1197 = vmatpush1.bf16.msra.mxu0 %v1061
      %1198 = vmatprep.subr.bf16.mxu0 %v1060
      %1199 = vmatpush1.bf16.msra.mxu0 %v1059
      %1200 = vmatprep.subr.bf16.mxu0 %v1058
      %1201 = vmatpush1.bf16.msra.mxu0 %v1057
      %1202 = vmatprep.subr.bf16.mxu0 %v1056
      %1203 = vmatpush1.bf16.msra.mxu0 %v1055
      %1204 = vmatprep.subr.bf16.mxu0 %v1054
      %1205 = vmatpush1.bf16.msra.mxu0 %v1053
      %1206 = vmatprep.subr.bf16.mxu0 %v1084
      %1207 = vmatpush2.bf16.msra.mxu0 %v1083
      %1208 = vmatprep.subr.bf16.mxu0 %v1082
      %1209 = vmatpush2.bf16.msra.mxu0 %v1081
      %1210 = vmatprep.subr.bf16.mxu0 %v1080
      %1211 = vmatpush2.bf16.msra.mxu0 %v1079
      %1212 = vmatprep.subr.bf16.mxu0 %v1078
      %1213 = vmatpush2.bf16.msra.mxu0 %v1077
      %1214 = vmatprep.subr.bf16.mxu0 %v1076
      %1215 = vmatpush2.bf16.msra.mxu0 %v1075
      %1216 = vmatprep.subr.bf16.mxu0 %v1074
      %1217 = vmatpush2.bf16.msra.mxu0 %v1073
      %1218 = vmatprep.subr.bf16.mxu0 %v1072
      %1219 = vmatpush2.bf16.msra.mxu0 %v1071
      %1220 = vmatprep.subr.bf16.mxu0 %v1070
      %1221 = vmatpush2.bf16.msra.mxu0 %v1069
      %1222 = vmatprep.mubr.bf16.mxu0 %v406
      %1223 = vmatmul.mubr.bf16.gmra.mxu0 %v405
      %v1224 = vpop.f32.mrf.mxu0
      %v1225 = vadd.f32 %v1184, %v1224
      %v1226 = vpop.f32.mrf.mxu0
      %v1227 = vadd.f32 %v1186, %v1226
      %v1228 = vpop.f32.mrf.mxu0
      %v1229 = vpop.f32.mrf.mxu0
      %1230 = vdwg.mxu0
      %v1231 = vld [vmem:[%s242] sm:$0x3]
      %v1234 = vcombine.low %v1225, %v1227
      %v1236 = vunpack.c.l.s4 1966171168
      %v1237 = vunpack.c.0.s8 %v1236
      %v1238 = vlaneseq
      %v1239 = vshrl.u32 %v1238, 7
      %v1240 = vsub.s32 %v1237, %v1239
      %v1241 = vrot.slane %v1234, %v1240
      %v1243 = vunpack.c.l.s4 1966171168
      %v1244 = vunpack.c.0.s8 %v1243
      %v1245 = vlaneseq
      %v1246 = vshrl.u32 %v1245, 7
      %v1247 = vsub.s32 %v1244, %v1246
      %v1248 = vrot.slane %v1241, %v1247
      %v1250 = vadd.f32 %v1231, %v1248
      %v1251 = vlaneseq
      %vm1252 = vcmp.ge.s32.totalorder %v1251, 0
      %vm1253 = vcmp.lt.s32.totalorder %v1251, 256
      %vm1254 = vmand %vm1252, %vm1253
      %1255 = vst.msk [vmem:[%s242] sm:$0x3] %vm1254, %v1250
      %p1256 = scmp.eq.s32.totalorder %s21, 2
      // Predicated region
      $region37: #{pose_cnn_forward.13} parent=31 // pred_check
        %p1257 = pneg %p1256
      $region38: #{pose_cnn_forward.13} parent=31 // pred_check_branch
        %1259 = sbr.rel (%p1257) target = $region40
      $region39: #{pose_cnn_forward.13} parent=31 // pred_region
        %v1260 = vld [vmem:[%s242] sm:$0x3]
        %v1261 = vld [vmem:[%s2] sm:$0x3]
        %v1262 = vadd.f32 %v1260, %v1261
        %v1263 = vmax.f32 %v1262, 0.0
        %1264 = vst.msk [vmem:[%s242] sm:$0x3] %vm1254, %v1263
      $region40: #{pose_cnn_forward.13} parent=31 // pred_fallthru
        _
      %p1265 = scmp.lt.s32.totalorder %s19, 1
      %s1266 = scalar_select %p1265, %s19, 1
      %p1267 = scmp.lt.s32.totalorder %s20, 0
      %s1268 = scalar_select %p1267, %s20, 0
      %s1269 = smul.addr %s1268, 2
      %s1270 = smul.addr %s1266, 2
      %s1271 = sadd.s32 %s1269, %s1270
      %s1272 = scalar_lea.vmem %s3, %s1271
      // Predicated region
      $region41: #{pose_cnn_forward.13} parent=31 // pred_check
        %p1273 = pneg %p132
      $region42: #{pose_cnn_forward.13} parent=31 // pred_check_branch
        %1275 = sbr.rel (%p1273) target = $region44
      $region43: #{pose_cnn_forward.13} parent=31 // pred_region
        _
      $region44: #{pose_cnn_forward.13} parent=31 // pred_fallthru
        _
    $region32: #{pose_cnn_forward.13} parent=5 // pred_fallthru
      _
    %p1276 = scmp.le.s32.totalorder 2, %s9
    // Predicated region
    $region45: #{pose_cnn_forward.13} parent=5 // pred_check
      %p1277 = pneg %p1276
    $region46: #{pose_cnn_forward.13} parent=5 // pred_check_branch
      %1279 = sbr.rel (%p1277) target = $region48
    $region47: #{pose_cnn_forward.13} parent=5 // pred_region
      %s1280 = ssub.s32 %s9, 2
      // Predicated region
      $region49: #{pose_cnn_forward.13} parent=47 // pred_check
        %p1281 = pneg %p138
      $region50: #{pose_cnn_forward.13} parent=47 // pred_check_branch
        %1283 = sbr.rel (%p1281) target = $region52
      $region51: #{pose_cnn_forward.13} parent=47 // pred_region
        %p1284 = scmp.lt.s32.totalorder %s22, 1
        %s1285 = scalar_select %p1284, %s22, 1
        %p1286 = scmp.lt.s32.totalorder %s23, 0
        %s1287 = scalar_select %p1286, %s23, 0
        %s1288 = smul.addr %s1287, 2
        %s1289 = smul.addr %s1285, 2
        %s1290 = sadd.s32 %s1288, %s1289
        %s1291 = scalar_lea.vmem %s3, %s1290
      $region52: #{pose_cnn_forward.13} parent=47 // pred_fallthru
        _
    $region48: #{pose_cnn_forward.13} parent=5 // pred_fallthru
      _
  $region6: #{pose_cnn_forward.13} parent=0 // loop_footer
    %s13 = sadd.s32 1, %s9
  $region7: #{pose_cnn_forward.13} parent=0 // loop_footer_branch
    %8 = sbr.rel target = $region3
  $region8: #{pose_cnn_forward.13} parent=0 // loop_exit
    _

</llo_original>
